<compile_context>
chip_gen: v5e
topology: v5e:2x2
jax: 0.10.0
libtpu: 0.0.40
codegen_flags: <defaults>
</compile_context>

<pallas_src>
import numpy as np
import jax
import jax.numpy as jnp
from jax.experimental import pallas as pl
from jax.experimental.pallas import tpu as pltpu  # noqa: F401  (imported per template)

# ----------------------------- small config ---------------------------------
IMAGE_SIZE = 16          # image_size
PATCH = 4                # patch_size
IN_CH = 4                # in_channels (== out_channels)
HIDDEN = 32              # hidden_size
NUM_HEADS = 4
DEPTH = 2
MLP_RATIO = 4.0
FREQ_DIM = 256           # TimestepEmbedder frequency_embedding_size (DiT default)

GRID_SZ = IMAGE_SIZE // PATCH          # 4
NUM_PATCHES = GRID_SZ * GRID_SZ        # 16
HEAD_DIM = HIDDEN // NUM_HEADS         # 8
MLP_HIDDEN = int(HIDDEN * MLP_RATIO)   # 128
PATCH_DIM = IN_CH * PATCH * PATCH      # 64  (conv weight flattened: c, ph, pw)
OUT_PATCH_DIM = PATCH * PATCH * IN_CH  # 64  (final layer: p, q, c)


# ----------------------------- kernel helpers --------------------------------
def _layernorm(x, eps=1e-6):
    # LayerNorm(elementwise_affine=False), biased variance, like nn.LayerNorm.
    mu = jnp.mean(x, axis=-1, keepdims=True)
    var = jnp.mean(jnp.square(x - mu), axis=-1, keepdims=True)
    return (x - mu) * jax.lax.rsqrt(var + eps)


def _silu(x):
    return x * jax.nn.sigmoid(x)


# ----------------------------- fused Pallas kernel ---------------------------
def dit_forward_kernel(patches_ref, tfreq_ref, pos_ref,
                       w_patch_ref, b_patch_ref,
                       w_t1_ref, b_t1_ref, w_t2_ref, b_t2_ref,
                       wmod_ref, bmod_ref, wqkv_ref, bqkv_ref,
                       wproj_ref, bproj_ref, wfc1_ref, bfc1_ref,
                       wfc2_ref, bfc2_ref,
                       wmodf_ref, bmodf_ref, wlin_ref, blin_ref,
                       o_ref):
    H = HIDDEN
    T = NUM_PATCHES
    NT = patches_ref.shape[0]
    N = NT // T

    def expand_batch(v):
        # (N, F) per-batch vector -> (N*T, F), batch-major sublane broadcast.
        f = v.shape[-1]
        return jnp.broadcast_to(v[:, None, :], (N, T, f)).reshape(NT, f)

    # ---- patch embedding + positional embedding ----
    pos = jnp.broadcast_to(pos_ref[...], (N, T, H)).reshape(NT, H)
    x = (jnp.dot(patches_ref[...], w_patch_ref[...],
                 preferred_element_type=jnp.float32)
         + b_patch_ref[...] + pos)                                   # (NT, H)

    # ---- timestep embedder MLP: Linear -> SiLU -> Linear ----
    h = jnp.dot(tfreq_ref[...], w_t1_ref[...],
                preferred_element_type=jnp.float32) + b_t1_ref[...]
    h = _silu(h)
    c = jnp.dot(h, w_t2_ref[...],
                preferred_element_type=jnp.float32) + b_t2_ref[...]  # (N, H)
    c_act = _silu(c)                                                 # (N, H)

    scale_qk = 1.0 / (HEAD_DIM ** 0.5)

    # ---- DiT blocks (static unroll over depth) ----
    for d in range(DEPTH):
        def mod_chunk(k, d=d):
            # static ref slices of the adaLN weight/bias (zero-cost windows)
            w = wmod_ref[d, :, k * H:(k + 1) * H]                    # (H, H)
            b = bmod_ref[d, :, k * H:(k + 1) * H]                    # (1, H)
            m = jnp.dot(c_act, w, preferred_element_type=jnp.float32) + b
            return expand_batch(m)                                   # (NT, H)

        shift_msa = mod_chunk(0)
        scale_msa = mod_chunk(1)
        gate_msa = mod_chunk(2)
        shift_mlp = mod_chunk(3)
        scale_mlp = mod_chunk(4)
        gate_mlp = mod_chunk(5)

        # ---- attention branch ----
        xm = _layernorm(x) * (1.0 + scale_msa) + shift_msa           # (NT, H)
        attn_proj = jnp.zeros((NT, H), jnp.float32)
        for hh in range(NUM_HEADS):
            qc = hh * HEAD_DIM
            kc = H + hh * HEAD_DIM
            vc = 2 * H + hh * HEAD_DIM
            q = (jnp.dot(xm, wqkv_ref[d, :, qc:qc + HEAD_DIM],
                         preferred_element_type=jnp.float32)
                 + bqkv_ref[d, :, qc:qc + HEAD_DIM])
            k = (jnp.dot(xm, wqkv_ref[d, :, kc:kc + HEAD_DIM],
                         preferred_element_type=jnp.float32)
                 + bqkv_ref[d, :, kc:kc + HEAD_DIM])
            v = (jnp.dot(xm, wqkv_ref[d, :, vc:vc + HEAD_DIM],
                         preferred_element_type=jnp.float32)
                 + bqkv_ref[d, :, vc:vc + HEAD_DIM])
            # (NT, D) -> (N, T, D): pure leading-dim split, layout no-op.
            q3 = q.reshape(N, T, HEAD_DIM) * scale_qk
            k3 = k.reshape(N, T, HEAD_DIM)
            v3 = v.reshape(N, T, HEAD_DIM)
            att = jnp.einsum('bqd,bkd->bqk', q3, k3,
                             preferred_element_type=jnp.float32)     # (N, T, T)
            att = jnp.exp(att - jnp.max(att, axis=-1, keepdims=True))
            att = att * pl.reciprocal(jnp.sum(att, axis=-1, keepdims=True),
                                      approx=True)
            oh = jnp.einsum('bqk,bkd->bqd', att, v3,
                            preferred_element_type=jnp.float32)      # (N, T, D)
            # accumulate proj with a static row-slice of Wproj (no lane concat)
            attn_proj = attn_proj + jnp.dot(
                oh.reshape(NT, HEAD_DIM),
                wproj_ref[d, qc:qc + HEAD_DIM, :],
                preferred_element_type=jnp.float32)
        attn_proj = attn_proj + bproj_ref[d]
        x = x + gate_msa * attn_proj

        # ---- MLP branch ----
        xm2 = _layernorm(x) * (1.0 + scale_mlp) + shift_mlp
        h1 = jnp.dot(xm2, wfc1_ref[d],
                     preferred_element_type=jnp.float32) + bfc1_ref[d]
        h1 = jax.nn.gelu(h1, approximate=True)      # GELU(approximate='tanh')
        mlp_out = jnp.dot(h1, wfc2_ref[d],
                          preferred_element_type=jnp.float32) + bfc2_ref[d]
        x = x + gate_mlp * mlp_out

    # ---- final layer ----
    shift_f = expand_batch(
        jnp.dot(c_act, wmodf_ref[:, 0:H],
                preferred_element_type=jnp.float32) + bmodf_ref[:, 0:H])
    scale_f = expand_batch(
        jnp.dot(c_act, wmodf_ref[:, H:2 * H],
                preferred_element_type=jnp.float32) + bmodf_ref[:, H:2 * H])
    xmf = _layernorm(x) * (1.0 + scale_f) + shift_f
    o_ref[...] = (jnp.dot(xmf, wlin_ref[...],
                          preferred_element_type=jnp.float32) + blin_ref[...])


def dit_forward_call(patches, tfreq, pos_embed, flat_params):
    # Single fused invocation: no grid, everything resident in VMEM
    # (weights + activations total ~200 KB, far under budget on v5e/v6e/v7x).
    NT = patches.shape[0]
    return pl.pallas_call(
        dit_forward_kernel,
        out_shape=jax.ShapeDtypeStruct((NT, OUT_PATCH_DIM), jnp.float32),
    )(patches, tfreq, pos_embed, *flat_params)


# ----------------------------- glue (plain JAX / numpy) -----------------------
def get_2d_sincos_pos_embed(embed_dim, grid_size):
    def one_d(dim, pos):
        omega = np.arange(dim // 2, dtype=np.float64) / (dim / 2.0)
        omega = 1.0 / 10000 ** omega
        pos = pos.reshape(-1)
        out = np.einsum("m,d->md", pos, omega)
        return np.concatenate([np.sin(out), np.cos(out)], axis=1)

    grid_h = np.arange(grid_size, dtype=np.float32)
    grid_w = np.arange(grid_size, dtype=np.float32)
    grid = np.meshgrid(grid_w, grid_h)
    grid = np.stack(grid, axis=0).reshape([2, 1, grid_size, grid_size])
    emb_h = one_d(embed_dim // 2, grid[0])
    emb_w = one_d(embed_dim // 2, grid[1])
    return np.concatenate([emb_h, emb_w], axis=1).astype(np.float32)  # (T, D)


def timestep_embedding(t, dim=FREQ_DIM, max_period=10000.0):
    half = dim // 2
    freqs = jnp.exp(-jnp.log(max_period)
                    * jnp.arange(half, dtype=jnp.float32) / half)
    args = t.astype(jnp.float32)[:, None] * freqs[None, :]
    return jnp.concatenate([jnp.cos(args), jnp.sin(args)], axis=-1)


def patchify(x):
    # x: (N, C, H, W) -> (N*T, C*P*P); per-patch ordering is (c, ph, pw),
    # matching the flattened Conv2d(kernel=stride=PATCH) weight.
    N, C, Hh, Ww = x.shape
    gh, gw = Hh // PATCH, Ww // PATCH
    x = x.reshape(N, C, gh, PATCH, gw, PATCH)
    x = jnp.transpose(x, (0, 2, 4, 1, 3, 5))   # (N, gh, gw, C, P, P)
    return x.reshape(N * gh * gw, C * PATCH * PATCH)


def unpatchify(x, c=IN_CH, p=PATCH):
    # x: (N, T, p*p*c) -> (N, c, h*p, w*p), same einsum as the reference.
    N, T, _ = x.shape
    h = w = int(T ** 0.5)
    x = x.reshape(N, h, w, p, p, c)
    x = jnp.einsum("nhwpqc->nchpwq", x)
    return x.reshape(N, c, h * p, w * p)


# ----------------------------- deterministic params ---------------------------
def _dense(key, fan_in, fan_out):
    limit = float(np.sqrt(6.0 / (fan_in + fan_out)))
    return jax.random.uniform(key, (fan_in, fan_out), jnp.float32,
                              -limit, limit)


def init_params(key):
    keys = jax.random.split(key, 64)
    ki = iter(range(64))
    p = {}
    # PatchEmbed: conv (hidden, C, P, P) flattened/transposed -> (C*P*P, hidden)
    p["w_patch"] = _dense(keys[next(ki)], PATCH_DIM, HIDDEN)
    p["b_patch"] = jnp.zeros((1, HIDDEN), jnp.float32)
    p["pos_embed"] = jnp.asarray(get_2d_sincos_pos_embed(HIDDEN, GRID_SZ))
    # TimestepEmbedder MLP
    p["w_t1"] = 0.02 * jax.random.normal(keys[next(ki)], (FREQ_DIM, HIDDEN))
    p["b_t1"] = jnp.zeros((1, HIDDEN), jnp.float32)
    p["w_t2"] = 0.02 * jax.random.normal(keys[next(ki)], (HIDDEN, HIDDEN))
    p["b_t2"] = jnp.zeros((1, HIDDEN), jnp.float32)
    # DiT blocks (stacked along a leading depth axis)
    wmod, bmod, wqkv, bqkv = [], [], [], []
    wproj, bproj, wfc1, bfc1, wfc2, bfc2 = [], [], [], [], [], []
    for _ in range(DEPTH):
        wmod.append(0.1 * _dense(keys[next(ki)], HIDDEN, 6 * HIDDEN))
        bmod.append(0.01 * jnp.ones((1, 6 * HIDDEN), jnp.float32))
        wqkv.append(_dense(keys[next(ki)], HIDDEN, 3 * HIDDEN))
        bqkv.append(jnp.zeros((1, 3 * HIDDEN), jnp.float32))
        wproj.append(_dense(keys[next(ki)], HIDDEN, HIDDEN))
        bproj.append(jnp.zeros((1, HIDDEN), jnp.float32))
        wfc1.append(_dense(keys[next(ki)], HIDDEN, MLP_HIDDEN))
        bfc1.append(jnp.zeros((1, MLP_HIDDEN), jnp.float32))
        wfc2.append(_dense(keys[next(ki)], MLP_HIDDEN, HIDDEN))
        bfc2.append(jnp.zeros((1, HIDDEN), jnp.float32))
    p["wmod"], p["bmod"] = jnp.stack(wmod), jnp.stack(bmod)
    p["wqkv"], p["bqkv"] = jnp.stack(wqkv), jnp.stack(bqkv)
    p["wproj"], p["bproj"] = jnp.stack(wproj), jnp.stack(bproj)
    p["wfc1"], p["bfc1"] = jnp.stack(wfc1), jnp.stack(bfc1)
    p["wfc2"], p["bfc2"] = jnp.stack(wfc2), jnp.stack(bfc2)
    # FinalLayer
    p["wmod_f"] = 0.1 * _dense(keys[next(ki)], HIDDEN, 2 * HIDDEN)
    p["bmod_f"] = 0.01 * jnp.ones((1, 2 * HIDDEN), jnp.float32)
    p["wlin"] = 0.1 * jnp.ones((HIDDEN, OUT_PATCH_DIM), jnp.float32)   # = 0.1
    p["blin"] = 0.1 * jnp.ones((1, OUT_PATCH_DIM), jnp.float32)        # = 0.1
    return p


# ----------------------------- forward ---------------------------------------
@jax.jit
def forward(params, x, t):
    N = x.shape[0]
    patches = patchify(x)                     # (N*T, C*P*P)
    tfreq = timestep_embedding(t)             # (N, FREQ_DIM)
    flat = [params["w_patch"], params["b_patch"],
            params["w_t1"], params["b_t1"], params["w_t2"], params["b_t2"],
            params["wmod"], params["bmod"], params["wqkv"], params["bqkv"],
            params["wproj"], params["bproj"], params["wfc1"], params["bfc1"],
            params["wfc2"], params["bfc2"],
            params["wmod_f"], params["bmod_f"], params["wlin"], params["blin"]]
    xout = dit_forward_call(patches, tfreq, params["pos_embed"], flat)
    return unpatchify(xout.reshape(N, NUM_PATCHES, OUT_PATCH_DIM))

# TODO(synk): GaussianDiffusion / schedule-sampler construction and the unused
# LabelEmbedder (y is never used in forward) are not part of the compute path
# and are not implemented.


if __name__ == "__main__":
    key = jax.random.PRNGKey(0)
    kx, kp = jax.random.split(key, 2)
    x = jax.random.normal(kx, (2, IN_CH, IMAGE_SIZE, IMAGE_SIZE),
                          dtype=jnp.float32)
    t = jnp.array([3, 7], dtype=jnp.int32)
    params = init_params(kp)

    out = forward(params, x, t)
    out = jax.block_until_ready(out)
    assert out.shape == (2, IN_CH, IMAGE_SIZE, IMAGE_SIZE), out.shape
    assert out.dtype == jnp.float32
    assert bool(jnp.all(jnp.isfinite(out)))
    print("KERNEL_OK")
</pallas_src>

<mosaic_0001>
module attributes {stable_mosaic.version = 11 : i64} {
  func.func @dit_forward_kernel(%arg0: memref<32x64xf32, #tpu.memory_space<vmem>>, %arg1: memref<2x256xf32, #tpu.memory_space<vmem>>, %arg2: memref<16x32xf32, #tpu.memory_space<vmem>>, %arg3: memref<64x32xf32, #tpu.memory_space<vmem>>, %arg4: memref<1x32xf32, #tpu.memory_space<vmem>>, %arg5: memref<256x32xf32, #tpu.memory_space<vmem>>, %arg6: memref<1x32xf32, #tpu.memory_space<vmem>>, %arg7: memref<32x32xf32, #tpu.memory_space<vmem>>, %arg8: memref<1x32xf32, #tpu.memory_space<vmem>>, %arg9: memref<2x32x192xf32, #tpu.memory_space<vmem>>, %arg10: memref<2x1x192xf32, #tpu.memory_space<vmem>>, %arg11: memref<2x32x96xf32, #tpu.memory_space<vmem>>, %arg12: memref<2x1x96xf32, #tpu.memory_space<vmem>>, %arg13: memref<2x32x32xf32, #tpu.memory_space<vmem>>, %arg14: memref<2x1x32xf32, #tpu.memory_space<vmem>>, %arg15: memref<2x32x128xf32, #tpu.memory_space<vmem>>, %arg16: memref<2x1x128xf32, #tpu.memory_space<vmem>>, %arg17: memref<2x128x32xf32, #tpu.memory_space<vmem>>, %arg18: memref<2x1x32xf32, #tpu.memory_space<vmem>>, %arg19: memref<32x64xf32, #tpu.memory_space<vmem>>, %arg20: memref<1x64xf32, #tpu.memory_space<vmem>>, %arg21: memref<32x64xf32, #tpu.memory_space<vmem>>, %arg22: memref<1x64xf32, #tpu.memory_space<vmem>>, %arg23: memref<32x64xf32, #tpu.memory_space<vmem>>) attributes {dimension_semantics = [], scalar_prefetch = 0 : i64, scratch_operands = 0 : i64, tpu.core_type = #tpu.core_type<tc>} {
    %c0 = arith.constant 0 : index
    %c0_0 = arith.constant 0 : index
    %0 = vector.load %arg2[%c0, %c0_0] : memref<16x32xf32, #tpu.memory_space<vmem>>, vector<16x32xf32>
    %1 = vector.shape_cast %0 : vector<16x32xf32> to vector<1x16x32xf32>
    %2 = vector.broadcast %1 : vector<1x16x32xf32> to vector<2x16x32xf32>
    %3 = vector.shape_cast %2 : vector<2x16x32xf32> to vector<32x32xf32>
    %c0_1 = arith.constant 0 : index
    %c0_2 = arith.constant 0 : index
    %4 = vector.load %arg0[%c0_1, %c0_2] : memref<32x64xf32, #tpu.memory_space<vmem>>, vector<32x64xf32>
    %c0_3 = arith.constant 0 : index
    %c0_4 = arith.constant 0 : index
    %5 = vector.load %arg3[%c0_3, %c0_4] : memref<64x32xf32, #tpu.memory_space<vmem>>, vector<64x32xf32>
    %cst = arith.constant dense<0.000000e+00> : vector<32x32xf32>
    %6 = tpu.matmul %4, %5, %cst {dimension_numbers = #tpu.dot_dimension_numbers<[1], [0], [0], [1], [0, 0, 1, 1], [], []>} : vector<32x64xf32>, vector<64x32xf32>, vector<32x32xf32> -> vector<32x32xf32>
    %c0_5 = arith.constant 0 : index
    %c0_6 = arith.constant 0 : index
    %7 = vector.load %arg4[%c0_5, %c0_6] : memref<1x32xf32, #tpu.memory_space<vmem>>, vector<1x32xf32>
    %8 = vector.broadcast %7 : vector<1x32xf32> to vector<32x32xf32>
    %9 = arith.addf %6, %8 : vector<32x32xf32>
    %10 = arith.addf %9, %3 : vector<32x32xf32>
    %c0_7 = arith.constant 0 : index
    %c0_8 = arith.constant 0 : index
    %11 = vector.load %arg1[%c0_7, %c0_8] : memref<2x256xf32, #tpu.memory_space<vmem>>, vector<2x256xf32>
    %c0_9 = arith.constant 0 : index
    %c0_10 = arith.constant 0 : index
    %12 = vector.load %arg5[%c0_9, %c0_10] : memref<256x32xf32, #tpu.memory_space<vmem>>, vector<256x32xf32>
    %cst_11 = arith.constant dense<0.000000e+00> : vector<2x32xf32>
    %13 = tpu.matmul %11, %12, %cst_11 {dimension_numbers = #tpu.dot_dimension_numbers<[1], [0], [0], [1], [0, 0, 1, 1], [], []>} : vector<2x256xf32>, vector<256x32xf32>, vector<2x32xf32> -> vector<2x32xf32>
    %c0_12 = arith.constant 0 : index
    %c0_13 = arith.constant 0 : index
    %14 = vector.load %arg6[%c0_12, %c0_13] : memref<1x32xf32, #tpu.memory_space<vmem>>, vector<1x32xf32>
    %15 = vector.broadcast %14 : vector<1x32xf32> to vector<2x32xf32>
    %16 = arith.addf %13, %15 : vector<2x32xf32>
    %17 = arith.negf %16 : vector<2x32xf32>
    %18 = math.exp %17 : vector<2x32xf32>
    %cst_14 = arith.constant 1.000000e+00 : f32
    %19 = vector.broadcast %cst_14 : f32 to vector<2x32xf32>
    %20 = arith.addf %19, %18 : vector<2x32xf32>
    %21 = arith.divf %19, %20 : vector<2x32xf32>
    %22 = arith.mulf %16, %21 : vector<2x32xf32>
    %c0_15 = arith.constant 0 : index
    %c0_16 = arith.constant 0 : index
    %23 = vector.load %arg7[%c0_15, %c0_16] : memref<32x32xf32, #tpu.memory_space<vmem>>, vector<32x32xf32>
    %cst_17 = arith.constant dense<0.000000e+00> : vector<2x32xf32>
    %24 = tpu.matmul %22, %23, %cst_17 {dimension_numbers = #tpu.dot_dimension_numbers<[1], [0], [0], [1], [0, 0, 1, 1], [], []>} : vector<2x32xf32>, vector<32x32xf32>, vector<2x32xf32> -> vector<2x32xf32>
    %c0_18 = arith.constant 0 : index
    %c0_19 = arith.constant 0 : index
    %25 = vector.load %arg8[%c0_18, %c0_19] : memref<1x32xf32, #tpu.memory_space<vmem>>, vector<1x32xf32>
    %26 = vector.broadcast %25 : vector<1x32xf32> to vector<2x32xf32>
    %27 = arith.addf %24, %26 : vector<2x32xf32>
    %28 = arith.negf %27 : vector<2x32xf32>
    %29 = math.exp %28 : vector<2x32xf32>
    %cst_20 = arith.constant 1.000000e+00 : f32
    %30 = vector.broadcast %cst_20 : f32 to vector<2x32xf32>
    %31 = arith.addf %30, %29 : vector<2x32xf32>
    %32 = arith.divf %30, %31 : vector<2x32xf32>
    %33 = arith.mulf %27, %32 : vector<2x32xf32>
    %c0_21 = arith.constant 0 : index
    %c0_22 = arith.constant 0 : index
    %c0_23 = arith.constant 0 : index
    %34 = vector.load %arg9[%c0_21, %c0_22, %c0_23] : memref<2x32x192xf32, #tpu.memory_space<vmem>>, vector<1x32x32xf32>
    %35 = vector.shape_cast %34 : vector<1x32x32xf32> to vector<32x32xf32>
    %c0_24 = arith.constant 0 : index
    %c0_25 = arith.constant 0 : index
    %c0_26 = arith.constant 0 : index
    %36 = vector.load %arg10[%c0_24, %c0_25, %c0_26] : memref<2x1x192xf32, #tpu.memory_space<vmem>>, vector<1x1x32xf32>
    %37 = vector.shape_cast %36 : vector<1x1x32xf32> to vector<1x32xf32>
    %cst_27 = arith.constant dense<0.000000e+00> : vector<2x32xf32>
    %38 = tpu.matmul %33, %35, %cst_27 {dimension_numbers = #tpu.dot_dimension_numbers<[1], [0], [0], [1], [0, 0, 1, 1], [], []>} : vector<2x32xf32>, vector<32x32xf32>, vector<2x32xf32> -> vector<2x32xf32>
    %39 = vector.broadcast %37 : vector<1x32xf32> to vector<2x32xf32>
    %40 = arith.addf %38, %39 : vector<2x32xf32>
    %41 = vector.shape_cast %40 : vector<2x32xf32> to vector<2x1x32xf32>
    %42 = vector.shape_cast %41 : vector<2x1x32xf32> to vector<2x1x32xf32>
    %43 = vector.broadcast %42 : vector<2x1x32xf32> to vector<2x16x32xf32>
    %44 = vector.shape_cast %43 : vector<2x16x32xf32> to vector<32x32xf32>
    %c0_28 = arith.constant 0 : index
    %c0_29 = arith.constant 0 : index
    %c32 = arith.constant 32 : index
    %45 = vector.load %arg9[%c0_28, %c0_29, %c32] : memref<2x32x192xf32, #tpu.memory_space<vmem>>, vector<1x32x32xf32>
    %46 = vector.shape_cast %45 : vector<1x32x32xf32> to vector<32x32xf32>
    %c0_30 = arith.constant 0 : index
    %c0_31 = arith.constant 0 : index
    %c32_32 = arith.constant 32 : index
    %47 = vector.load %arg10[%c0_30, %c0_31, %c32_32] : memref<2x1x192xf32, #tpu.memory_space<vmem>>, vector<1x1x32xf32>
    %48 = vector.shape_cast %47 : vector<1x1x32xf32> to vector<1x32xf32>
    %cst_33 = arith.constant dense<0.000000e+00> : vector<2x32xf32>
    %49 = tpu.matmul %33, %46, %cst_33 {dimension_numbers = #tpu.dot_dimension_numbers<[1], [0], [0], [1], [0, 0, 1, 1], [], []>} : vector<2x32xf32>, vector<32x32xf32>, vector<2x32xf32> -> vector<2x32xf32>
    %50 = vector.broadcast %48 : vector<1x32xf32> to vector<2x32xf32>
    %51 = arith.addf %49, %50 : vector<2x32xf32>
    %52 = vector.shape_cast %51 : vector<2x32xf32> to vector<2x1x32xf32>
    %53 = vector.shape_cast %52 : vector<2x1x32xf32> to vector<2x1x32xf32>
    %54 = vector.broadcast %53 : vector<2x1x32xf32> to vector<2x16x32xf32>
    %55 = vector.shape_cast %54 : vector<2x16x32xf32> to vector<32x32xf32>
    %c0_34 = arith.constant 0 : index
    %c0_35 = arith.constant 0 : index
    %c64 = arith.constant 64 : index
    %56 = vector.load %arg9[%c0_34, %c0_35, %c64] : memref<2x32x192xf32, #tpu.memory_space<vmem>>, vector<1x32x32xf32>
    %57 = vector.shape_cast %56 : vector<1x32x32xf32> to vector<32x32xf32>
    %c0_36 = arith.constant 0 : index
    %c0_37 = arith.constant 0 : index
    %c64_38 = arith.constant 64 : index
    %58 = vector.load %arg10[%c0_36, %c0_37, %c64_38] : memref<2x1x192xf32, #tpu.memory_space<vmem>>, vector<1x1x32xf32>
    %59 = vector.shape_cast %58 : vector<1x1x32xf32> to vector<1x32xf32>
    %cst_39 = arith.constant dense<0.000000e+00> : vector<2x32xf32>
    %60 = tpu.matmul %33, %57, %cst_39 {dimension_numbers = #tpu.dot_dimension_numbers<[1], [0], [0], [1], [0, 0, 1, 1], [], []>} : vector<2x32xf32>, vector<32x32xf32>, vector<2x32xf32> -> vector<2x32xf32>
    %61 = vector.broadcast %59 : vector<1x32xf32> to vector<2x32xf32>
    %62 = arith.addf %60, %61 : vector<2x32xf32>
    %63 = vector.shape_cast %62 : vector<2x32xf32> to vector<2x1x32xf32>
    %64 = vector.shape_cast %63 : vector<2x1x32xf32> to vector<2x1x32xf32>
    %65 = vector.broadcast %64 : vector<2x1x32xf32> to vector<2x16x32xf32>
    %66 = vector.shape_cast %65 : vector<2x16x32xf32> to vector<32x32xf32>
    %c0_40 = arith.constant 0 : index
    %c0_41 = arith.constant 0 : index
    %c96 = arith.constant 96 : index
    %67 = vector.load %arg9[%c0_40, %c0_41, %c96] : memref<2x32x192xf32, #tpu.memory_space<vmem>>, vector<1x32x32xf32>
    %68 = vector.shape_cast %67 : vector<1x32x32xf32> to vector<32x32xf32>
    %c0_42 = arith.constant 0 : index
    %c0_43 = arith.constant 0 : index
    %c96_44 = arith.constant 96 : index
    %69 = vector.load %arg10[%c0_42, %c0_43, %c96_44] : memref<2x1x192xf32, #tpu.memory_space<vmem>>, vector<1x1x32xf32>
    %70 = vector.shape_cast %69 : vector<1x1x32xf32> to vector<1x32xf32>
    %cst_45 = arith.constant dense<0.000000e+00> : vector<2x32xf32>
    %71 = tpu.matmul %33, %68, %cst_45 {dimension_numbers = #tpu.dot_dimension_numbers<[1], [0], [0], [1], [0, 0, 1, 1], [], []>} : vector<2x32xf32>, vector<32x32xf32>, vector<2x32xf32> -> vector<2x32xf32>
    %72 = vector.broadcast %70 : vector<1x32xf32> to vector<2x32xf32>
    %73 = arith.addf %71, %72 : vector<2x32xf32>
    %74 = vector.shape_cast %73 : vector<2x32xf32> to vector<2x1x32xf32>
    %75 = vector.shape_cast %74 : vector<2x1x32xf32> to vector<2x1x32xf32>
    %76 = vector.broadcast %75 : vector<2x1x32xf32> to vector<2x16x32xf32>
    %77 = vector.shape_cast %76 : vector<2x16x32xf32> to vector<32x32xf32>
    %c0_46 = arith.constant 0 : index
    %c0_47 = arith.constant 0 : index
    %c128 = arith.constant 128 : index
    %78 = vector.load %arg9[%c0_46, %c0_47, %c128] : memref<2x32x192xf32, #tpu.memory_space<vmem>>, vector<1x32x32xf32>
    %79 = vector.shape_cast %78 : vector<1x32x32xf32> to vector<32x32xf32>
    %c0_48 = arith.constant 0 : index
    %c0_49 = arith.constant 0 : index
    %c128_50 = arith.constant 128 : index
    %80 = vector.load %arg10[%c0_48, %c0_49, %c128_50] : memref<2x1x192xf32, #tpu.memory_space<vmem>>, vector<1x1x32xf32>
    %81 = vector.shape_cast %80 : vector<1x1x32xf32> to vector<1x32xf32>
    %cst_51 = arith.constant dense<0.000000e+00> : vector<2x32xf32>
    %82 = tpu.matmul %33, %79, %cst_51 {dimension_numbers = #tpu.dot_dimension_numbers<[1], [0], [0], [1], [0, 0, 1, 1], [], []>} : vector<2x32xf32>, vector<32x32xf32>, vector<2x32xf32> -> vector<2x32xf32>
    %83 = vector.broadcast %81 : vector<1x32xf32> to vector<2x32xf32>
    %84 = arith.addf %82, %83 : vector<2x32xf32>
    %85 = vector.shape_cast %84 : vector<2x32xf32> to vector<2x1x32xf32>
    %86 = vector.shape_cast %85 : vector<2x1x32xf32> to vector<2x1x32xf32>
    %87 = vector.broadcast %86 : vector<2x1x32xf32> to vector<2x16x32xf32>
    %88 = vector.shape_cast %87 : vector<2x16x32xf32> to vector<32x32xf32>
    %c0_52 = arith.constant 0 : index
    %c0_53 = arith.constant 0 : index
    %c160 = arith.constant 160 : index
    %89 = vector.load %arg9[%c0_52, %c0_53, %c160] : memref<2x32x192xf32, #tpu.memory_space<vmem>>, vector<1x32x32xf32>
    %90 = vector.shape_cast %89 : vector<1x32x32xf32> to vector<32x32xf32>
    %c0_54 = arith.constant 0 : index
    %c0_55 = arith.constant 0 : index
    %c160_56 = arith.constant 160 : index
    %91 = vector.load %arg10[%c0_54, %c0_55, %c160_56] : memref<2x1x192xf32, #tpu.memory_space<vmem>>, vector<1x1x32xf32>
    %92 = vector.shape_cast %91 : vector<1x1x32xf32> to vector<1x32xf32>
    %cst_57 = arith.constant dense<0.000000e+00> : vector<2x32xf32>
    %93 = tpu.matmul %33, %90, %cst_57 {dimension_numbers = #tpu.dot_dimension_numbers<[1], [0], [0], [1], [0, 0, 1, 1], [], []>} : vector<2x32xf32>, vector<32x32xf32>, vector<2x32xf32> -> vector<2x32xf32>
    %94 = vector.broadcast %92 : vector<1x32xf32> to vector<2x32xf32>
    %95 = arith.addf %93, %94 : vector<2x32xf32>
    %96 = vector.shape_cast %95 : vector<2x32xf32> to vector<2x1x32xf32>
    %97 = vector.shape_cast %96 : vector<2x1x32xf32> to vector<2x1x32xf32>
    %98 = vector.broadcast %97 : vector<2x1x32xf32> to vector<2x16x32xf32>
    %99 = vector.shape_cast %98 : vector<2x16x32xf32> to vector<32x32xf32>
    %cst_58 = arith.constant dense<0.000000e+00> : vector<32xf32>
    %100 = vector.multi_reduction <add>, %10, %cst_58 [1] : vector<32x32xf32> to vector<32xf32>
    %101 = vector.shape_cast %100 : vector<32xf32> to vector<32x1xf32>
    %cst_59 = arith.constant 3.200000e+01 : f32
    %102 = vector.broadcast %cst_59 : f32 to vector<32x1xf32>
    %103 = arith.divf %101, %102 : vector<32x1xf32>
    %104 = vector.broadcast %103 : vector<32x1xf32> to vector<32x32xf32>
    %105 = arith.subf %10, %104 : vector<32x32xf32>
    %106 = arith.mulf %105, %105 : vector<32x32xf32>
    %cst_60 = arith.constant dense<0.000000e+00> : vector<32xf32>
    %107 = vector.multi_reduction <add>, %106, %cst_60 [1] : vector<32x32xf32> to vector<32xf32>
    %108 = vector.shape_cast %107 : vector<32xf32> to vector<32x1xf32>
    %cst_61 = arith.constant 3.200000e+01 : f32
    %109 = vector.broadcast %cst_61 : f32 to vector<32x1xf32>
    %110 = arith.divf %108, %109 : vector<32x1xf32>
    %111 = vector.broadcast %103 : vector<32x1xf32> to vector<32x32xf32>
    %112 = arith.subf %10, %111 : vector<32x32xf32>
    %cst_62 = arith.constant 9.99999997E-7 : f32
    %113 = vector.broadcast %cst_62 : f32 to vector<32x1xf32>
    %114 = arith.addf %110, %113 : vector<32x1xf32>
    %115 = math.rsqrt %114 : vector<32x1xf32>
    %116 = vector.broadcast %115 : vector<32x1xf32> to vector<32x32xf32>
    %117 = arith.mulf %112, %116 : vector<32x32xf32>
    %cst_63 = arith.constant 1.000000e+00 : f32
    %118 = vector.broadcast %cst_63 : f32 to vector<32x32xf32>
    %119 = arith.addf %118, %55 : vector<32x32xf32>
    %120 = arith.mulf %117, %119 : vector<32x32xf32>
    %121 = arith.addf %120, %44 : vector<32x32xf32>
    %cst_64 = arith.constant 0.000000e+00 : f32
    %122 = vector.broadcast %cst_64 : f32 to vector<32x32xf32>
    %c0_65 = arith.constant 0 : index
    %c0_66 = arith.constant 0 : index
    %c0_67 = arith.constant 0 : index
    %123 = vector.load %arg11[%c0_65, %c0_66, %c0_67] : memref<2x32x96xf32, #tpu.memory_space<vmem>>, vector<1x32x8xf32>
    %124 = vector.shape_cast %123 : vector<1x32x8xf32> to vector<32x8xf32>
    %cst_68 = arith.constant dense<0.000000e+00> : vector<32x8xf32>
    %125 = tpu.matmul %121, %124, %cst_68 {dimension_numbers = #tpu.dot_dimension_numbers<[1], [0], [0], [1], [0, 0, 1, 1], [], []>} : vector<32x32xf32>, vector<32x8xf32>, vector<32x8xf32> -> vector<32x8xf32>
    %c0_69 = arith.constant 0 : index
    %c0_70 = arith.constant 0 : index
    %c0_71 = arith.constant 0 : index
    %126 = vector.load %arg12[%c0_69, %c0_70, %c0_71] : memref<2x1x96xf32, #tpu.memory_space<vmem>>, vector<1x1x8xf32>
    %127 = vector.shape_cast %126 : vector<1x1x8xf32> to vector<1x8xf32>
    %128 = vector.broadcast %127 : vector<1x8xf32> to vector<32x8xf32>
    %129 = arith.addf %125, %128 : vector<32x8xf32>
    %c0_72 = arith.constant 0 : index
    %c0_73 = arith.constant 0 : index
    %c32_74 = arith.constant 32 : index
    %130 = vector.load %arg11[%c0_72, %c0_73, %c32_74] : memref<2x32x96xf32, #tpu.memory_space<vmem>>, vector<1x32x8xf32>
    %131 = vector.shape_cast %130 : vector<1x32x8xf32> to vector<32x8xf32>
    %cst_75 = arith.constant dense<0.000000e+00> : vector<32x8xf32>
    %132 = tpu.matmul %121, %131, %cst_75 {dimension_numbers = #tpu.dot_dimension_numbers<[1], [0], [0], [1], [0, 0, 1, 1], [], []>} : vector<32x32xf32>, vector<32x8xf32>, vector<32x8xf32> -> vector<32x8xf32>
    %c0_76 = arith.constant 0 : index
    %c0_77 = arith.constant 0 : index
    %c32_78 = arith.constant 32 : index
    %133 = vector.load %arg12[%c0_76, %c0_77, %c32_78] : memref<2x1x96xf32, #tpu.memory_space<vmem>>, vector<1x1x8xf32>
    %134 = vector.shape_cast %133 : vector<1x1x8xf32> to vector<1x8xf32>
    %135 = vector.broadcast %134 : vector<1x8xf32> to vector<32x8xf32>
    %136 = arith.addf %132, %135 : vector<32x8xf32>
    %c0_79 = arith.constant 0 : index
    %c0_80 = arith.constant 0 : index
    %c64_81 = arith.constant 64 : index
    %137 = vector.load %arg11[%c0_79, %c0_80, %c64_81] : memref<2x32x96xf32, #tpu.memory_space<vmem>>, vector<1x32x8xf32>
    %138 = vector.shape_cast %137 : vector<1x32x8xf32> to vector<32x8xf32>
    %cst_82 = arith.constant dense<0.000000e+00> : vector<32x8xf32>
    %139 = tpu.matmul %121, %138, %cst_82 {dimension_numbers = #tpu.dot_dimension_numbers<[1], [0], [0], [1], [0, 0, 1, 1], [], []>} : vector<32x32xf32>, vector<32x8xf32>, vector<32x8xf32> -> vector<32x8xf32>
    %c0_83 = arith.constant 0 : index
    %c0_84 = arith.constant 0 : index
    %c64_85 = arith.constant 64 : index
    %140 = vector.load %arg12[%c0_83, %c0_84, %c64_85] : memref<2x1x96xf32, #tpu.memory_space<vmem>>, vector<1x1x8xf32>
    %141 = vector.shape_cast %140 : vector<1x1x8xf32> to vector<1x8xf32>
    %142 = vector.broadcast %141 : vector<1x8xf32> to vector<32x8xf32>
    %143 = arith.addf %139, %142 : vector<32x8xf32>
    %144 = vector.shape_cast %129 : vector<32x8xf32> to vector<2x16x8xf32>
    %cst_86 = arith.constant 0.353553385 : f32
    %145 = vector.broadcast %cst_86 : f32 to vector<2x16x8xf32>
    %146 = arith.mulf %144, %145 : vector<2x16x8xf32>
    %147 = vector.shape_cast %136 : vector<32x8xf32> to vector<2x16x8xf32>
    %148 = vector.shape_cast %143 : vector<32x8xf32> to vector<2x16x8xf32>
    "tpu.trace_start"() <{level = 10 : i32, message = "bqd,bkd->bqk"}> : () -> ()
    %cst_87 = arith.constant dense<0.000000e+00> : vector<2x16x16xf32>
    %149 = tpu.matmul %146, %147, %cst_87 {dimension_numbers = #tpu.dot_dimension_numbers<[2], [2], [1], [1], [0, 0, 0, 1, 1, 1], [0], [0]>} : vector<2x16x8xf32>, vector<2x16x8xf32>, vector<2x16x16xf32> -> vector<2x16x16xf32>
    "tpu.trace_stop"() : () -> ()
    %cst_88 = arith.constant dense<0xFF800000> : vector<2x16xf32>
    %150 = vector.multi_reduction <maximumf>, %149, %cst_88 [2] : vector<2x16x16xf32> to vector<2x16xf32>
    %151 = vector.shape_cast %150 : vector<2x16xf32> to vector<2x16x1xf32>
    %152 = vector.broadcast %151 : vector<2x16x1xf32> to vector<2x16x16xf32>
    %153 = arith.subf %149, %152 : vector<2x16x16xf32>
    %154 = math.exp %153 : vector<2x16x16xf32>
    %cst_89 = arith.constant dense<0.000000e+00> : vector<2x16xf32>
    %155 = vector.multi_reduction <add>, %154, %cst_89 [2] : vector<2x16x16xf32> to vector<2x16xf32>
    %156 = vector.shape_cast %155 : vector<2x16xf32> to vector<2x16x1xf32>
    %157 = tpu.reciprocal %156 {approx = true} : vector<2x16x1xf32> -> vector<2x16x1xf32>
    %158 = vector.broadcast %157 : vector<2x16x1xf32> to vector<2x16x16xf32>
    %159 = arith.mulf %154, %158 : vector<2x16x16xf32>
    "tpu.trace_start"() <{level = 10 : i32, message = "bqk,bkd->bqd"}> : () -> ()
    %cst_90 = arith.constant dense<0.000000e+00> : vector<2x16x8xf32>
    %160 = tpu.matmul %159, %148, %cst_90 {dimension_numbers = #tpu.dot_dimension_numbers<[2], [1], [1], [2], [0, 0, 0, 1, 1, 2], [0], [0]>} : vector<2x16x16xf32>, vector<2x16x8xf32>, vector<2x16x8xf32> -> vector<2x16x8xf32>
    "tpu.trace_stop"() : () -> ()
    %161 = vector.shape_cast %160 : vector<2x16x8xf32> to vector<32x8xf32>
    %c0_91 = arith.constant 0 : index
    %c0_92 = arith.constant 0 : index
    %c0_93 = arith.constant 0 : index
    %162 = vector.load %arg13[%c0_91, %c0_92, %c0_93] : memref<2x32x32xf32, #tpu.memory_space<vmem>>, vector<1x8x32xf32>
    %163 = vector.shape_cast %162 : vector<1x8x32xf32> to vector<8x32xf32>
    %cst_94 = arith.constant dense<0.000000e+00> : vector<32x32xf32>
    %164 = tpu.matmul %161, %163, %cst_94 {dimension_numbers = #tpu.dot_dimension_numbers<[1], [0], [0], [1], [0, 0, 1, 1], [], []>} : vector<32x8xf32>, vector<8x32xf32>, vector<32x32xf32> -> vector<32x32xf32>
    %165 = arith.addf %122, %164 : vector<32x32xf32>
    %c0_95 = arith.constant 0 : index
    %c0_96 = arith.constant 0 : index
    %c8 = arith.constant 8 : index
    %166 = vector.load %arg11[%c0_95, %c0_96, %c8] : memref<2x32x96xf32, #tpu.memory_space<vmem>>, vector<1x32x8xf32>
    %167 = vector.shape_cast %166 : vector<1x32x8xf32> to vector<32x8xf32>
    %cst_97 = arith.constant dense<0.000000e+00> : vector<32x8xf32>
    %168 = tpu.matmul %121, %167, %cst_97 {dimension_numbers = #tpu.dot_dimension_numbers<[1], [0], [0], [1], [0, 0, 1, 1], [], []>} : vector<32x32xf32>, vector<32x8xf32>, vector<32x8xf32> -> vector<32x8xf32>
    %c0_98 = arith.constant 0 : index
    %c0_99 = arith.constant 0 : index
    %c8_100 = arith.constant 8 : index
    %169 = vector.load %arg12[%c0_98, %c0_99, %c8_100] : memref<2x1x96xf32, #tpu.memory_space<vmem>>, vector<1x1x8xf32>
    %170 = vector.shape_cast %169 : vector<1x1x8xf32> to vector<1x8xf32>
    %171 = vector.broadcast %170 : vector<1x8xf32> to vector<32x8xf32>
    %172 = arith.addf %168, %171 : vector<32x8xf32>
    %c0_101 = arith.constant 0 : index
    %c0_102 = arith.constant 0 : index
    %c40 = arith.constant 40 : index
    %173 = vector.load %arg11[%c0_101, %c0_102, %c40] : memref<2x32x96xf32, #tpu.memory_space<vmem>>, vector<1x32x8xf32>
    %174 = vector.shape_cast %173 : vector<1x32x8xf32> to vector<32x8xf32>
    %cst_103 = arith.constant dense<0.000000e+00> : vector<32x8xf32>
    %175 = tpu.matmul %121, %174, %cst_103 {dimension_numbers = #tpu.dot_dimension_numbers<[1], [0], [0], [1], [0, 0, 1, 1], [], []>} : vector<32x32xf32>, vector<32x8xf32>, vector<32x8xf32> -> vector<32x8xf32>
    %c0_104 = arith.constant 0 : index
    %c0_105 = arith.constant 0 : index
    %c40_106 = arith.constant 40 : index
    %176 = vector.load %arg12[%c0_104, %c0_105, %c40_106] : memref<2x1x96xf32, #tpu.memory_space<vmem>>, vector<1x1x8xf32>
    %177 = vector.shape_cast %176 : vector<1x1x8xf32> to vector<1x8xf32>
    %178 = vector.broadcast %177 : vector<1x8xf32> to vector<32x8xf32>
    %179 = arith.addf %175, %178 : vector<32x8xf32>
    %c0_107 = arith.constant 0 : index
    %c0_108 = arith.constant 0 : index
    %c72 = arith.constant 72 : index
    %180 = vector.load %arg11[%c0_107, %c0_108, %c72] : memref<2x32x96xf32, #tpu.memory_space<vmem>>, vector<1x32x8xf32>
    %181 = vector.shape_cast %180 : vector<1x32x8xf32> to vector<32x8xf32>
    %cst_109 = arith.constant dense<0.000000e+00> : vector<32x8xf32>
    %182 = tpu.matmul %121, %181, %cst_109 {dimension_numbers = #tpu.dot_dimension_numbers<[1], [0], [0], [1], [0, 0, 1, 1], [], []>} : vector<32x32xf32>, vector<32x8xf32>, vector<32x8xf32> -> vector<32x8xf32>
    %c0_110 = arith.constant 0 : index
    %c0_111 = arith.constant 0 : index
    %c72_112 = arith.constant 72 : index
    %183 = vector.load %arg12[%c0_110, %c0_111, %c72_112] : memref<2x1x96xf32, #tpu.memory_space<vmem>>, vector<1x1x8xf32>
    %184 = vector.shape_cast %183 : vector<1x1x8xf32> to vector<1x8xf32>
    %185 = vector.broadcast %184 : vector<1x8xf32> to vector<32x8xf32>
    %186 = arith.addf %182, %185 : vector<32x8xf32>
    %187 = vector.shape_cast %172 : vector<32x8xf32> to vector<2x16x8xf32>
    %cst_113 = arith.constant 0.353553385 : f32
    %188 = vector.broadcast %cst_113 : f32 to vector<2x16x8xf32>
    %189 = arith.mulf %187, %188 : vector<2x16x8xf32>
    %190 = vector.shape_cast %179 : vector<32x8xf32> to vector<2x16x8xf32>
    %191 = vector.shape_cast %186 : vector<32x8xf32> to vector<2x16x8xf32>
    "tpu.trace_start"() <{level = 10 : i32, message = "bqd,bkd->bqk"}> : () -> ()
    %cst_114 = arith.constant dense<0.000000e+00> : vector<2x16x16xf32>
    %192 = tpu.matmul %189, %190, %cst_114 {dimension_numbers = #tpu.dot_dimension_numbers<[2], [2], [1], [1], [0, 0, 0, 1, 1, 1], [0], [0]>} : vector<2x16x8xf32>, vector<2x16x8xf32>, vector<2x16x16xf32> -> vector<2x16x16xf32>
    "tpu.trace_stop"() : () -> ()
    %cst_115 = arith.constant dense<0xFF800000> : vector<2x16xf32>
    %193 = vector.multi_reduction <maximumf>, %192, %cst_115 [2] : vector<2x16x16xf32> to vector<2x16xf32>
    %194 = vector.shape_cast %193 : vector<2x16xf32> to vector<2x16x1xf32>
    %195 = vector.broadcast %194 : vector<2x16x1xf32> to vector<2x16x16xf32>
    %196 = arith.subf %192, %195 : vector<2x16x16xf32>
    %197 = math.exp %196 : vector<2x16x16xf32>
    %cst_116 = arith.constant dense<0.000000e+00> : vector<2x16xf32>
    %198 = vector.multi_reduction <add>, %197, %cst_116 [2] : vector<2x16x16xf32> to vector<2x16xf32>
    %199 = vector.shape_cast %198 : vector<2x16xf32> to vector<2x16x1xf32>
    %200 = tpu.reciprocal %199 {approx = true} : vector<2x16x1xf32> -> vector<2x16x1xf32>
    %201 = vector.broadcast %200 : vector<2x16x1xf32> to vector<2x16x16xf32>
    %202 = arith.mulf %197, %201 : vector<2x16x16xf32>
    "tpu.trace_start"() <{level = 10 : i32, message = "bqk,bkd->bqd"}> : () -> ()
    %cst_117 = arith.constant dense<0.000000e+00> : vector<2x16x8xf32>
    %203 = tpu.matmul %202, %191, %cst_117 {dimension_numbers = #tpu.dot_dimension_numbers<[2], [1], [1], [2], [0, 0, 0, 1, 1, 2], [0], [0]>} : vector<2x16x16xf32>, vector<2x16x8xf32>, vector<2x16x8xf32> -> vector<2x16x8xf32>
    "tpu.trace_stop"() : () -> ()
    %204 = vector.shape_cast %203 : vector<2x16x8xf32> to vector<32x8xf32>
    %c0_118 = arith.constant 0 : index
    %c8_119 = arith.constant 8 : index
    %c0_120 = arith.constant 0 : index
    %205 = vector.load %arg13[%c0_118, %c8_119, %c0_120] : memref<2x32x32xf32, #tpu.memory_space<vmem>>, vector<1x8x32xf32>
    %206 = vector.shape_cast %205 : vector<1x8x32xf32> to vector<8x32xf32>
    %cst_121 = arith.constant dense<0.000000e+00> : vector<32x32xf32>
    %207 = tpu.matmul %204, %206, %cst_121 {dimension_numbers = #tpu.dot_dimension_numbers<[1], [0], [0], [1], [0, 0, 1, 1], [], []>} : vector<32x8xf32>, vector<8x32xf32>, vector<32x32xf32> -> vector<32x32xf32>
    %208 = arith.addf %165, %207 : vector<32x32xf32>
    %c0_122 = arith.constant 0 : index
    %c0_123 = arith.constant 0 : index
    %c16 = arith.constant 16 : index
    %209 = vector.load %arg11[%c0_122, %c0_123, %c16] : memref<2x32x96xf32, #tpu.memory_space<vmem>>, vector<1x32x8xf32>
    %210 = vector.shape_cast %209 : vector<1x32x8xf32> to vector<32x8xf32>
    %cst_124 = arith.constant dense<0.000000e+00> : vector<32x8xf32>
    %211 = tpu.matmul %121, %210, %cst_124 {dimension_numbers = #tpu.dot_dimension_numbers<[1], [0], [0], [1], [0, 0, 1, 1], [], []>} : vector<32x32xf32>, vector<32x8xf32>, vector<32x8xf32> -> vector<32x8xf32>
    %c0_125 = arith.constant 0 : index
    %c0_126 = arith.constant 0 : index
    %c16_127 = arith.constant 16 : index
    %212 = vector.load %arg12[%c0_125, %c0_126, %c16_127] : memref<2x1x96xf32, #tpu.memory_space<vmem>>, vector<1x1x8xf32>
    %213 = vector.shape_cast %212 : vector<1x1x8xf32> to vector<1x8xf32>
    %214 = vector.broadcast %213 : vector<1x8xf32> to vector<32x8xf32>
    %215 = arith.addf %211, %214 : vector<32x8xf32>
    %c0_128 = arith.constant 0 : index
    %c0_129 = arith.constant 0 : index
    %c48 = arith.constant 48 : index
    %216 = vector.load %arg11[%c0_128, %c0_129, %c48] : memref<2x32x96xf32, #tpu.memory_space<vmem>>, vector<1x32x8xf32>
    %217 = vector.shape_cast %216 : vector<1x32x8xf32> to vector<32x8xf32>
    %cst_130 = arith.constant dense<0.000000e+00> : vector<32x8xf32>
    %218 = tpu.matmul %121, %217, %cst_130 {dimension_numbers = #tpu.dot_dimension_numbers<[1], [0], [0], [1], [0, 0, 1, 1], [], []>} : vector<32x32xf32>, vector<32x8xf32>, vector<32x8xf32> -> vector<32x8xf32>
    %c0_131 = arith.constant 0 : index
    %c0_132 = arith.constant 0 : index
    %c48_133 = arith.constant 48 : index
    %219 = vector.load %arg12[%c0_131, %c0_132, %c48_133] : memref<2x1x96xf32, #tpu.memory_space<vmem>>, vector<1x1x8xf32>
    %220 = vector.shape_cast %219 : vector<1x1x8xf32> to vector<1x8xf32>
    %221 = vector.broadcast %220 : vector<1x8xf32> to vector<32x8xf32>
    %222 = arith.addf %218, %221 : vector<32x8xf32>
    %c0_134 = arith.constant 0 : index
    %c0_135 = arith.constant 0 : index
    %c80 = arith.constant 80 : index
    %223 = vector.load %arg11[%c0_134, %c0_135, %c80] : memref<2x32x96xf32, #tpu.memory_space<vmem>>, vector<1x32x8xf32>
    %224 = vector.shape_cast %223 : vector<1x32x8xf32> to vector<32x8xf32>
    %cst_136 = arith.constant dense<0.000000e+00> : vector<32x8xf32>
    %225 = tpu.matmul %121, %224, %cst_136 {dimension_numbers = #tpu.dot_dimension_numbers<[1], [0], [0], [1], [0, 0, 1, 1], [], []>} : vector<32x32xf32>, vector<32x8xf32>, vector<32x8xf32> -> vector<32x8xf32>
    %c0_137 = arith.constant 0 : index
    %c0_138 = arith.constant 0 : index
    %c80_139 = arith.constant 80 : index
    %226 = vector.load %arg12[%c0_137, %c0_138, %c80_139] : memref<2x1x96xf32, #tpu.memory_space<vmem>>, vector<1x1x8xf32>
    %227 = vector.shape_cast %226 : vector<1x1x8xf32> to vector<1x8xf32>
    %228 = vector.broadcast %227 : vector<1x8xf32> to vector<32x8xf32>
    %229 = arith.addf %225, %228 : vector<32x8xf32>
    %230 = vector.shape_cast %215 : vector<32x8xf32> to vector<2x16x8xf32>
    %cst_140 = arith.constant 0.353553385 : f32
    %231 = vector.broadcast %cst_140 : f32 to vector<2x16x8xf32>
    %232 = arith.mulf %230, %231 : vector<2x16x8xf32>
    %233 = vector.shape_cast %222 : vector<32x8xf32> to vector<2x16x8xf32>
    %234 = vector.shape_cast %229 : vector<32x8xf32> to vector<2x16x8xf32>
    "tpu.trace_start"() <{level = 10 : i32, message = "bqd,bkd->bqk"}> : () -> ()
    %cst_141 = arith.constant dense<0.000000e+00> : vector<2x16x16xf32>
    %235 = tpu.matmul %232, %233, %cst_141 {dimension_numbers = #tpu.dot_dimension_numbers<[2], [2], [1], [1], [0, 0, 0, 1, 1, 1], [0], [0]>} : vector<2x16x8xf32>, vector<2x16x8xf32>, vector<2x16x16xf32> -> vector<2x16x16xf32>
    "tpu.trace_stop"() : () -> ()
    %cst_142 = arith.constant dense<0xFF800000> : vector<2x16xf32>
    %236 = vector.multi_reduction <maximumf>, %235, %cst_142 [2] : vector<2x16x16xf32> to vector<2x16xf32>
    %237 = vector.shape_cast %236 : vector<2x16xf32> to vector<2x16x1xf32>
    %238 = vector.broadcast %237 : vector<2x16x1xf32> to vector<2x16x16xf32>
    %239 = arith.subf %235, %238 : vector<2x16x16xf32>
    %240 = math.exp %239 : vector<2x16x16xf32>
    %cst_143 = arith.constant dense<0.000000e+00> : vector<2x16xf32>
    %241 = vector.multi_reduction <add>, %240, %cst_143 [2] : vector<2x16x16xf32> to vector<2x16xf32>
    %242 = vector.shape_cast %241 : vector<2x16xf32> to vector<2x16x1xf32>
    %243 = tpu.reciprocal %242 {approx = true} : vector<2x16x1xf32> -> vector<2x16x1xf32>
    %244 = vector.broadcast %243 : vector<2x16x1xf32> to vector<2x16x16xf32>
    %245 = arith.mulf %240, %244 : vector<2x16x16xf32>
    "tpu.trace_start"() <{level = 10 : i32, message = "bqk,bkd->bqd"}> : () -> ()
    %cst_144 = arith.constant dense<0.000000e+00> : vector<2x16x8xf32>
    %246 = tpu.matmul %245, %234, %cst_144 {dimension_numbers = #tpu.dot_dimension_numbers<[2], [1], [1], [2], [0, 0, 0, 1, 1, 2], [0], [0]>} : vector<2x16x16xf32>, vector<2x16x8xf32>, vector<2x16x8xf32> -> vector<2x16x8xf32>
    "tpu.trace_stop"() : () -> ()
    %247 = vector.shape_cast %246 : vector<2x16x8xf32> to vector<32x8xf32>
    %c0_145 = arith.constant 0 : index
    %c16_146 = arith.constant 16 : index
    %c0_147 = arith.constant 0 : index
    %248 = vector.load %arg13[%c0_145, %c16_146, %c0_147] : memref<2x32x32xf32, #tpu.memory_space<vmem>>, vector<1x8x32xf32>
    %249 = vector.shape_cast %248 : vector<1x8x32xf32> to vector<8x32xf32>
    %cst_148 = arith.constant dense<0.000000e+00> : vector<32x32xf32>
    %250 = tpu.matmul %247, %249, %cst_148 {dimension_numbers = #tpu.dot_dimension_numbers<[1], [0], [0], [1], [0, 0, 1, 1], [], []>} : vector<32x8xf32>, vector<8x32xf32>, vector<32x32xf32> -> vector<32x32xf32>
    %251 = arith.addf %208, %250 : vector<32x32xf32>
    %c0_149 = arith.constant 0 : index
    %c0_150 = arith.constant 0 : index
    %c24 = arith.constant 24 : index
    %252 = vector.load %arg11[%c0_149, %c0_150, %c24] : memref<2x32x96xf32, #tpu.memory_space<vmem>>, vector<1x32x8xf32>
    %253 = vector.shape_cast %252 : vector<1x32x8xf32> to vector<32x8xf32>
    %cst_151 = arith.constant dense<0.000000e+00> : vector<32x8xf32>
    %254 = tpu.matmul %121, %253, %cst_151 {dimension_numbers = #tpu.dot_dimension_numbers<[1], [0], [0], [1], [0, 0, 1, 1], [], []>} : vector<32x32xf32>, vector<32x8xf32>, vector<32x8xf32> -> vector<32x8xf32>
    %c0_152 = arith.constant 0 : index
    %c0_153 = arith.constant 0 : index
    %c24_154 = arith.constant 24 : index
    %255 = vector.load %arg12[%c0_152, %c0_153, %c24_154] : memref<2x1x96xf32, #tpu.memory_space<vmem>>, vector<1x1x8xf32>
    %256 = vector.shape_cast %255 : vector<1x1x8xf32> to vector<1x8xf32>
    %257 = vector.broadcast %256 : vector<1x8xf32> to vector<32x8xf32>
    %258 = arith.addf %254, %257 : vector<32x8xf32>
    %c0_155 = arith.constant 0 : index
    %c0_156 = arith.constant 0 : index
    %c56 = arith.constant 56 : index
    %259 = vector.load %arg11[%c0_155, %c0_156, %c56] : memref<2x32x96xf32, #tpu.memory_space<vmem>>, vector<1x32x8xf32>
    %260 = vector.shape_cast %259 : vector<1x32x8xf32> to vector<32x8xf32>
    %cst_157 = arith.constant dense<0.000000e+00> : vector<32x8xf32>
    %261 = tpu.matmul %121, %260, %cst_157 {dimension_numbers = #tpu.dot_dimension_numbers<[1], [0], [0], [1], [0, 0, 1, 1], [], []>} : vector<32x32xf32>, vector<32x8xf32>, vector<32x8xf32> -> vector<32x8xf32>
    %c0_158 = arith.constant 0 : index
    %c0_159 = arith.constant 0 : index
    %c56_160 = arith.constant 56 : index
    %262 = vector.load %arg12[%c0_158, %c0_159, %c56_160] : memref<2x1x96xf32, #tpu.memory_space<vmem>>, vector<1x1x8xf32>
    %263 = vector.shape_cast %262 : vector<1x1x8xf32> to vector<1x8xf32>
    %264 = vector.broadcast %263 : vector<1x8xf32> to vector<32x8xf32>
    %265 = arith.addf %261, %264 : vector<32x8xf32>
    %c0_161 = arith.constant 0 : index
    %c0_162 = arith.constant 0 : index
    %c88 = arith.constant 88 : index
    %266 = vector.load %arg11[%c0_161, %c0_162, %c88] : memref<2x32x96xf32, #tpu.memory_space<vmem>>, vector<1x32x8xf32>
    %267 = vector.shape_cast %266 : vector<1x32x8xf32> to vector<32x8xf32>
    %cst_163 = arith.constant dense<0.000000e+00> : vector<32x8xf32>
    %268 = tpu.matmul %121, %267, %cst_163 {dimension_numbers = #tpu.dot_dimension_numbers<[1], [0], [0], [1], [0, 0, 1, 1], [], []>} : vector<32x32xf32>, vector<32x8xf32>, vector<32x8xf32> -> vector<32x8xf32>
    %c0_164 = arith.constant 0 : index
    %c0_165 = arith.constant 0 : index
    %c88_166 = arith.constant 88 : index
    %269 = vector.load %arg12[%c0_164, %c0_165, %c88_166] : memref<2x1x96xf32, #tpu.memory_space<vmem>>, vector<1x1x8xf32>
    %270 = vector.shape_cast %269 : vector<1x1x8xf32> to vector<1x8xf32>
    %271 = vector.broadcast %270 : vector<1x8xf32> to vector<32x8xf32>
    %272 = arith.addf %268, %271 : vector<32x8xf32>
    %273 = vector.shape_cast %258 : vector<32x8xf32> to vector<2x16x8xf32>
    %cst_167 = arith.constant 0.353553385 : f32
    %274 = vector.broadcast %cst_167 : f32 to vector<2x16x8xf32>
    %275 = arith.mulf %273, %274 : vector<2x16x8xf32>
    %276 = vector.shape_cast %265 : vector<32x8xf32> to vector<2x16x8xf32>
    %277 = vector.shape_cast %272 : vector<32x8xf32> to vector<2x16x8xf32>
    "tpu.trace_start"() <{level = 10 : i32, message = "bqd,bkd->bqk"}> : () -> ()
    %cst_168 = arith.constant dense<0.000000e+00> : vector<2x16x16xf32>
    %278 = tpu.matmul %275, %276, %cst_168 {dimension_numbers = #tpu.dot_dimension_numbers<[2], [2], [1], [1], [0, 0, 0, 1, 1, 1], [0], [0]>} : vector<2x16x8xf32>, vector<2x16x8xf32>, vector<2x16x16xf32> -> vector<2x16x16xf32>
    "tpu.trace_stop"() : () -> ()
    %cst_169 = arith.constant dense<0xFF800000> : vector<2x16xf32>
    %279 = vector.multi_reduction <maximumf>, %278, %cst_169 [2] : vector<2x16x16xf32> to vector<2x16xf32>
    %280 = vector.shape_cast %279 : vector<2x16xf32> to vector<2x16x1xf32>
    %281 = vector.broadcast %280 : vector<2x16x1xf32> to vector<2x16x16xf32>
    %282 = arith.subf %278, %281 : vector<2x16x16xf32>
    %283 = math.exp %282 : vector<2x16x16xf32>
    %cst_170 = arith.constant dense<0.000000e+00> : vector<2x16xf32>
    %284 = vector.multi_reduction <add>, %283, %cst_170 [2] : vector<2x16x16xf32> to vector<2x16xf32>
    %285 = vector.shape_cast %284 : vector<2x16xf32> to vector<2x16x1xf32>
    %286 = tpu.reciprocal %285 {approx = true} : vector<2x16x1xf32> -> vector<2x16x1xf32>
    %287 = vector.broadcast %286 : vector<2x16x1xf32> to vector<2x16x16xf32>
    %288 = arith.mulf %283, %287 : vector<2x16x16xf32>
    "tpu.trace_start"() <{level = 10 : i32, message = "bqk,bkd->bqd"}> : () -> ()
    %cst_171 = arith.constant dense<0.000000e+00> : vector<2x16x8xf32>
    %289 = tpu.matmul %288, %277, %cst_171 {dimension_numbers = #tpu.dot_dimension_numbers<[2], [1], [1], [2], [0, 0, 0, 1, 1, 2], [0], [0]>} : vector<2x16x16xf32>, vector<2x16x8xf32>, vector<2x16x8xf32> -> vector<2x16x8xf32>
    "tpu.trace_stop"() : () -> ()
    %290 = vector.shape_cast %289 : vector<2x16x8xf32> to vector<32x8xf32>
    %c0_172 = arith.constant 0 : index
    %c24_173 = arith.constant 24 : index
    %c0_174 = arith.constant 0 : index
    %291 = vector.load %arg13[%c0_172, %c24_173, %c0_174] : memref<2x32x32xf32, #tpu.memory_space<vmem>>, vector<1x8x32xf32>
    %292 = vector.shape_cast %291 : vector<1x8x32xf32> to vector<8x32xf32>
    %cst_175 = arith.constant dense<0.000000e+00> : vector<32x32xf32>
    %293 = tpu.matmul %290, %292, %cst_175 {dimension_numbers = #tpu.dot_dimension_numbers<[1], [0], [0], [1], [0, 0, 1, 1], [], []>} : vector<32x8xf32>, vector<8x32xf32>, vector<32x32xf32> -> vector<32x32xf32>
    %294 = arith.addf %251, %293 : vector<32x32xf32>
    %c0_176 = arith.constant 0 : index
    %c0_177 = arith.constant 0 : index
    %c0_178 = arith.constant 0 : index
    %295 = vector.load %arg14[%c0_176, %c0_177, %c0_178] : memref<2x1x32xf32, #tpu.memory_space<vmem>>, vector<1x1x32xf32>
    %296 = vector.shape_cast %295 : vector<1x1x32xf32> to vector<1x32xf32>
    %297 = vector.broadcast %296 : vector<1x32xf32> to vector<32x32xf32>
    %298 = arith.addf %294, %297 : vector<32x32xf32>
    %299 = arith.mulf %66, %298 : vector<32x32xf32>
    %300 = arith.addf %10, %299 : vector<32x32xf32>
    %cst_179 = arith.constant dense<0.000000e+00> : vector<32xf32>
    %301 = vector.multi_reduction <add>, %300, %cst_179 [1] : vector<32x32xf32> to vector<32xf32>
    %302 = vector.shape_cast %301 : vector<32xf32> to vector<32x1xf32>
    %cst_180 = arith.constant 3.200000e+01 : f32
    %303 = vector.broadcast %cst_180 : f32 to vector<32x1xf32>
    %304 = arith.divf %302, %303 : vector<32x1xf32>
    %305 = vector.broadcast %304 : vector<32x1xf32> to vector<32x32xf32>
    %306 = arith.subf %300, %305 : vector<32x32xf32>
    %307 = arith.mulf %306, %306 : vector<32x32xf32>
    %cst_181 = arith.constant dense<0.000000e+00> : vector<32xf32>
    %308 = vector.multi_reduction <add>, %307, %cst_181 [1] : vector<32x32xf32> to vector<32xf32>
    %309 = vector.shape_cast %308 : vector<32xf32> to vector<32x1xf32>
    %cst_182 = arith.constant 3.200000e+01 : f32
    %310 = vector.broadcast %cst_182 : f32 to vector<32x1xf32>
    %311 = arith.divf %309, %310 : vector<32x1xf32>
    %312 = vector.broadcast %304 : vector<32x1xf32> to vector<32x32xf32>
    %313 = arith.subf %300, %312 : vector<32x32xf32>
    %cst_183 = arith.constant 9.99999997E-7 : f32
    %314 = vector.broadcast %cst_183 : f32 to vector<32x1xf32>
    %315 = arith.addf %311, %314 : vector<32x1xf32>
    %316 = math.rsqrt %315 : vector<32x1xf32>
    %317 = vector.broadcast %316 : vector<32x1xf32> to vector<32x32xf32>
    %318 = arith.mulf %313, %317 : vector<32x32xf32>
    %cst_184 = arith.constant 1.000000e+00 : f32
    %319 = vector.broadcast %cst_184 : f32 to vector<32x32xf32>
    %320 = arith.addf %319, %88 : vector<32x32xf32>
    %321 = arith.mulf %318, %320 : vector<32x32xf32>
    %322 = arith.addf %321, %77 : vector<32x32xf32>
    %c0_185 = arith.constant 0 : index
    %c0_186 = arith.constant 0 : index
    %c0_187 = arith.constant 0 : index
    %323 = vector.load %arg15[%c0_185, %c0_186, %c0_187] : memref<2x32x128xf32, #tpu.memory_space<vmem>>, vector<1x32x128xf32>
    %324 = vector.shape_cast %323 : vector<1x32x128xf32> to vector<32x128xf32>
    %cst_188 = arith.constant dense<0.000000e+00> : vector<32x128xf32>
    %325 = tpu.matmul %322, %324, %cst_188 {dimension_numbers = #tpu.dot_dimension_numbers<[1], [0], [0], [1], [0, 0, 1, 1], [], []>} : vector<32x32xf32>, vector<32x128xf32>, vector<32x128xf32> -> vector<32x128xf32>
    %c0_189 = arith.constant 0 : index
    %c0_190 = arith.constant 0 : index
    %c0_191 = arith.constant 0 : index
    %326 = vector.load %arg16[%c0_189, %c0_190, %c0_191] : memref<2x1x128xf32, #tpu.memory_space<vmem>>, vector<1x1x128xf32>
    %327 = vector.shape_cast %326 : vector<1x1x128xf32> to vector<1x128xf32>
    %328 = vector.broadcast %327 : vector<1x128xf32> to vector<32x128xf32>
    %329 = arith.addf %325, %328 : vector<32x128xf32>
    %330 = arith.mulf %329, %329 : vector<32x128xf32>
    %331 = arith.mulf %329, %330 : vector<32x128xf32>
    %cst_192 = arith.constant 4.471500e-02 : f32
    %332 = vector.broadcast %cst_192 : f32 to vector<32x128xf32>
    %333 = arith.mulf %332, %331 : vector<32x128xf32>
    %334 = arith.addf %329, %333 : vector<32x128xf32>
    %cst_193 = arith.constant 0.797884583 : f32
    %335 = vector.broadcast %cst_193 : f32 to vector<32x128xf32>
    %336 = arith.mulf %335, %334 : vector<32x128xf32>
    %337 = math.tanh %336 : vector<32x128xf32>
    %cst_194 = arith.constant 1.000000e+00 : f32
    %338 = vector.broadcast %cst_194 : f32 to vector<32x128xf32>
    %339 = arith.addf %338, %337 : vector<32x128xf32>
    %cst_195 = arith.constant 5.000000e-01 : f32
    %340 = vector.broadcast %cst_195 : f32 to vector<32x128xf32>
    %341 = arith.mulf %340, %339 : vector<32x128xf32>
    %342 = arith.mulf %329, %341 : vector<32x128xf32>
    %c0_196 = arith.constant 0 : index
    %c0_197 = arith.constant 0 : index
    %c0_198 = arith.constant 0 : index
    %343 = vector.load %arg17[%c0_196, %c0_197, %c0_198] : memref<2x128x32xf32, #tpu.memory_space<vmem>>, vector<1x128x32xf32>
    %344 = vector.shape_cast %343 : vector<1x128x32xf32> to vector<128x32xf32>
    %cst_199 = arith.constant dense<0.000000e+00> : vector<32x32xf32>
    %345 = tpu.matmul %342, %344, %cst_199 {dimension_numbers = #tpu.dot_dimension_numbers<[1], [0], [0], [1], [0, 0, 1, 1], [], []>} : vector<32x128xf32>, vector<128x32xf32>, vector<32x32xf32> -> vector<32x32xf32>
    %c0_200 = arith.constant 0 : index
    %c0_201 = arith.constant 0 : index
    %c0_202 = arith.constant 0 : index
    %346 = vector.load %arg18[%c0_200, %c0_201, %c0_202] : memref<2x1x32xf32, #tpu.memory_space<vmem>>, vector<1x1x32xf32>
    %347 = vector.shape_cast %346 : vector<1x1x32xf32> to vector<1x32xf32>
    %348 = vector.broadcast %347 : vector<1x32xf32> to vector<32x32xf32>
    %349 = arith.addf %345, %348 : vector<32x32xf32>
    %350 = arith.mulf %99, %349 : vector<32x32xf32>
    %351 = arith.addf %300, %350 : vector<32x32xf32>
    %c1 = arith.constant 1 : index
    %c0_203 = arith.constant 0 : index
    %c0_204 = arith.constant 0 : index
    %352 = vector.load %arg9[%c1, %c0_203, %c0_204] : memref<2x32x192xf32, #tpu.memory_space<vmem>>, vector<1x32x32xf32>
    %353 = vector.shape_cast %352 : vector<1x32x32xf32> to vector<32x32xf32>
    %c1_205 = arith.constant 1 : index
    %c0_206 = arith.constant 0 : index
    %c0_207 = arith.constant 0 : index
    %354 = vector.load %arg10[%c1_205, %c0_206, %c0_207] : memref<2x1x192xf32, #tpu.memory_space<vmem>>, vector<1x1x32xf32>
    %355 = vector.shape_cast %354 : vector<1x1x32xf32> to vector<1x32xf32>
    %cst_208 = arith.constant dense<0.000000e+00> : vector<2x32xf32>
    %356 = tpu.matmul %33, %353, %cst_208 {dimension_numbers = #tpu.dot_dimension_numbers<[1], [0], [0], [1], [0, 0, 1, 1], [], []>} : vector<2x32xf32>, vector<32x32xf32>, vector<2x32xf32> -> vector<2x32xf32>
    %357 = vector.broadcast %355 : vector<1x32xf32> to vector<2x32xf32>
    %358 = arith.addf %356, %357 : vector<2x32xf32>
    %359 = vector.shape_cast %358 : vector<2x32xf32> to vector<2x1x32xf32>
    %360 = vector.shape_cast %359 : vector<2x1x32xf32> to vector<2x1x32xf32>
    %361 = vector.broadcast %360 : vector<2x1x32xf32> to vector<2x16x32xf32>
    %362 = vector.shape_cast %361 : vector<2x16x32xf32> to vector<32x32xf32>
    %c1_209 = arith.constant 1 : index
    %c0_210 = arith.constant 0 : index
    %c32_211 = arith.constant 32 : index
    %363 = vector.load %arg9[%c1_209, %c0_210, %c32_211] : memref<2x32x192xf32, #tpu.memory_space<vmem>>, vector<1x32x32xf32>
    %364 = vector.shape_cast %363 : vector<1x32x32xf32> to vector<32x32xf32>
    %c1_212 = arith.constant 1 : index
    %c0_213 = arith.constant 0 : index
    %c32_214 = arith.constant 32 : index
    %365 = vector.load %arg10[%c1_212, %c0_213, %c32_214] : memref<2x1x192xf32, #tpu.memory_space<vmem>>, vector<1x1x32xf32>
    %366 = vector.shape_cast %365 : vector<1x1x32xf32> to vector<1x32xf32>
    %cst_215 = arith.constant dense<0.000000e+00> : vector<2x32xf32>
    %367 = tpu.matmul %33, %364, %cst_215 {dimension_numbers = #tpu.dot_dimension_numbers<[1], [0], [0], [1], [0, 0, 1, 1], [], []>} : vector<2x32xf32>, vector<32x32xf32>, vector<2x32xf32> -> vector<2x32xf32>
    %368 = vector.broadcast %366 : vector<1x32xf32> to vector<2x32xf32>
    %369 = arith.addf %367, %368 : vector<2x32xf32>
    %370 = vector.shape_cast %369 : vector<2x32xf32> to vector<2x1x32xf32>
    %371 = vector.shape_cast %370 : vector<2x1x32xf32> to vector<2x1x32xf32>
    %372 = vector.broadcast %371 : vector<2x1x32xf32> to vector<2x16x32xf32>
    %373 = vector.shape_cast %372 : vector<2x16x32xf32> to vector<32x32xf32>
    %c1_216 = arith.constant 1 : index
    %c0_217 = arith.constant 0 : index
    %c64_218 = arith.constant 64 : index
    %374 = vector.load %arg9[%c1_216, %c0_217, %c64_218] : memref<2x32x192xf32, #tpu.memory_space<vmem>>, vector<1x32x32xf32>
    %375 = vector.shape_cast %374 : vector<1x32x32xf32> to vector<32x32xf32>
    %c1_219 = arith.constant 1 : index
    %c0_220 = arith.constant 0 : index
    %c64_221 = arith.constant 64 : index
    %376 = vector.load %arg10[%c1_219, %c0_220, %c64_221] : memref<2x1x192xf32, #tpu.memory_space<vmem>>, vector<1x1x32xf32>
    %377 = vector.shape_cast %376 : vector<1x1x32xf32> to vector<1x32xf32>
    %cst_222 = arith.constant dense<0.000000e+00> : vector<2x32xf32>
    %378 = tpu.matmul %33, %375, %cst_222 {dimension_numbers = #tpu.dot_dimension_numbers<[1], [0], [0], [1], [0, 0, 1, 1], [], []>} : vector<2x32xf32>, vector<32x32xf32>, vector<2x32xf32> -> vector<2x32xf32>
    %379 = vector.broadcast %377 : vector<1x32xf32> to vector<2x32xf32>
    %380 = arith.addf %378, %379 : vector<2x32xf32>
    %381 = vector.shape_cast %380 : vector<2x32xf32> to vector<2x1x32xf32>
    %382 = vector.shape_cast %381 : vector<2x1x32xf32> to vector<2x1x32xf32>
    %383 = vector.broadcast %382 : vector<2x1x32xf32> to vector<2x16x32xf32>
    %384 = vector.shape_cast %383 : vector<2x16x32xf32> to vector<32x32xf32>
    %c1_223 = arith.constant 1 : index
    %c0_224 = arith.constant 0 : index
    %c96_225 = arith.constant 96 : index
    %385 = vector.load %arg9[%c1_223, %c0_224, %c96_225] : memref<2x32x192xf32, #tpu.memory_space<vmem>>, vector<1x32x32xf32>
    %386 = vector.shape_cast %385 : vector<1x32x32xf32> to vector<32x32xf32>
    %c1_226 = arith.constant 1 : index
    %c0_227 = arith.constant 0 : index
    %c96_228 = arith.constant 96 : index
    %387 = vector.load %arg10[%c1_226, %c0_227, %c96_228] : memref<2x1x192xf32, #tpu.memory_space<vmem>>, vector<1x1x32xf32>
    %388 = vector.shape_cast %387 : vector<1x1x32xf32> to vector<1x32xf32>
    %cst_229 = arith.constant dense<0.000000e+00> : vector<2x32xf32>
    %389 = tpu.matmul %33, %386, %cst_229 {dimension_numbers = #tpu.dot_dimension_numbers<[1], [0], [0], [1], [0, 0, 1, 1], [], []>} : vector<2x32xf32>, vector<32x32xf32>, vector<2x32xf32> -> vector<2x32xf32>
    %390 = vector.broadcast %388 : vector<1x32xf32> to vector<2x32xf32>
    %391 = arith.addf %389, %390 : vector<2x32xf32>
    %392 = vector.shape_cast %391 : vector<2x32xf32> to vector<2x1x32xf32>
    %393 = vector.shape_cast %392 : vector<2x1x32xf32> to vector<2x1x32xf32>
    %394 = vector.broadcast %393 : vector<2x1x32xf32> to vector<2x16x32xf32>
    %395 = vector.shape_cast %394 : vector<2x16x32xf32> to vector<32x32xf32>
    %c1_230 = arith.constant 1 : index
    %c0_231 = arith.constant 0 : index
    %c128_232 = arith.constant 128 : index
    %396 = vector.load %arg9[%c1_230, %c0_231, %c128_232] : memref<2x32x192xf32, #tpu.memory_space<vmem>>, vector<1x32x32xf32>
    %397 = vector.shape_cast %396 : vector<1x32x32xf32> to vector<32x32xf32>
    %c1_233 = arith.constant 1 : index
    %c0_234 = arith.constant 0 : index
    %c128_235 = arith.constant 128 : index
    %398 = vector.load %arg10[%c1_233, %c0_234, %c128_235] : memref<2x1x192xf32, #tpu.memory_space<vmem>>, vector<1x1x32xf32>
    %399 = vector.shape_cast %398 : vector<1x1x32xf32> to vector<1x32xf32>
    %cst_236 = arith.constant dense<0.000000e+00> : vector<2x32xf32>
    %400 = tpu.matmul %33, %397, %cst_236 {dimension_numbers = #tpu.dot_dimension_numbers<[1], [0], [0], [1], [0, 0, 1, 1], [], []>} : vector<2x32xf32>, vector<32x32xf32>, vector<2x32xf32> -> vector<2x32xf32>
    %401 = vector.broadcast %399 : vector<1x32xf32> to vector<2x32xf32>
    %402 = arith.addf %400, %401 : vector<2x32xf32>
    %403 = vector.shape_cast %402 : vector<2x32xf32> to vector<2x1x32xf32>
    %404 = vector.shape_cast %403 : vector<2x1x32xf32> to vector<2x1x32xf32>
    %405 = vector.broadcast %404 : vector<2x1x32xf32> to vector<2x16x32xf32>
    %406 = vector.shape_cast %405 : vector<2x16x32xf32> to vector<32x32xf32>
    %c1_237 = arith.constant 1 : index
    %c0_238 = arith.constant 0 : index
    %c160_239 = arith.constant 160 : index
    %407 = vector.load %arg9[%c1_237, %c0_238, %c160_239] : memref<2x32x192xf32, #tpu.memory_space<vmem>>, vector<1x32x32xf32>
    %408 = vector.shape_cast %407 : vector<1x32x32xf32> to vector<32x32xf32>
    %c1_240 = arith.constant 1 : index
    %c0_241 = arith.constant 0 : index
    %c160_242 = arith.constant 160 : index
    %409 = vector.load %arg10[%c1_240, %c0_241, %c160_242] : memref<2x1x192xf32, #tpu.memory_space<vmem>>, vector<1x1x32xf32>
    %410 = vector.shape_cast %409 : vector<1x1x32xf32> to vector<1x32xf32>
    %cst_243 = arith.constant dense<0.000000e+00> : vector<2x32xf32>
    %411 = tpu.matmul %33, %408, %cst_243 {dimension_numbers = #tpu.dot_dimension_numbers<[1], [0], [0], [1], [0, 0, 1, 1], [], []>} : vector<2x32xf32>, vector<32x32xf32>, vector<2x32xf32> -> vector<2x32xf32>
    %412 = vector.broadcast %410 : vector<1x32xf32> to vector<2x32xf32>
    %413 = arith.addf %411, %412 : vector<2x32xf32>
    %414 = vector.shape_cast %413 : vector<2x32xf32> to vector<2x1x32xf32>
    %415 = vector.shape_cast %414 : vector<2x1x32xf32> to vector<2x1x32xf32>
    %416 = vector.broadcast %415 : vector<2x1x32xf32> to vector<2x16x32xf32>
    %417 = vector.shape_cast %416 : vector<2x16x32xf32> to vector<32x32xf32>
    %cst_244 = arith.constant dense<0.000000e+00> : vector<32xf32>
    %418 = vector.multi_reduction <add>, %351, %cst_244 [1] : vector<32x32xf32> to vector<32xf32>
    %419 = vector.shape_cast %418 : vector<32xf32> to vector<32x1xf32>
    %cst_245 = arith.constant 3.200000e+01 : f32
    %420 = vector.broadcast %cst_245 : f32 to vector<32x1xf32>
    %421 = arith.divf %419, %420 : vector<32x1xf32>
    %422 = vector.broadcast %421 : vector<32x1xf32> to vector<32x32xf32>
    %423 = arith.subf %351, %422 : vector<32x32xf32>
    %424 = arith.mulf %423, %423 : vector<32x32xf32>
    %cst_246 = arith.constant dense<0.000000e+00> : vector<32xf32>
    %425 = vector.multi_reduction <add>, %424, %cst_246 [1] : vector<32x32xf32> to vector<32xf32>
    %426 = vector.shape_cast %425 : vector<32xf32> to vector<32x1xf32>
    %cst_247 = arith.constant 3.200000e+01 : f32
    %427 = vector.broadcast %cst_247 : f32 to vector<32x1xf32>
    %428 = arith.divf %426, %427 : vector<32x1xf32>
    %429 = vector.broadcast %421 : vector<32x1xf32> to vector<32x32xf32>
    %430 = arith.subf %351, %429 : vector<32x32xf32>
    %cst_248 = arith.constant 9.99999997E-7 : f32
    %431 = vector.broadcast %cst_248 : f32 to vector<32x1xf32>
    %432 = arith.addf %428, %431 : vector<32x1xf32>
    %433 = math.rsqrt %432 : vector<32x1xf32>
    %434 = vector.broadcast %433 : vector<32x1xf32> to vector<32x32xf32>
    %435 = arith.mulf %430, %434 : vector<32x32xf32>
    %cst_249 = arith.constant 1.000000e+00 : f32
    %436 = vector.broadcast %cst_249 : f32 to vector<32x32xf32>
    %437 = arith.addf %436, %373 : vector<32x32xf32>
    %438 = arith.mulf %435, %437 : vector<32x32xf32>
    %439 = arith.addf %438, %362 : vector<32x32xf32>
    %cst_250 = arith.constant 0.000000e+00 : f32
    %440 = vector.broadcast %cst_250 : f32 to vector<32x32xf32>
    %c1_251 = arith.constant 1 : index
    %c0_252 = arith.constant 0 : index
    %c0_253 = arith.constant 0 : index
    %441 = vector.load %arg11[%c1_251, %c0_252, %c0_253] : memref<2x32x96xf32, #tpu.memory_space<vmem>>, vector<1x32x8xf32>
    %442 = vector.shape_cast %441 : vector<1x32x8xf32> to vector<32x8xf32>
    %cst_254 = arith.constant dense<0.000000e+00> : vector<32x8xf32>
    %443 = tpu.matmul %439, %442, %cst_254 {dimension_numbers = #tpu.dot_dimension_numbers<[1], [0], [0], [1], [0, 0, 1, 1], [], []>} : vector<32x32xf32>, vector<32x8xf32>, vector<32x8xf32> -> vector<32x8xf32>
    %c1_255 = arith.constant 1 : index
    %c0_256 = arith.constant 0 : index
    %c0_257 = arith.constant 0 : index
    %444 = vector.load %arg12[%c1_255, %c0_256, %c0_257] : memref<2x1x96xf32, #tpu.memory_space<vmem>>, vector<1x1x8xf32>
    %445 = vector.shape_cast %444 : vector<1x1x8xf32> to vector<1x8xf32>
    %446 = vector.broadcast %445 : vector<1x8xf32> to vector<32x8xf32>
    %447 = arith.addf %443, %446 : vector<32x8xf32>
    %c1_258 = arith.constant 1 : index
    %c0_259 = arith.constant 0 : index
    %c32_260 = arith.constant 32 : index
    %448 = vector.load %arg11[%c1_258, %c0_259, %c32_260] : memref<2x32x96xf32, #tpu.memory_space<vmem>>, vector<1x32x8xf32>
    %449 = vector.shape_cast %448 : vector<1x32x8xf32> to vector<32x8xf32>
    %cst_261 = arith.constant dense<0.000000e+00> : vector<32x8xf32>
    %450 = tpu.matmul %439, %449, %cst_261 {dimension_numbers = #tpu.dot_dimension_numbers<[1], [0], [0], [1], [0, 0, 1, 1], [], []>} : vector<32x32xf32>, vector<32x8xf32>, vector<32x8xf32> -> vector<32x8xf32>
    %c1_262 = arith.constant 1 : index
    %c0_263 = arith.constant 0 : index
    %c32_264 = arith.constant 32 : index
    %451 = vector.load %arg12[%c1_262, %c0_263, %c32_264] : memref<2x1x96xf32, #tpu.memory_space<vmem>>, vector<1x1x8xf32>
    %452 = vector.shape_cast %451 : vector<1x1x8xf32> to vector<1x8xf32>
    %453 = vector.broadcast %452 : vector<1x8xf32> to vector<32x8xf32>
    %454 = arith.addf %450, %453 : vector<32x8xf32>
    %c1_265 = arith.constant 1 : index
    %c0_266 = arith.constant 0 : index
    %c64_267 = arith.constant 64 : index
    %455 = vector.load %arg11[%c1_265, %c0_266, %c64_267] : memref<2x32x96xf32, #tpu.memory_space<vmem>>, vector<1x32x8xf32>
    %456 = vector.shape_cast %455 : vector<1x32x8xf32> to vector<32x8xf32>
    %cst_268 = arith.constant dense<0.000000e+00> : vector<32x8xf32>
    %457 = tpu.matmul %439, %456, %cst_268 {dimension_numbers = #tpu.dot_dimension_numbers<[1], [0], [0], [1], [0, 0, 1, 1], [], []>} : vector<32x32xf32>, vector<32x8xf32>, vector<32x8xf32> -> vector<32x8xf32>
    %c1_269 = arith.constant 1 : index
    %c0_270 = arith.constant 0 : index
    %c64_271 = arith.constant 64 : index
    %458 = vector.load %arg12[%c1_269, %c0_270, %c64_271] : memref<2x1x96xf32, #tpu.memory_space<vmem>>, vector<1x1x8xf32>
    %459 = vector.shape_cast %458 : vector<1x1x8xf32> to vector<1x8xf32>
    %460 = vector.broadcast %459 : vector<1x8xf32> to vector<32x8xf32>
    %461 = arith.addf %457, %460 : vector<32x8xf32>
    %462 = vector.shape_cast %447 : vector<32x8xf32> to vector<2x16x8xf32>
    %cst_272 = arith.constant 0.353553385 : f32
    %463 = vector.broadcast %cst_272 : f32 to vector<2x16x8xf32>
    %464 = arith.mulf %462, %463 : vector<2x16x8xf32>
    %465 = vector.shape_cast %454 : vector<32x8xf32> to vector<2x16x8xf32>
    %466 = vector.shape_cast %461 : vector<32x8xf32> to vector<2x16x8xf32>
    "tpu.trace_start"() <{level = 10 : i32, message = "bqd,bkd->bqk"}> : () -> ()
    %cst_273 = arith.constant dense<0.000000e+00> : vector<2x16x16xf32>
    %467 = tpu.matmul %464, %465, %cst_273 {dimension_numbers = #tpu.dot_dimension_numbers<[2], [2], [1], [1], [0, 0, 0, 1, 1, 1], [0], [0]>} : vector<2x16x8xf32>, vector<2x16x8xf32>, vector<2x16x16xf32> -> vector<2x16x16xf32>
    "tpu.trace_stop"() : () -> ()
    %cst_274 = arith.constant dense<0xFF800000> : vector<2x16xf32>
    %468 = vector.multi_reduction <maximumf>, %467, %cst_274 [2] : vector<2x16x16xf32> to vector<2x16xf32>
    %469 = vector.shape_cast %468 : vector<2x16xf32> to vector<2x16x1xf32>
    %470 = vector.broadcast %469 : vector<2x16x1xf32> to vector<2x16x16xf32>
    %471 = arith.subf %467, %470 : vector<2x16x16xf32>
    %472 = math.exp %471 : vector<2x16x16xf32>
    %cst_275 = arith.constant dense<0.000000e+00> : vector<2x16xf32>
    %473 = vector.multi_reduction <add>, %472, %cst_275 [2] : vector<2x16x16xf32> to vector<2x16xf32>
    %474 = vector.shape_cast %473 : vector<2x16xf32> to vector<2x16x1xf32>
    %475 = tpu.reciprocal %474 {approx = true} : vector<2x16x1xf32> -> vector<2x16x1xf32>
    %476 = vector.broadcast %475 : vector<2x16x1xf32> to vector<2x16x16xf32>
    %477 = arith.mulf %472, %476 : vector<2x16x16xf32>
    "tpu.trace_start"() <{level = 10 : i32, message = "bqk,bkd->bqd"}> : () -> ()
    %cst_276 = arith.constant dense<0.000000e+00> : vector<2x16x8xf32>
    %478 = tpu.matmul %477, %466, %cst_276 {dimension_numbers = #tpu.dot_dimension_numbers<[2], [1], [1], [2], [0, 0, 0, 1, 1, 2], [0], [0]>} : vector<2x16x16xf32>, vector<2x16x8xf32>, vector<2x16x8xf32> -> vector<2x16x8xf32>
    "tpu.trace_stop"() : () -> ()
    %479 = vector.shape_cast %478 : vector<2x16x8xf32> to vector<32x8xf32>
    %c1_277 = arith.constant 1 : index
    %c0_278 = arith.constant 0 : index
    %c0_279 = arith.constant 0 : index
    %480 = vector.load %arg13[%c1_277, %c0_278, %c0_279] : memref<2x32x32xf32, #tpu.memory_space<vmem>>, vector<1x8x32xf32>
    %481 = vector.shape_cast %480 : vector<1x8x32xf32> to vector<8x32xf32>
    %cst_280 = arith.constant dense<0.000000e+00> : vector<32x32xf32>
    %482 = tpu.matmul %479, %481, %cst_280 {dimension_numbers = #tpu.dot_dimension_numbers<[1], [0], [0], [1], [0, 0, 1, 1], [], []>} : vector<32x8xf32>, vector<8x32xf32>, vector<32x32xf32> -> vector<32x32xf32>
    %483 = arith.addf %440, %482 : vector<32x32xf32>
    %c1_281 = arith.constant 1 : index
    %c0_282 = arith.constant 0 : index
    %c8_283 = arith.constant 8 : index
    %484 = vector.load %arg11[%c1_281, %c0_282, %c8_283] : memref<2x32x96xf32, #tpu.memory_space<vmem>>, vector<1x32x8xf32>
    %485 = vector.shape_cast %484 : vector<1x32x8xf32> to vector<32x8xf32>
    %cst_284 = arith.constant dense<0.000000e+00> : vector<32x8xf32>
    %486 = tpu.matmul %439, %485, %cst_284 {dimension_numbers = #tpu.dot_dimension_numbers<[1], [0], [0], [1], [0, 0, 1, 1], [], []>} : vector<32x32xf32>, vector<32x8xf32>, vector<32x8xf32> -> vector<32x8xf32>
    %c1_285 = arith.constant 1 : index
    %c0_286 = arith.constant 0 : index
    %c8_287 = arith.constant 8 : index
    %487 = vector.load %arg12[%c1_285, %c0_286, %c8_287] : memref<2x1x96xf32, #tpu.memory_space<vmem>>, vector<1x1x8xf32>
    %488 = vector.shape_cast %487 : vector<1x1x8xf32> to vector<1x8xf32>
    %489 = vector.broadcast %488 : vector<1x8xf32> to vector<32x8xf32>
    %490 = arith.addf %486, %489 : vector<32x8xf32>
    %c1_288 = arith.constant 1 : index
    %c0_289 = arith.constant 0 : index
    %c40_290 = arith.constant 40 : index
    %491 = vector.load %arg11[%c1_288, %c0_289, %c40_290] : memref<2x32x96xf32, #tpu.memory_space<vmem>>, vector<1x32x8xf32>
    %492 = vector.shape_cast %491 : vector<1x32x8xf32> to vector<32x8xf32>
    %cst_291 = arith.constant dense<0.000000e+00> : vector<32x8xf32>
    %493 = tpu.matmul %439, %492, %cst_291 {dimension_numbers = #tpu.dot_dimension_numbers<[1], [0], [0], [1], [0, 0, 1, 1], [], []>} : vector<32x32xf32>, vector<32x8xf32>, vector<32x8xf32> -> vector<32x8xf32>
    %c1_292 = arith.constant 1 : index
    %c0_293 = arith.constant 0 : index
    %c40_294 = arith.constant 40 : index
    %494 = vector.load %arg12[%c1_292, %c0_293, %c40_294] : memref<2x1x96xf32, #tpu.memory_space<vmem>>, vector<1x1x8xf32>
    %495 = vector.shape_cast %494 : vector<1x1x8xf32> to vector<1x8xf32>
    %496 = vector.broadcast %495 : vector<1x8xf32> to vector<32x8xf32>
    %497 = arith.addf %493, %496 : vector<32x8xf32>
    %c1_295 = arith.constant 1 : index
    %c0_296 = arith.constant 0 : index
    %c72_297 = arith.constant 72 : index
    %498 = vector.load %arg11[%c1_295, %c0_296, %c72_297] : memref<2x32x96xf32, #tpu.memory_space<vmem>>, vector<1x32x8xf32>
    %499 = vector.shape_cast %498 : vector<1x32x8xf32> to vector<32x8xf32>
    %cst_298 = arith.constant dense<0.000000e+00> : vector<32x8xf32>
    %500 = tpu.matmul %439, %499, %cst_298 {dimension_numbers = #tpu.dot_dimension_numbers<[1], [0], [0], [1], [0, 0, 1, 1], [], []>} : vector<32x32xf32>, vector<32x8xf32>, vector<32x8xf32> -> vector<32x8xf32>
    %c1_299 = arith.constant 1 : index
    %c0_300 = arith.constant 0 : index
    %c72_301 = arith.constant 72 : index
    %501 = vector.load %arg12[%c1_299, %c0_300, %c72_301] : memref<2x1x96xf32, #tpu.memory_space<vmem>>, vector<1x1x8xf32>
    %502 = vector.shape_cast %501 : vector<1x1x8xf32> to vector<1x8xf32>
    %503 = vector.broadcast %502 : vector<1x8xf32> to vector<32x8xf32>
    %504 = arith.addf %500, %503 : vector<32x8xf32>
    %505 = vector.shape_cast %490 : vector<32x8xf32> to vector<2x16x8xf32>
    %cst_302 = arith.constant 0.353553385 : f32
    %506 = vector.broadcast %cst_302 : f32 to vector<2x16x8xf32>
    %507 = arith.mulf %505, %506 : vector<2x16x8xf32>
    %508 = vector.shape_cast %497 : vector<32x8xf32> to vector<2x16x8xf32>
    %509 = vector.shape_cast %504 : vector<32x8xf32> to vector<2x16x8xf32>
    "tpu.trace_start"() <{level = 10 : i32, message = "bqd,bkd->bqk"}> : () -> ()
    %cst_303 = arith.constant dense<0.000000e+00> : vector<2x16x16xf32>
    %510 = tpu.matmul %507, %508, %cst_303 {dimension_numbers = #tpu.dot_dimension_numbers<[2], [2], [1], [1], [0, 0, 0, 1, 1, 1], [0], [0]>} : vector<2x16x8xf32>, vector<2x16x8xf32>, vector<2x16x16xf32> -> vector<2x16x16xf32>
    "tpu.trace_stop"() : () -> ()
    %cst_304 = arith.constant dense<0xFF800000> : vector<2x16xf32>
    %511 = vector.multi_reduction <maximumf>, %510, %cst_304 [2] : vector<2x16x16xf32> to vector<2x16xf32>
    %512 = vector.shape_cast %511 : vector<2x16xf32> to vector<2x16x1xf32>
    %513 = vector.broadcast %512 : vector<2x16x1xf32> to vector<2x16x16xf32>
    %514 = arith.subf %510, %513 : vector<2x16x16xf32>
    %515 = math.exp %514 : vector<2x16x16xf32>
    %cst_305 = arith.constant dense<0.000000e+00> : vector<2x16xf32>
    %516 = vector.multi_reduction <add>, %515, %cst_305 [2] : vector<2x16x16xf32> to vector<2x16xf32>
    %517 = vector.shape_cast %516 : vector<2x16xf32> to vector<2x16x1xf32>
    %518 = tpu.reciprocal %517 {approx = true} : vector<2x16x1xf32> -> vector<2x16x1xf32>
    %519 = vector.broadcast %518 : vector<2x16x1xf32> to vector<2x16x16xf32>
    %520 = arith.mulf %515, %519 : vector<2x16x16xf32>
    "tpu.trace_start"() <{level = 10 : i32, message = "bqk,bkd->bqd"}> : () -> ()
    %cst_306 = arith.constant dense<0.000000e+00> : vector<2x16x8xf32>
    %521 = tpu.matmul %520, %509, %cst_306 {dimension_numbers = #tpu.dot_dimension_numbers<[2], [1], [1], [2], [0, 0, 0, 1, 1, 2], [0], [0]>} : vector<2x16x16xf32>, vector<2x16x8xf32>, vector<2x16x8xf32> -> vector<2x16x8xf32>
    "tpu.trace_stop"() : () -> ()
    %522 = vector.shape_cast %521 : vector<2x16x8xf32> to vector<32x8xf32>
    %c1_307 = arith.constant 1 : index
    %c8_308 = arith.constant 8 : index
    %c0_309 = arith.constant 0 : index
    %523 = vector.load %arg13[%c1_307, %c8_308, %c0_309] : memref<2x32x32xf32, #tpu.memory_space<vmem>>, vector<1x8x32xf32>
    %524 = vector.shape_cast %523 : vector<1x8x32xf32> to vector<8x32xf32>
    %cst_310 = arith.constant dense<0.000000e+00> : vector<32x32xf32>
    %525 = tpu.matmul %522, %524, %cst_310 {dimension_numbers = #tpu.dot_dimension_numbers<[1], [0], [0], [1], [0, 0, 1, 1], [], []>} : vector<32x8xf32>, vector<8x32xf32>, vector<32x32xf32> -> vector<32x32xf32>
    %526 = arith.addf %483, %525 : vector<32x32xf32>
    %c1_311 = arith.constant 1 : index
    %c0_312 = arith.constant 0 : index
    %c16_313 = arith.constant 16 : index
    %527 = vector.load %arg11[%c1_311, %c0_312, %c16_313] : memref<2x32x96xf32, #tpu.memory_space<vmem>>, vector<1x32x8xf32>
    %528 = vector.shape_cast %527 : vector<1x32x8xf32> to vector<32x8xf32>
    %cst_314 = arith.constant dense<0.000000e+00> : vector<32x8xf32>
    %529 = tpu.matmul %439, %528, %cst_314 {dimension_numbers = #tpu.dot_dimension_numbers<[1], [0], [0], [1], [0, 0, 1, 1], [], []>} : vector<32x32xf32>, vector<32x8xf32>, vector<32x8xf32> -> vector<32x8xf32>
    %c1_315 = arith.constant 1 : index
    %c0_316 = arith.constant 0 : index
    %c16_317 = arith.constant 16 : index
    %530 = vector.load %arg12[%c1_315, %c0_316, %c16_317] : memref<2x1x96xf32, #tpu.memory_space<vmem>>, vector<1x1x8xf32>
    %531 = vector.shape_cast %530 : vector<1x1x8xf32> to vector<1x8xf32>
    %532 = vector.broadcast %531 : vector<1x8xf32> to vector<32x8xf32>
    %533 = arith.addf %529, %532 : vector<32x8xf32>
    %c1_318 = arith.constant 1 : index
    %c0_319 = arith.constant 0 : index
    %c48_320 = arith.constant 48 : index
    %534 = vector.load %arg11[%c1_318, %c0_319, %c48_320] : memref<2x32x96xf32, #tpu.memory_space<vmem>>, vector<1x32x8xf32>
    %535 = vector.shape_cast %534 : vector<1x32x8xf32> to vector<32x8xf32>
    %cst_321 = arith.constant dense<0.000000e+00> : vector<32x8xf32>
    %536 = tpu.matmul %439, %535, %cst_321 {dimension_numbers = #tpu.dot_dimension_numbers<[1], [0], [0], [1], [0, 0, 1, 1], [], []>} : vector<32x32xf32>, vector<32x8xf32>, vector<32x8xf32> -> vector<32x8xf32>
    %c1_322 = arith.constant 1 : index
    %c0_323 = arith.constant 0 : index
    %c48_324 = arith.constant 48 : index
    %537 = vector.load %arg12[%c1_322, %c0_323, %c48_324] : memref<2x1x96xf32, #tpu.memory_space<vmem>>, vector<1x1x8xf32>
    %538 = vector.shape_cast %537 : vector<1x1x8xf32> to vector<1x8xf32>
    %539 = vector.broadcast %538 : vector<1x8xf32> to vector<32x8xf32>
    %540 = arith.addf %536, %539 : vector<32x8xf32>
    %c1_325 = arith.constant 1 : index
    %c0_326 = arith.constant 0 : index
    %c80_327 = arith.constant 80 : index
    %541 = vector.load %arg11[%c1_325, %c0_326, %c80_327] : memref<2x32x96xf32, #tpu.memory_space<vmem>>, vector<1x32x8xf32>
    %542 = vector.shape_cast %541 : vector<1x32x8xf32> to vector<32x8xf32>
    %cst_328 = arith.constant dense<0.000000e+00> : vector<32x8xf32>
    %543 = tpu.matmul %439, %542, %cst_328 {dimension_numbers = #tpu.dot_dimension_numbers<[1], [0], [0], [1], [0, 0, 1, 1], [], []>} : vector<32x32xf32>, vector<32x8xf32>, vector<32x8xf32> -> vector<32x8xf32>
    %c1_329 = arith.constant 1 : index
    %c0_330 = arith.constant 0 : index
    %c80_331 = arith.constant 80 : index
    %544 = vector.load %arg12[%c1_329, %c0_330, %c80_331] : memref<2x1x96xf32, #tpu.memory_space<vmem>>, vector<1x1x8xf32>
    %545 = vector.shape_cast %544 : vector<1x1x8xf32> to vector<1x8xf32>
    %546 = vector.broadcast %545 : vector<1x8xf32> to vector<32x8xf32>
    %547 = arith.addf %543, %546 : vector<32x8xf32>
    %548 = vector.shape_cast %533 : vector<32x8xf32> to vector<2x16x8xf32>
    %cst_332 = arith.constant 0.353553385 : f32
    %549 = vector.broadcast %cst_332 : f32 to vector<2x16x8xf32>
    %550 = arith.mulf %548, %549 : vector<2x16x8xf32>
    %551 = vector.shape_cast %540 : vector<32x8xf32> to vector<2x16x8xf32>
    %552 = vector.shape_cast %547 : vector<32x8xf32> to vector<2x16x8xf32>
    "tpu.trace_start"() <{level = 10 : i32, message = "bqd,bkd->bqk"}> : () -> ()
    %cst_333 = arith.constant dense<0.000000e+00> : vector<2x16x16xf32>
    %553 = tpu.matmul %550, %551, %cst_333 {dimension_numbers = #tpu.dot_dimension_numbers<[2], [2], [1], [1], [0, 0, 0, 1, 1, 1], [0], [0]>} : vector<2x16x8xf32>, vector<2x16x8xf32>, vector<2x16x16xf32> -> vector<2x16x16xf32>
    "tpu.trace_stop"() : () -> ()
    %cst_334 = arith.constant dense<0xFF800000> : vector<2x16xf32>
    %554 = vector.multi_reduction <maximumf>, %553, %cst_334 [2] : vector<2x16x16xf32> to vector<2x16xf32>
    %555 = vector.shape_cast %554 : vector<2x16xf32> to vector<2x16x1xf32>
    %556 = vector.broadcast %555 : vector<2x16x1xf32> to vector<2x16x16xf32>
    %557 = arith.subf %553, %556 : vector<2x16x16xf32>
    %558 = math.exp %557 : vector<2x16x16xf32>
    %cst_335 = arith.constant dense<0.000000e+00> : vector<2x16xf32>
    %559 = vector.multi_reduction <add>, %558, %cst_335 [2] : vector<2x16x16xf32> to vector<2x16xf32>
    %560 = vector.shape_cast %559 : vector<2x16xf32> to vector<2x16x1xf32>
    %561 = tpu.reciprocal %560 {approx = true} : vector<2x16x1xf32> -> vector<2x16x1xf32>
    %562 = vector.broadcast %561 : vector<2x16x1xf32> to vector<2x16x16xf32>
    %563 = arith.mulf %558, %562 : vector<2x16x16xf32>
    "tpu.trace_start"() <{level = 10 : i32, message = "bqk,bkd->bqd"}> : () -> ()
    %cst_336 = arith.constant dense<0.000000e+00> : vector<2x16x8xf32>
    %564 = tpu.matmul %563, %552, %cst_336 {dimension_numbers = #tpu.dot_dimension_numbers<[2], [1], [1], [2], [0, 0, 0, 1, 1, 2], [0], [0]>} : vector<2x16x16xf32>, vector<2x16x8xf32>, vector<2x16x8xf32> -> vector<2x16x8xf32>
    "tpu.trace_stop"() : () -> ()
    %565 = vector.shape_cast %564 : vector<2x16x8xf32> to vector<32x8xf32>
    %c1_337 = arith.constant 1 : index
    %c16_338 = arith.constant 16 : index
    %c0_339 = arith.constant 0 : index
    %566 = vector.load %arg13[%c1_337, %c16_338, %c0_339] : memref<2x32x32xf32, #tpu.memory_space<vmem>>, vector<1x8x32xf32>
    %567 = vector.shape_cast %566 : vector<1x8x32xf32> to vector<8x32xf32>
    %cst_340 = arith.constant dense<0.000000e+00> : vector<32x32xf32>
    %568 = tpu.matmul %565, %567, %cst_340 {dimension_numbers = #tpu.dot_dimension_numbers<[1], [0], [0], [1], [0, 0, 1, 1], [], []>} : vector<32x8xf32>, vector<8x32xf32>, vector<32x32xf32> -> vector<32x32xf32>
    %569 = arith.addf %526, %568 : vector<32x32xf32>
    %c1_341 = arith.constant 1 : index
    %c0_342 = arith.constant 0 : index
    %c24_343 = arith.constant 24 : index
    %570 = vector.load %arg11[%c1_341, %c0_342, %c24_343] : memref<2x32x96xf32, #tpu.memory_space<vmem>>, vector<1x32x8xf32>
    %571 = vector.shape_cast %570 : vector<1x32x8xf32> to vector<32x8xf32>
    %cst_344 = arith.constant dense<0.000000e+00> : vector<32x8xf32>
    %572 = tpu.matmul %439, %571, %cst_344 {dimension_numbers = #tpu.dot_dimension_numbers<[1], [0], [0], [1], [0, 0, 1, 1], [], []>} : vector<32x32xf32>, vector<32x8xf32>, vector<32x8xf32> -> vector<32x8xf32>
    %c1_345 = arith.constant 1 : index
    %c0_346 = arith.constant 0 : index
    %c24_347 = arith.constant 24 : index
    %573 = vector.load %arg12[%c1_345, %c0_346, %c24_347] : memref<2x1x96xf32, #tpu.memory_space<vmem>>, vector<1x1x8xf32>
    %574 = vector.shape_cast %573 : vector<1x1x8xf32> to vector<1x8xf32>
    %575 = vector.broadcast %574 : vector<1x8xf32> to vector<32x8xf32>
    %576 = arith.addf %572, %575 : vector<32x8xf32>
    %c1_348 = arith.constant 1 : index
    %c0_349 = arith.constant 0 : index
    %c56_350 = arith.constant 56 : index
    %577 = vector.load %arg11[%c1_348, %c0_349, %c56_350] : memref<2x32x96xf32, #tpu.memory_space<vmem>>, vector<1x32x8xf32>
    %578 = vector.shape_cast %577 : vector<1x32x8xf32> to vector<32x8xf32>
    %cst_351 = arith.constant dense<0.000000e+00> : vector<32x8xf32>
    %579 = tpu.matmul %439, %578, %cst_351 {dimension_numbers = #tpu.dot_dimension_numbers<[1], [0], [0], [1], [0, 0, 1, 1], [], []>} : vector<32x32xf32>, vector<32x8xf32>, vector<32x8xf32> -> vector<32x8xf32>
    %c1_352 = arith.constant 1 : index
    %c0_353 = arith.constant 0 : index
    %c56_354 = arith.constant 56 : index
    %580 = vector.load %arg12[%c1_352, %c0_353, %c56_354] : memref<2x1x96xf32, #tpu.memory_space<vmem>>, vector<1x1x8xf32>
    %581 = vector.shape_cast %580 : vector<1x1x8xf32> to vector<1x8xf32>
    %582 = vector.broadcast %581 : vector<1x8xf32> to vector<32x8xf32>
    %583 = arith.addf %579, %582 : vector<32x8xf32>
    %c1_355 = arith.constant 1 : index
    %c0_356 = arith.constant 0 : index
    %c88_357 = arith.constant 88 : index
    %584 = vector.load %arg11[%c1_355, %c0_356, %c88_357] : memref<2x32x96xf32, #tpu.memory_space<vmem>>, vector<1x32x8xf32>
    %585 = vector.shape_cast %584 : vector<1x32x8xf32> to vector<32x8xf32>
    %cst_358 = arith.constant dense<0.000000e+00> : vector<32x8xf32>
    %586 = tpu.matmul %439, %585, %cst_358 {dimension_numbers = #tpu.dot_dimension_numbers<[1], [0], [0], [1], [0, 0, 1, 1], [], []>} : vector<32x32xf32>, vector<32x8xf32>, vector<32x8xf32> -> vector<32x8xf32>
    %c1_359 = arith.constant 1 : index
    %c0_360 = arith.constant 0 : index
    %c88_361 = arith.constant 88 : index
    %587 = vector.load %arg12[%c1_359, %c0_360, %c88_361] : memref<2x1x96xf32, #tpu.memory_space<vmem>>, vector<1x1x8xf32>
    %588 = vector.shape_cast %587 : vector<1x1x8xf32> to vector<1x8xf32>
    %589 = vector.broadcast %588 : vector<1x8xf32> to vector<32x8xf32>
    %590 = arith.addf %586, %589 : vector<32x8xf32>
    %591 = vector.shape_cast %576 : vector<32x8xf32> to vector<2x16x8xf32>
    %cst_362 = arith.constant 0.353553385 : f32
    %592 = vector.broadcast %cst_362 : f32 to vector<2x16x8xf32>
    %593 = arith.mulf %591, %592 : vector<2x16x8xf32>
    %594 = vector.shape_cast %583 : vector<32x8xf32> to vector<2x16x8xf32>
    %595 = vector.shape_cast %590 : vector<32x8xf32> to vector<2x16x8xf32>
    "tpu.trace_start"() <{level = 10 : i32, message = "bqd,bkd->bqk"}> : () -> ()
    %cst_363 = arith.constant dense<0.000000e+00> : vector<2x16x16xf32>
    %596 = tpu.matmul %593, %594, %cst_363 {dimension_numbers = #tpu.dot_dimension_numbers<[2], [2], [1], [1], [0, 0, 0, 1, 1, 1], [0], [0]>} : vector<2x16x8xf32>, vector<2x16x8xf32>, vector<2x16x16xf32> -> vector<2x16x16xf32>
    "tpu.trace_stop"() : () -> ()
    %cst_364 = arith.constant dense<0xFF800000> : vector<2x16xf32>
    %597 = vector.multi_reduction <maximumf>, %596, %cst_364 [2] : vector<2x16x16xf32> to vector<2x16xf32>
    %598 = vector.shape_cast %597 : vector<2x16xf32> to vector<2x16x1xf32>
    %599 = vector.broadcast %598 : vector<2x16x1xf32> to vector<2x16x16xf32>
    %600 = arith.subf %596, %599 : vector<2x16x16xf32>
    %601 = math.exp %600 : vector<2x16x16xf32>
    %cst_365 = arith.constant dense<0.000000e+00> : vector<2x16xf32>
    %602 = vector.multi_reduction <add>, %601, %cst_365 [2] : vector<2x16x16xf32> to vector<2x16xf32>
    %603 = vector.shape_cast %602 : vector<2x16xf32> to vector<2x16x1xf32>
    %604 = tpu.reciprocal %603 {approx = true} : vector<2x16x1xf32> -> vector<2x16x1xf32>
    %605 = vector.broadcast %604 : vector<2x16x1xf32> to vector<2x16x16xf32>
    %606 = arith.mulf %601, %605 : vector<2x16x16xf32>
    "tpu.trace_start"() <{level = 10 : i32, message = "bqk,bkd->bqd"}> : () -> ()
    %cst_366 = arith.constant dense<0.000000e+00> : vector<2x16x8xf32>
    %607 = tpu.matmul %606, %595, %cst_366 {dimension_numbers = #tpu.dot_dimension_numbers<[2], [1], [1], [2], [0, 0, 0, 1, 1, 2], [0], [0]>} : vector<2x16x16xf32>, vector<2x16x8xf32>, vector<2x16x8xf32> -> vector<2x16x8xf32>
    "tpu.trace_stop"() : () -> ()
    %608 = vector.shape_cast %607 : vector<2x16x8xf32> to vector<32x8xf32>
    %c1_367 = arith.constant 1 : index
    %c24_368 = arith.constant 24 : index
    %c0_369 = arith.constant 0 : index
    %609 = vector.load %arg13[%c1_367, %c24_368, %c0_369] : memref<2x32x32xf32, #tpu.memory_space<vmem>>, vector<1x8x32xf32>
    %610 = vector.shape_cast %609 : vector<1x8x32xf32> to vector<8x32xf32>
    %cst_370 = arith.constant dense<0.000000e+00> : vector<32x32xf32>
    %611 = tpu.matmul %608, %610, %cst_370 {dimension_numbers = #tpu.dot_dimension_numbers<[1], [0], [0], [1], [0, 0, 1, 1], [], []>} : vector<32x8xf32>, vector<8x32xf32>, vector<32x32xf32> -> vector<32x32xf32>
    %612 = arith.addf %569, %611 : vector<32x32xf32>
    %c1_371 = arith.constant 1 : index
    %c0_372 = arith.constant 0 : index
    %c0_373 = arith.constant 0 : index
    %613 = vector.load %arg14[%c1_371, %c0_372, %c0_373] : memref<2x1x32xf32, #tpu.memory_space<vmem>>, vector<1x1x32xf32>
    %614 = vector.shape_cast %613 : vector<1x1x32xf32> to vector<1x32xf32>
    %615 = vector.broadcast %614 : vector<1x32xf32> to vector<32x32xf32>
    %616 = arith.addf %612, %615 : vector<32x32xf32>
    %617 = arith.mulf %384, %616 : vector<32x32xf32>
    %618 = arith.addf %351, %617 : vector<32x32xf32>
    %cst_374 = arith.constant dense<0.000000e+00> : vector<32xf32>
    %619 = vector.multi_reduction <add>, %618, %cst_374 [1] : vector<32x32xf32> to vector<32xf32>
    %620 = vector.shape_cast %619 : vector<32xf32> to vector<32x1xf32>
    %cst_375 = arith.constant 3.200000e+01 : f32
    %621 = vector.broadcast %cst_375 : f32 to vector<32x1xf32>
    %622 = arith.divf %620, %621 : vector<32x1xf32>
    %623 = vector.broadcast %622 : vector<32x1xf32> to vector<32x32xf32>
    %624 = arith.subf %618, %623 : vector<32x32xf32>
    %625 = arith.mulf %624, %624 : vector<32x32xf32>
    %cst_376 = arith.constant dense<0.000000e+00> : vector<32xf32>
    %626 = vector.multi_reduction <add>, %625, %cst_376 [1] : vector<32x32xf32> to vector<32xf32>
    %627 = vector.shape_cast %626 : vector<32xf32> to vector<32x1xf32>
    %cst_377 = arith.constant 3.200000e+01 : f32
    %628 = vector.broadcast %cst_377 : f32 to vector<32x1xf32>
    %629 = arith.divf %627, %628 : vector<32x1xf32>
    %630 = vector.broadcast %622 : vector<32x1xf32> to vector<32x32xf32>
    %631 = arith.subf %618, %630 : vector<32x32xf32>
    %cst_378 = arith.constant 9.99999997E-7 : f32
    %632 = vector.broadcast %cst_378 : f32 to vector<32x1xf32>
    %633 = arith.addf %629, %632 : vector<32x1xf32>
    %634 = math.rsqrt %633 : vector<32x1xf32>
    %635 = vector.broadcast %634 : vector<32x1xf32> to vector<32x32xf32>
    %636 = arith.mulf %631, %635 : vector<32x32xf32>
    %cst_379 = arith.constant 1.000000e+00 : f32
    %637 = vector.broadcast %cst_379 : f32 to vector<32x32xf32>
    %638 = arith.addf %637, %406 : vector<32x32xf32>
    %639 = arith.mulf %636, %638 : vector<32x32xf32>
    %640 = arith.addf %639, %395 : vector<32x32xf32>
    %c1_380 = arith.constant 1 : index
    %c0_381 = arith.constant 0 : index
    %c0_382 = arith.constant 0 : index
    %641 = vector.load %arg15[%c1_380, %c0_381, %c0_382] : memref<2x32x128xf32, #tpu.memory_space<vmem>>, vector<1x32x128xf32>
    %642 = vector.shape_cast %641 : vector<1x32x128xf32> to vector<32x128xf32>
    %cst_383 = arith.constant dense<0.000000e+00> : vector<32x128xf32>
    %643 = tpu.matmul %640, %642, %cst_383 {dimension_numbers = #tpu.dot_dimension_numbers<[1], [0], [0], [1], [0, 0, 1, 1], [], []>} : vector<32x32xf32>, vector<32x128xf32>, vector<32x128xf32> -> vector<32x128xf32>
    %c1_384 = arith.constant 1 : index
    %c0_385 = arith.constant 0 : index
    %c0_386 = arith.constant 0 : index
    %644 = vector.load %arg16[%c1_384, %c0_385, %c0_386] : memref<2x1x128xf32, #tpu.memory_space<vmem>>, vector<1x1x128xf32>
    %645 = vector.shape_cast %644 : vector<1x1x128xf32> to vector<1x128xf32>
    %646 = vector.broadcast %645 : vector<1x128xf32> to vector<32x128xf32>
    %647 = arith.addf %643, %646 : vector<32x128xf32>
    %648 = arith.mulf %647, %647 : vector<32x128xf32>
    %649 = arith.mulf %647, %648 : vector<32x128xf32>
    %cst_387 = arith.constant 4.471500e-02 : f32
    %650 = vector.broadcast %cst_387 : f32 to vector<32x128xf32>
    %651 = arith.mulf %650, %649 : vector<32x128xf32>
    %652 = arith.addf %647, %651 : vector<32x128xf32>
    %cst_388 = arith.constant 0.797884583 : f32
    %653 = vector.broadcast %cst_388 : f32 to vector<32x128xf32>
    %654 = arith.mulf %653, %652 : vector<32x128xf32>
    %655 = math.tanh %654 : vector<32x128xf32>
    %cst_389 = arith.constant 1.000000e+00 : f32
    %656 = vector.broadcast %cst_389 : f32 to vector<32x128xf32>
    %657 = arith.addf %656, %655 : vector<32x128xf32>
    %cst_390 = arith.constant 5.000000e-01 : f32
    %658 = vector.broadcast %cst_390 : f32 to vector<32x128xf32>
    %659 = arith.mulf %658, %657 : vector<32x128xf32>
    %660 = arith.mulf %647, %659 : vector<32x128xf32>
    %c1_391 = arith.constant 1 : index
    %c0_392 = arith.constant 0 : index
    %c0_393 = arith.constant 0 : index
    %661 = vector.load %arg17[%c1_391, %c0_392, %c0_393] : memref<2x128x32xf32, #tpu.memory_space<vmem>>, vector<1x128x32xf32>
    %662 = vector.shape_cast %661 : vector<1x128x32xf32> to vector<128x32xf32>
    %cst_394 = arith.constant dense<0.000000e+00> : vector<32x32xf32>
    %663 = tpu.matmul %660, %662, %cst_394 {dimension_numbers = #tpu.dot_dimension_numbers<[1], [0], [0], [1], [0, 0, 1, 1], [], []>} : vector<32x128xf32>, vector<128x32xf32>, vector<32x32xf32> -> vector<32x32xf32>
    %c1_395 = arith.constant 1 : index
    %c0_396 = arith.constant 0 : index
    %c0_397 = arith.constant 0 : index
    %664 = vector.load %arg18[%c1_395, %c0_396, %c0_397] : memref<2x1x32xf32, #tpu.memory_space<vmem>>, vector<1x1x32xf32>
    %665 = vector.shape_cast %664 : vector<1x1x32xf32> to vector<1x32xf32>
    %666 = vector.broadcast %665 : vector<1x32xf32> to vector<32x32xf32>
    %667 = arith.addf %663, %666 : vector<32x32xf32>
    %668 = arith.mulf %417, %667 : vector<32x32xf32>
    %669 = arith.addf %618, %668 : vector<32x32xf32>
    %c0_398 = arith.constant 0 : index
    %c0_399 = arith.constant 0 : index
    %670 = vector.load %arg19[%c0_398, %c0_399] : memref<32x64xf32, #tpu.memory_space<vmem>>, vector<32x32xf32>
    %cst_400 = arith.constant dense<0.000000e+00> : vector<2x32xf32>
    %671 = tpu.matmul %33, %670, %cst_400 {dimension_numbers = #tpu.dot_dimension_numbers<[1], [0], [0], [1], [0, 0, 1, 1], [], []>} : vector<2x32xf32>, vector<32x32xf32>, vector<2x32xf32> -> vector<2x32xf32>
    %c0_401 = arith.constant 0 : index
    %c0_402 = arith.constant 0 : index
    %672 = vector.load %arg20[%c0_401, %c0_402] : memref<1x64xf32, #tpu.memory_space<vmem>>, vector<1x32xf32>
    %673 = vector.broadcast %672 : vector<1x32xf32> to vector<2x32xf32>
    %674 = arith.addf %671, %673 : vector<2x32xf32>
    %675 = vector.shape_cast %674 : vector<2x32xf32> to vector<2x1x32xf32>
    %676 = vector.shape_cast %675 : vector<2x1x32xf32> to vector<2x1x32xf32>
    %677 = vector.broadcast %676 : vector<2x1x32xf32> to vector<2x16x32xf32>
    %678 = vector.shape_cast %677 : vector<2x16x32xf32> to vector<32x32xf32>
    %c0_403 = arith.constant 0 : index
    %c32_404 = arith.constant 32 : index
    %679 = vector.load %arg19[%c0_403, %c32_404] : memref<32x64xf32, #tpu.memory_space<vmem>>, vector<32x32xf32>
    %cst_405 = arith.constant dense<0.000000e+00> : vector<2x32xf32>
    %680 = tpu.matmul %33, %679, %cst_405 {dimension_numbers = #tpu.dot_dimension_numbers<[1], [0], [0], [1], [0, 0, 1, 1], [], []>} : vector<2x32xf32>, vector<32x32xf32>, vector<2x32xf32> -> vector<2x32xf32>
    %c0_406 = arith.constant 0 : index
    %c32_407 = arith.constant 32 : index
    %681 = vector.load %arg20[%c0_406, %c32_407] : memref<1x64xf32, #tpu.memory_space<vmem>>, vector<1x32xf32>
    %682 = vector.broadcast %681 : vector<1x32xf32> to vector<2x32xf32>
    %683 = arith.addf %680, %682 : vector<2x32xf32>
    %684 = vector.shape_cast %683 : vector<2x32xf32> to vector<2x1x32xf32>
    %685 = vector.shape_cast %684 : vector<2x1x32xf32> to vector<2x1x32xf32>
    %686 = vector.broadcast %685 : vector<2x1x32xf32> to vector<2x16x32xf32>
    %687 = vector.shape_cast %686 : vector<2x16x32xf32> to vector<32x32xf32>
    %cst_408 = arith.constant dense<0.000000e+00> : vector<32xf32>
    %688 = vector.multi_reduction <add>, %669, %cst_408 [1] : vector<32x32xf32> to vector<32xf32>
    %689 = vector.shape_cast %688 : vector<32xf32> to vector<32x1xf32>
    %cst_409 = arith.constant 3.200000e+01 : f32
    %690 = vector.broadcast %cst_409 : f32 to vector<32x1xf32>
    %691 = arith.divf %689, %690 : vector<32x1xf32>
    %692 = vector.broadcast %691 : vector<32x1xf32> to vector<32x32xf32>
    %693 = arith.subf %669, %692 : vector<32x32xf32>
    %694 = arith.mulf %693, %693 : vector<32x32xf32>
    %cst_410 = arith.constant dense<0.000000e+00> : vector<32xf32>
    %695 = vector.multi_reduction <add>, %694, %cst_410 [1] : vector<32x32xf32> to vector<32xf32>
    %696 = vector.shape_cast %695 : vector<32xf32> to vector<32x1xf32>
    %cst_411 = arith.constant 3.200000e+01 : f32
    %697 = vector.broadcast %cst_411 : f32 to vector<32x1xf32>
    %698 = arith.divf %696, %697 : vector<32x1xf32>
    %699 = vector.broadcast %691 : vector<32x1xf32> to vector<32x32xf32>
    %700 = arith.subf %669, %699 : vector<32x32xf32>
    %cst_412 = arith.constant 9.99999997E-7 : f32
    %701 = vector.broadcast %cst_412 : f32 to vector<32x1xf32>
    %702 = arith.addf %698, %701 : vector<32x1xf32>
    %703 = math.rsqrt %702 : vector<32x1xf32>
    %704 = vector.broadcast %703 : vector<32x1xf32> to vector<32x32xf32>
    %705 = arith.mulf %700, %704 : vector<32x32xf32>
    %cst_413 = arith.constant 1.000000e+00 : f32
    %706 = vector.broadcast %cst_413 : f32 to vector<32x32xf32>
    %707 = arith.addf %706, %687 : vector<32x32xf32>
    %708 = arith.mulf %705, %707 : vector<32x32xf32>
    %709 = arith.addf %708, %678 : vector<32x32xf32>
    %c0_414 = arith.constant 0 : index
    %c0_415 = arith.constant 0 : index
    %710 = vector.load %arg21[%c0_414, %c0_415] : memref<32x64xf32, #tpu.memory_space<vmem>>, vector<32x64xf32>
    %cst_416 = arith.constant dense<0.000000e+00> : vector<32x64xf32>
    %711 = tpu.matmul %709, %710, %cst_416 {dimension_numbers = #tpu.dot_dimension_numbers<[1], [0], [0], [1], [0, 0, 1, 1], [], []>} : vector<32x32xf32>, vector<32x64xf32>, vector<32x64xf32> -> vector<32x64xf32>
    %c0_417 = arith.constant 0 : index
    %c0_418 = arith.constant 0 : index
    %712 = vector.load %arg22[%c0_417, %c0_418] : memref<1x64xf32, #tpu.memory_space<vmem>>, vector<1x64xf32>
    %713 = vector.broadcast %712 : vector<1x64xf32> to vector<32x64xf32>
    %714 = arith.addf %711, %713 : vector<32x64xf32>
    %c0_419 = arith.constant 0 : index
    %c0_420 = arith.constant 0 : index
    %715 = vector.load %arg23[%c0_419, %c0_420] : memref<32x64xf32, #tpu.memory_space<vmem>>, vector<32x64xf32>
    tpu.vector_store %arg23[%c0_419, %c0_420], %714 {strides = array<i32>} : memref<32x64xf32, #tpu.memory_space<vmem>>, vector<32x64xf32>,
    return
  }
}

</mosaic_0001>

<llo_original>
// kernel: forward.1
$region0: #{forward.1}
  #allocation0 [shape = 'u32[]', space=smem, size = 0x4, offset = 0x4, fixed_abs, tag = 'smem constant byte address 0x4 - core index']
  #allocation1 [shape = 'u32[72,128]{1,0:T(1,128)}', space=vmem, size = 0x9000, scoped, tag = 'internal scratch']
  %s0 = inlined_call_operand.vmem [shape: f32[32,64], index: 0, kind: input, shape index: {}]
  %s1 = inlined_call_operand.vmem [shape: f32[2,256], index: 1, kind: input, shape index: {}]
  %s2 = inlined_call_operand.vmem [shape: f32[16,32], index: 2, kind: input, shape index: {}]
  %s3 = inlined_call_operand.vmem [shape: f32[64,32], index: 3, kind: input, shape index: {}]
  %s4 = inlined_call_operand.vmem [shape: f32[1,32], index: 4, kind: input, shape index: {}]
  %s5 = inlined_call_operand.vmem [shape: f32[256,32], index: 5, kind: input, shape index: {}]
  %s6 = inlined_call_operand.vmem [shape: f32[1,32], index: 6, kind: input, shape index: {}]
  %s7 = inlined_call_operand.vmem [shape: f32[32,32], index: 7, kind: input, shape index: {}]
  %s8 = inlined_call_operand.vmem [shape: f32[1,32], index: 8, kind: input, shape index: {}]
  %s9 = inlined_call_operand.vmem [shape: f32[2,32,192], index: 9, kind: input, shape index: {}]
  %s10 = inlined_call_operand.vmem [shape: f32[2,1,192], index: 10, kind: input, shape index: {}]
  %s11 = inlined_call_operand.vmem [shape: f32[2,32,96], index: 11, kind: input, shape index: {}]
  %s12 = inlined_call_operand.vmem [shape: f32[2,1,96], index: 12, kind: input, shape index: {}]
  %s13 = inlined_call_operand.vmem [shape: f32[2,32,32], index: 13, kind: input, shape index: {}]
  %s14 = inlined_call_operand.vmem [shape: f32[2,1,32], index: 14, kind: input, shape index: {}]
  %s15 = inlined_call_operand.vmem [shape: f32[2,32,128], index: 15, kind: input, shape index: {}]
  %s16 = inlined_call_operand.vmem [shape: f32[2,1,128], index: 16, kind: input, shape index: {}]
  %s17 = inlined_call_operand.vmem [shape: f32[2,128,32], index: 17, kind: input, shape index: {}]
  %s18 = inlined_call_operand.vmem [shape: f32[2,1,32], index: 18, kind: input, shape index: {}]
  %s19 = inlined_call_operand.vmem [shape: f32[32,64], index: 19, kind: input, shape index: {}]
  %s20 = inlined_call_operand.vmem [shape: f32[1,64], index: 20, kind: input, shape index: {}]
  %s21 = inlined_call_operand.vmem [shape: f32[32,64], index: 21, kind: input, shape index: {}]
  %s22 = inlined_call_operand.vmem [shape: f32[1,64], index: 22, kind: input, shape index: {}]
  %s23 = inlined_call_operand.vmem [shape: f32[32,64], index: 23, kind: output, shape index: {}]
  %s24 = sld [smem:[#allocation0]]
  $region102: #{forward.1} parent=0
    _
  %s26 = ssub.s32 1, %s24
  %s27 = scalar_select 0, %s26, %s24
  // Predicated region
  $region2: #{forward.1} parent=0 // pred_check
    _
  $region3: #{forward.1} parent=0 // pred_check_branch
    %29 = sbr.rel (0) target = $region5
  $region4: #{forward.1} parent=0 // pred_region
    _
  $region5: #{forward.1} parent=0 // pred_fallthru
    _
  // Predicated region
  $region6: #{forward.1} parent=0 // pred_check
    _
  $region7: #{forward.1} parent=0 // pred_check_branch
    %31 = sbr.rel (0) target = $region9
  $region8: #{forward.1} parent=0 // pred_region
    _
  $region9: #{forward.1} parent=0 // pred_fallthru
    _
  // Predicated region
  $region10: #{forward.1} parent=0 // pred_check
    _
  $region11: #{forward.1} parent=0 // pred_check_branch
    %33 = sbr.rel (0) target = $region13
  $region12: #{forward.1} parent=0 // pred_region
    _
  $region13: #{forward.1} parent=0 // pred_fallthru
    _
  // Predicated region
  $region14: #{forward.1} parent=0 // pred_check
    _
  $region15: #{forward.1} parent=0 // pred_check_branch
    %35 = sbr.rel (0) target = $region17
  $region16: #{forward.1} parent=0 // pred_region
    _
  $region17: #{forward.1} parent=0 // pred_fallthru
    _
  // Predicated region
  $region18: #{forward.1} parent=0 // pred_check
    _
  $region19: #{forward.1} parent=0 // pred_check_branch
    %37 = sbr.rel (0) target = $region21
  $region20: #{forward.1} parent=0 // pred_region
    _
  $region21: #{forward.1} parent=0 // pred_fallthru
    _
  // Predicated region
  $region22: #{forward.1} parent=0 // pred_check
    _
  $region23: #{forward.1} parent=0 // pred_check_branch
    %39 = sbr.rel (0) target = $region25
  $region24: #{forward.1} parent=0 // pred_region
    _
  $region25: #{forward.1} parent=0 // pred_fallthru
    _
  // Predicated region
  $region26: #{forward.1} parent=0 // pred_check
    _
  $region27: #{forward.1} parent=0 // pred_check_branch
    %41 = sbr.rel (0) target = $region29
  $region28: #{forward.1} parent=0 // pred_region
    _
  $region29: #{forward.1} parent=0 // pred_fallthru
    _
  // Predicated region
  $region30: #{forward.1} parent=0 // pred_check
    _
  $region31: #{forward.1} parent=0 // pred_check_branch
    %43 = sbr.rel (0) target = $region33
  $region32: #{forward.1} parent=0 // pred_region
    _
  $region33: #{forward.1} parent=0 // pred_fallthru
    _
  // Predicated region
  $region34: #{forward.1} parent=0 // pred_check
    _
  $region35: #{forward.1} parent=0 // pred_check_branch
    %45 = sbr.rel (0) target = $region37
  $region36: #{forward.1} parent=0 // pred_region
    _
  $region37: #{forward.1} parent=0 // pred_fallthru
    _
  // Predicated region
  $region38: #{forward.1} parent=0 // pred_check
    _
  $region39: #{forward.1} parent=0 // pred_check_branch
    %47 = sbr.rel (0) target = $region41
  $region40: #{forward.1} parent=0 // pred_region
    _
  $region41: #{forward.1} parent=0 // pred_fallthru
    _
  // Predicated region
  $region42: #{forward.1} parent=0 // pred_check
    _
  $region43: #{forward.1} parent=0 // pred_check_branch
    %49 = sbr.rel (0) target = $region45
  $region44: #{forward.1} parent=0 // pred_region
    _
  $region45: #{forward.1} parent=0 // pred_fallthru
    _
  // Predicated region
  $region46: #{forward.1} parent=0 // pred_check
    _
  $region47: #{forward.1} parent=0 // pred_check_branch
    %51 = sbr.rel (0) target = $region49
  $region48: #{forward.1} parent=0 // pred_region
    _
  $region49: #{forward.1} parent=0 // pred_fallthru
    _
  // Predicated region
  $region50: #{forward.1} parent=0 // pred_check
    _
  $region51: #{forward.1} parent=0 // pred_check_branch
    %53 = sbr.rel (0) target = $region53
  $region52: #{forward.1} parent=0 // pred_region
    _
  $region53: #{forward.1} parent=0 // pred_fallthru
    _
  // Predicated region
  $region54: #{forward.1} parent=0 // pred_check
    _
  $region55: #{forward.1} parent=0 // pred_check_branch
    %55 = sbr.rel (0) target = $region57
  $region56: #{forward.1} parent=0 // pred_region
    _
  $region57: #{forward.1} parent=0 // pred_fallthru
    _
  // Predicated region
  $region58: #{forward.1} parent=0 // pred_check
    _
  $region59: #{forward.1} parent=0 // pred_check_branch
    %57 = sbr.rel (0) target = $region61
  $region60: #{forward.1} parent=0 // pred_region
    _
  $region61: #{forward.1} parent=0 // pred_fallthru
    _
  // Predicated region
  $region62: #{forward.1} parent=0 // pred_check
    _
  $region63: #{forward.1} parent=0 // pred_check_branch
    %59 = sbr.rel (0) target = $region65
  $region64: #{forward.1} parent=0 // pred_region
    _
  $region65: #{forward.1} parent=0 // pred_fallthru
    _
  // Predicated region
  $region66: #{forward.1} parent=0 // pred_check
    _
  $region67: #{forward.1} parent=0 // pred_check_branch
    %61 = sbr.rel (0) target = $region69
  $region68: #{forward.1} parent=0 // pred_region
    _
  $region69: #{forward.1} parent=0 // pred_fallthru
    _
  // Predicated region
  $region70: #{forward.1} parent=0 // pred_check
    _
  $region71: #{forward.1} parent=0 // pred_check_branch
    %63 = sbr.rel (0) target = $region73
  $region72: #{forward.1} parent=0 // pred_region
    _
  $region73: #{forward.1} parent=0 // pred_fallthru
    _
  // Predicated region
  $region74: #{forward.1} parent=0 // pred_check
    _
  $region75: #{forward.1} parent=0 // pred_check_branch
    %65 = sbr.rel (0) target = $region77
  $region76: #{forward.1} parent=0 // pred_region
    _
  $region77: #{forward.1} parent=0 // pred_fallthru
    _
  // Predicated region
  $region78: #{forward.1} parent=0 // pred_check
    _
  $region79: #{forward.1} parent=0 // pred_check_branch
    %67 = sbr.rel (0) target = $region81
  $region80: #{forward.1} parent=0 // pred_region
    _
  $region81: #{forward.1} parent=0 // pred_fallthru
    _
  // Predicated region
  $region82: #{forward.1} parent=0 // pred_check
    _
  $region83: #{forward.1} parent=0 // pred_check_branch
    %69 = sbr.rel (0) target = $region85
  $region84: #{forward.1} parent=0 // pred_region
    _
  $region85: #{forward.1} parent=0 // pred_fallthru
    _
  // Predicated region
  $region86: #{forward.1} parent=0 // pred_check
    _
  $region87: #{forward.1} parent=0 // pred_check_branch
    %71 = sbr.rel (0) target = $region89
  $region88: #{forward.1} parent=0 // pred_region
    _
  $region89: #{forward.1} parent=0 // pred_fallthru
    _
  // Predicated region
  $region90: #{forward.1} parent=0 // pred_check
    _
  $region91: #{forward.1} parent=0 // pred_check_branch
    %73 = sbr.rel (0) target = $region93
  $region92: #{forward.1} parent=0 // pred_region
    _
  $region93: #{forward.1} parent=0 // pred_fallthru
    _
  %v74 = vld [vmem:[%s2] sm:$0xff]
  %v75 = vld [vmem:[%s2 + $0x8] sm:$0xff]
  %v76 = vld [vmem:[%s0] sm:$0xff]
  %v77 = vld [vmem:[%s0 + $0x8] sm:$0xff]
  %v78 = vld [vmem:[%s0 + $0x10] sm:$0xff]
  %v79 = vld [vmem:[%s0 + $0x18] sm:$0xff]
  %v80 = vld [vmem:[%s3] sm:$0xff]
  %v81 = vld [vmem:[%s3 + $0x8] sm:$0xff]
  %v82 = vld [vmem:[%s3 + $0x10] sm:$0xff]
  %v83 = vld [vmem:[%s3 + $0x18] sm:$0xff]
  %v84 = vld [vmem:[%s3 + $0x20] sm:$0xff]
  %v85 = vld [vmem:[%s3 + $0x28] sm:$0xff]
  %v86 = vld [vmem:[%s3 + $0x30] sm:$0xff]
  %v87 = vld [vmem:[%s3 + $0x38] sm:$0xff]
  %v88 = vld [vmem:[%s4] sm:$0x1]
  %v90 = vperm.slane %v88, 0
  %vm92 = vcmask 523264
  %v94 = vsel %vm92, %v76, 0
  %v97 = vsel %vm92, %v77, 0
  %v100 = vsel %vm92, %v78, 0
  %v103 = vsel %vm92, %v79, 0
  %105 = vmatpush.msra.mxu0 0.0
  %106 = vmatpush.msra.mxu0 0.0
  %107 = vmatpush.msra.mxu0 0.0
  %108 = vmatpush.msra.mxu0 0.0
  %109 = vmatpush.msra.mxu0 0.0
  %110 = vmatpush.msra.mxu0 0.0
  %111 = vmatpush.msra.mxu0 0.0
  %112 = vmatpush.msra.mxu0 0.0
  %113 = vmatpush.msra.mxu0 %v87
  %114 = vmatpush.msra.mxu0 %v86
  %115 = vmatpush.msra.mxu0 %v85
  %116 = vmatpush.msra.mxu0 %v84
  %117 = vmatpush.msra.mxu0 %v83
  %118 = vmatpush.msra.mxu0 %v82
  %119 = vmatpush.msra.mxu0 %v81
  %120 = vmatpush.msra.mxu0 %v80
  %121 = vmatmul.f32.gmra.mxu0 %v94
  %v122 = vpop.f32.mrf.mxu0
  %v123 = vadd.f32 %v90, %v122
  %124 = vmatmul.f32.gmra.mxu0 %v97
  %v125 = vpop.f32.mrf.mxu0
  %v126 = vadd.f32 %v90, %v125
  %127 = vmatmul.f32.gmra.mxu0 %v100
  %v128 = vpop.f32.mrf.mxu0
  %v129 = vadd.f32 %v90, %v128
  %130 = vmatmul.f32.gmra.mxu0 %v103
  %v131 = vpop.f32.mrf.mxu0
  %v132 = vadd.f32 %v90, %v131
  %133 = vdwg.mxu0
  %v134 = vadd.f32 %v123, %v74
  %v135 = vadd.f32 %v126, %v75
  %v136 = vadd.f32 %v129, %v74
  %v137 = vadd.f32 %v132, %v75
  %v138 = vld [vmem:[%s1] sm:$0xf]
  %v139 = vld [vmem:[%s5] sm:$0xff]
  %v140 = vld [vmem:[%s5 + $0x8] sm:$0xff]
  %v141 = vld [vmem:[%s5 + $0x10] sm:$0xff]
  %v142 = vld [vmem:[%s5 + $0x18] sm:$0xff]
  %v143 = vld [vmem:[%s5 + $0x20] sm:$0xff]
  %v144 = vld [vmem:[%s5 + $0x28] sm:$0xff]
  %v145 = vld [vmem:[%s5 + $0x30] sm:$0xff]
  %v146 = vld [vmem:[%s5 + $0x38] sm:$0xff]
  %v147 = vld [vmem:[%s5 + $0x40] sm:$0xff]
  %v148 = vld [vmem:[%s5 + $0x48] sm:$0xff]
  %v149 = vld [vmem:[%s5 + $0x50] sm:$0xff]
  %v150 = vld [vmem:[%s5 + $0x58] sm:$0xff]
  %v151 = vld [vmem:[%s5 + $0x60] sm:$0xff]
  %v152 = vld [vmem:[%s5 + $0x68] sm:$0xff]
  %v153 = vld [vmem:[%s5 + $0x70] sm:$0xff]
  %v154 = vld [vmem:[%s5 + $0x78] sm:$0xff]
  %v155 = vld [vmem:[%s5 + $0x80] sm:$0xff]
  %v156 = vld [vmem:[%s5 + $0x88] sm:$0xff]
  %v157 = vld [vmem:[%s5 + $0x90] sm:$0xff]
  %v158 = vld [vmem:[%s5 + $0x98] sm:$0xff]
  %v159 = vld [vmem:[%s5 + $0xa0] sm:$0xff]
  %v160 = vld [vmem:[%s5 + $0xa8] sm:$0xff]
  %v161 = vld [vmem:[%s5 + $0xb0] sm:$0xff]
  %v162 = vld [vmem:[%s5 + $0xb8] sm:$0xff]
  %v163 = vld [vmem:[%s5 + $0xc0] sm:$0xff]
  %v164 = vld [vmem:[%s5 + $0xc8] sm:$0xff]
  %v165 = vld [vmem:[%s5 + $0xd0] sm:$0xff]
  %v166 = vld [vmem:[%s5 + $0xd8] sm:$0xff]
  %v167 = vld [vmem:[%s5 + $0xe0] sm:$0xff]
  %v168 = vld [vmem:[%s5 + $0xe8] sm:$0xff]
  %v169 = vld [vmem:[%s5 + $0xf0] sm:$0xff]
  %v170 = vld [vmem:[%s5 + $0xf8] sm:$0xff]
  %v171 = vld [vmem:[%s6] sm:$0x1]
  %v173 = vperm.slane %v171, 0
  %176 = vst [vmem:[#allocation1] ss:$4 sm:$0xff] %v138
  %v177 = vld.sshfl [vmem:[#allocation1] sm:$0xff pattern:$0x73625140]
  %v178 = vld.sshfl [vmem:[#allocation1 + $0x8] sm:$0xff pattern:$0x73625140]
  %181 = vmatpush.msra.mxu0 %v154
  %182 = vmatpush.msra.mxu0 %v153
  %183 = vmatpush.msra.mxu0 %v152
  %184 = vmatpush.msra.mxu0 %v151
  %185 = vmatpush.msra.mxu0 %v150
  %186 = vmatpush.msra.mxu0 %v149
  %187 = vmatpush.msra.mxu0 %v148
  %188 = vmatpush.msra.mxu0 %v147
  %189 = vmatpush.msra.mxu0 %v146
  %190 = vmatpush.msra.mxu0 %v145
  %191 = vmatpush.msra.mxu0 %v144
  %192 = vmatpush.msra.mxu0 %v143
  %193 = vmatpush.msra.mxu0 %v142
  %194 = vmatpush.msra.mxu0 %v141
  %195 = vmatpush.msra.mxu0 %v140
  %196 = vmatpush.msra.mxu0 %v139
  %197 = vmatmul.f32.gmra.mxu0 %v177
  %v198 = vpop.f32.mrf.mxu0
  %v199 = vadd.f32 %v173, %v198
  %200 = vdwg.mxu0
  %201 = vmatpush.msra.mxu0 %v170
  %202 = vmatpush.msra.mxu0 %v169
  %203 = vmatpush.msra.mxu0 %v168
  %204 = vmatpush.msra.mxu0 %v167
  %205 = vmatpush.msra.mxu0 %v166
  %206 = vmatpush.msra.mxu0 %v165
  %207 = vmatpush.msra.mxu0 %v164
  %208 = vmatpush.msra.mxu0 %v163
  %209 = vmatpush.msra.mxu0 %v162
  %210 = vmatpush.msra.mxu0 %v161
  %211 = vmatpush.msra.mxu0 %v160
  %212 = vmatpush.msra.mxu0 %v159
  %213 = vmatpush.msra.mxu0 %v158
  %214 = vmatpush.msra.mxu0 %v157
  %215 = vmatpush.msra.mxu0 %v156
  %216 = vmatpush.msra.mxu0 %v155
  %217 = vmatmul.f32.gmra.mxu0 %v178
  %v218 = vpop.f32.mrf.mxu0
  %v219 = vadd.f32 %v199, %v218
  %220 = vdwg.mxu0
  %v221 = vxor.u32 %v219, 2147483648
  %v222 = vmul.f32 %v221, 1.442695
  %v223 = vpow.pop %v222
  %v224 = vadd.f32 %v223, 1.0
  %v225 = vrcp.pop %v224
  %v226 = vmul.f32 %v224, %v225
  %v227 = vsub.f32 1.0, %v226
  %v228 = vmul.f32 %v225, %v227
  %v229 = vadd.f32 %v225, %v228
  %vm230 = vweird.f32 %v224
  %vm231 = vweird.f32 %v225
  %vm232 = vmor %vm230, %vm231
  %v233 = vsel %vm232, %v225, %v229
  %v234 = vand.u32 2147483647, %v224
  %vm235 = vcmp.eq.f32.partialorder %v234, 8.507059e+37
  %v236 = vand.u32 %v224, 2147483648
  %v237 = vor.u32 1.1754944e-38, %v236
  %v238 = vsel %vm235, %v237, %v233
  %v239 = vmul.f32 1.0, %v238
  %v240 = vmul.f32 %v219, %v239
  %v241 = vld [vmem:[%s7] sm:$0xff]
  %v242 = vld [vmem:[%s7 + $0x8] sm:$0xff]
  %v243 = vld [vmem:[%s7 + $0x10] sm:$0xff]
  %v244 = vld [vmem:[%s7 + $0x18] sm:$0xff]
  %v245 = vld [vmem:[%s8] sm:$0x1]
  %v247 = vperm.slane %v245, 0
  %vm249 = vcmask 261120
  %v251 = vsel %vm249, %v240, 0
  %253 = vmatpush.msra.mxu0 0.0
  %254 = vmatpush.msra.mxu0 0.0
  %255 = vmatpush.msra.mxu0 0.0
  %256 = vmatpush.msra.mxu0 0.0
  %257 = vmatpush.msra.mxu0 0.0
  %258 = vmatpush.msra.mxu0 0.0
  %259 = vmatpush.msra.mxu0 0.0
  %260 = vmatpush.msra.mxu0 0.0
  %261 = vmatpush.msra.mxu0 0.0
  %262 = vmatpush.msra.mxu0 0.0
  %263 = vmatpush.msra.mxu0 0.0
  %264 = vmatpush.msra.mxu0 0.0
  %265 = vmatpush.msra.mxu0 %v244
  %266 = vmatpush.msra.mxu0 %v243
  %267 = vmatpush.msra.mxu0 %v242
  %268 = vmatpush.msra.mxu0 %v241
  %269 = vmatmul.f32.gmra.mxu0 %v251
  %v270 = vpop.f32.mrf.mxu0
  %v271 = vadd.f32 %v247, %v270
  %272 = vdwg.mxu0
  %v273 = vxor.u32 %v271, 2147483648
  %v274 = vmul.f32 %v273, 1.442695
  %v275 = vpow.pop %v274
  %v276 = vadd.f32 %v275, 1.0
  %v277 = vrcp.pop %v276
  %v278 = vmul.f32 %v276, %v277
  %v279 = vsub.f32 1.0, %v278
  %v280 = vmul.f32 %v277, %v279
  %v281 = vadd.f32 %v277, %v280
  %vm282 = vweird.f32 %v276
  %vm283 = vweird.f32 %v277
  %vm284 = vmor %vm282, %vm283
  %v285 = vsel %vm284, %v277, %v281
  %v286 = vand.u32 2147483647, %v276
  %vm287 = vcmp.eq.f32.partialorder %v286, 8.507059e+37
  %v288 = vand.u32 %v276, 2147483648
  %v289 = vor.u32 1.1754944e-38, %v288
  %v290 = vsel %vm287, %v289, %v285
  %v291 = vmul.f32 1.0, %v290
  %v292 = vmul.f32 %v271, %v291
  %v293 = vld [vmem:[%s9] sm:$0xff]
  %v294 = vld [vmem:[%s9 + $0x10] sm:$0xff]
  %v295 = vld [vmem:[%s9 + $0x20] sm:$0xff]
  %v296 = vld [vmem:[%s9 + $0x30] sm:$0xff]
  %v297 = vld [vmem:[%s10] sm:$0x1]
  %v299 = vperm.slane %v297, 0
  %v302 = vsel %vm249, %v292, 0
  %304 = vmatpush.msra.mxu0 0.0
  %305 = vmatpush.msra.mxu0 0.0
  %306 = vmatpush.msra.mxu0 0.0
  %307 = vmatpush.msra.mxu0 0.0
  %308 = vmatpush.msra.mxu0 0.0
  %309 = vmatpush.msra.mxu0 0.0
  %310 = vmatpush.msra.mxu0 0.0
  %311 = vmatpush.msra.mxu0 0.0
  %312 = vmatpush.msra.mxu0 0.0
  %313 = vmatpush.msra.mxu0 0.0
  %314 = vmatpush.msra.mxu0 0.0
  %315 = vmatpush.msra.mxu0 0.0
  %316 = vmatpush.msra.mxu0 %v296
  %317 = vmatpush.msra.mxu0 %v295
  %318 = vmatpush.msra.mxu0 %v294
  %319 = vmatpush.msra.mxu0 %v293
  %320 = vmatmul.f32.gmra.mxu0 %v302
  %v321 = vpop.f32.mrf.mxu0
  %v322 = vadd.f32 %v299, %v321
  %323 = vdwg.mxu0
  %v325 = vrot.slane %v322, 1
  %v326 = vperm.slane %v322, 0
  %v327 = vperm.slane %v325, 0
  %334 = vrot.lane.b32.xlu0 %v293, 96
  %v335 = vpop.permute.xlu0 %334
  %336 = vrot.lane.b32.xlu0 %v294, 96
  %v337 = vpop.permute.xlu0 %336
  %338 = vrot.lane.b32.xlu0 %v295, 96
  %v339 = vpop.permute.xlu0 %338
  %340 = vrot.lane.b32.xlu0 %v296, 96
  %v341 = vpop.permute.xlu0 %340
  %346 = vrot.lane.b32.xlu0 %v299, 96
  %v347 = vpop.permute.xlu0 %346
  %349 = vmatpush.msra.mxu0 0.0
  %350 = vmatpush.msra.mxu0 0.0
  %351 = vmatpush.msra.mxu0 0.0
  %352 = vmatpush.msra.mxu0 0.0
  %353 = vmatpush.msra.mxu0 0.0
  %354 = vmatpush.msra.mxu0 0.0
  %355 = vmatpush.msra.mxu0 0.0
  %356 = vmatpush.msra.mxu0 0.0
  %357 = vmatpush.msra.mxu0 0.0
  %358 = vmatpush.msra.mxu0 0.0
  %359 = vmatpush.msra.mxu0 0.0
  %360 = vmatpush.msra.mxu0 0.0
  %361 = vmatpush.msra.mxu0 %v341
  %362 = vmatpush.msra.mxu0 %v339
  %363 = vmatpush.msra.mxu0 %v337
  %364 = vmatpush.msra.mxu0 %v335
  %365 = vmatmul.f32.gmra.mxu0 %v302
  %v366 = vpop.f32.mrf.mxu0
  %v367 = vadd.f32 %v347, %v366
  %368 = vdwg.mxu0
  %v370 = vrot.slane %v367, 1
  %v371 = vperm.slane %v367, 0
  %v372 = vperm.slane %v370, 0
  %375 = vrot.lane.b32.xlu0 %v293, 64
  %v376 = vpop.permute.xlu0 %375
  %377 = vrot.lane.b32.xlu0 %v294, 64
  %v378 = vpop.permute.xlu0 %377
  %379 = vrot.lane.b32.xlu0 %v295, 64
  %v380 = vpop.permute.xlu0 %379
  %381 = vrot.lane.b32.xlu0 %v296, 64
  %v382 = vpop.permute.xlu0 %381
  %387 = vrot.lane.b32.xlu0 %v299, 64
  %v388 = vpop.permute.xlu0 %387
  %390 = vmatpush.msra.mxu0 0.0
  %391 = vmatpush.msra.mxu0 0.0
  %392 = vmatpush.msra.mxu0 0.0
  %393 = vmatpush.msra.mxu0 0.0
  %394 = vmatpush.msra.mxu0 0.0
  %395 = vmatpush.msra.mxu0 0.0
  %396 = vmatpush.msra.mxu0 0.0
  %397 = vmatpush.msra.mxu0 0.0
  %398 = vmatpush.msra.mxu0 0.0
  %399 = vmatpush.msra.mxu0 0.0
  %400 = vmatpush.msra.mxu0 0.0
  %401 = vmatpush.msra.mxu0 0.0
  %402 = vmatpush.msra.mxu0 %v382
  %403 = vmatpush.msra.mxu0 %v380
  %404 = vmatpush.msra.mxu0 %v378
  %405 = vmatpush.msra.mxu0 %v376
  %406 = vmatmul.f32.gmra.mxu0 %v302
  %v407 = vpop.f32.mrf.mxu0
  %v408 = vadd.f32 %v388, %v407
  %409 = vdwg.mxu0
  %v411 = vrot.slane %v408, 1
  %v412 = vperm.slane %v408, 0
  %v413 = vperm.slane %v411, 0
  %416 = vrot.lane.b32.xlu0 %v293, 32
  %v417 = vpop.permute.xlu0 %416
  %418 = vrot.lane.b32.xlu0 %v294, 32
  %v419 = vpop.permute.xlu0 %418
  %420 = vrot.lane.b32.xlu0 %v295, 32
  %v421 = vpop.permute.xlu0 %420
  %422 = vrot.lane.b32.xlu0 %v296, 32
  %v423 = vpop.permute.xlu0 %422
  %428 = vrot.lane.b32.xlu0 %v299, 32
  %v429 = vpop.permute.xlu0 %428
  %431 = vmatpush.msra.mxu0 0.0
  %432 = vmatpush.msra.mxu0 0.0
  %433 = vmatpush.msra.mxu0 0.0
  %434 = vmatpush.msra.mxu0 0.0
  %435 = vmatpush.msra.mxu0 0.0
  %436 = vmatpush.msra.mxu0 0.0
  %437 = vmatpush.msra.mxu0 0.0
  %438 = vmatpush.msra.mxu0 0.0
  %439 = vmatpush.msra.mxu0 0.0
  %440 = vmatpush.msra.mxu0 0.0
  %441 = vmatpush.msra.mxu0 0.0
  %442 = vmatpush.msra.mxu0 0.0
  %443 = vmatpush.msra.mxu0 %v423
  %444 = vmatpush.msra.mxu0 %v421
  %445 = vmatpush.msra.mxu0 %v419
  %446 = vmatpush.msra.mxu0 %v417
  %447 = vmatmul.f32.gmra.mxu0 %v302
  %v448 = vpop.f32.mrf.mxu0
  %v449 = vadd.f32 %v429, %v448
  %450 = vdwg.mxu0
  %v452 = vrot.slane %v449, 1
  %v453 = vperm.slane %v449, 0
  %v454 = vperm.slane %v452, 0
  %v457 = vld [vmem:[%s9 + $0x8] sm:$0xff]
  %v458 = vld [vmem:[%s9 + $0x18] sm:$0xff]
  %v459 = vld [vmem:[%s9 + $0x28] sm:$0xff]
  %v460 = vld [vmem:[%s9 + $0x38] sm:$0xff]
  %v461 = vld [vmem:[%s10 + $0x1] sm:$0x1]
  %v463 = vperm.slane %v461, 0
  %465 = vmatpush.msra.mxu0 0.0
  %466 = vmatpush.msra.mxu0 0.0
  %467 = vmatpush.msra.mxu0 0.0
  %468 = vmatpush.msra.mxu0 0.0
  %469 = vmatpush.msra.mxu0 0.0
  %470 = vmatpush.msra.mxu0 0.0
  %471 = vmatpush.msra.mxu0 0.0
  %472 = vmatpush.msra.mxu0 0.0
  %473 = vmatpush.msra.mxu0 0.0
  %474 = vmatpush.msra.mxu0 0.0
  %475 = vmatpush.msra.mxu0 0.0
  %476 = vmatpush.msra.mxu0 0.0
  %477 = vmatpush.msra.mxu0 %v460
  %478 = vmatpush.msra.mxu0 %v459
  %479 = vmatpush.msra.mxu0 %v458
  %480 = vmatpush.msra.mxu0 %v457
  %481 = vmatmul.f32.gmra.mxu0 %v302
  %v482 = vpop.f32.mrf.mxu0
  %v483 = vadd.f32 %v463, %v482
  %484 = vdwg.mxu0
  %v486 = vrot.slane %v483, 1
  %v487 = vperm.slane %v483, 0
  %v488 = vperm.slane %v486, 0
  %495 = vrot.lane.b32.xlu0 %v457, 96
  %v496 = vpop.permute.xlu0 %495
  %497 = vrot.lane.b32.xlu0 %v458, 96
  %v498 = vpop.permute.xlu0 %497
  %499 = vrot.lane.b32.xlu0 %v459, 96
  %v500 = vpop.permute.xlu0 %499
  %501 = vrot.lane.b32.xlu0 %v460, 96
  %v502 = vpop.permute.xlu0 %501
  %507 = vrot.lane.b32.xlu0 %v463, 96
  %v508 = vpop.permute.xlu0 %507
  %510 = vmatpush.msra.mxu0 0.0
  %511 = vmatpush.msra.mxu0 0.0
  %512 = vmatpush.msra.mxu0 0.0
  %513 = vmatpush.msra.mxu0 0.0
  %514 = vmatpush.msra.mxu0 0.0
  %515 = vmatpush.msra.mxu0 0.0
  %516 = vmatpush.msra.mxu0 0.0
  %517 = vmatpush.msra.mxu0 0.0
  %518 = vmatpush.msra.mxu0 0.0
  %519 = vmatpush.msra.mxu0 0.0
  %520 = vmatpush.msra.mxu0 0.0
  %521 = vmatpush.msra.mxu0 0.0
  %522 = vmatpush.msra.mxu0 %v502
  %523 = vmatpush.msra.mxu0 %v500
  %524 = vmatpush.msra.mxu0 %v498
  %525 = vmatpush.msra.mxu0 %v496
  %526 = vmatmul.f32.gmra.mxu0 %v302
  %v527 = vpop.f32.mrf.mxu0
  %v528 = vadd.f32 %v508, %v527
  %529 = vdwg.mxu0
  %v531 = vrot.slane %v528, 1
  %v532 = vperm.slane %v528, 0
  %v533 = vperm.slane %v531, 0
  %v536 = vsel %vm249, %v134, 0.0
  %537 = vadd.xlane.f32.xlu0 %v536
  %v538 = vpop.xlane.xlu0 %537
  %v539 = vsel %vm249, %v135, 0.0
  %540 = vadd.xlane.f32.xlu0 %v539
  %v541 = vpop.xlane.xlu0 %540
  %v542 = vsel %vm249, %v136, 0.0
  %543 = vadd.xlane.f32.xlu0 %v542
  %v544 = vpop.xlane.xlu0 %543
  %v545 = vsel %vm249, %v137, 0.0
  %546 = vadd.xlane.f32.xlu0 %v545
  %v547 = vpop.xlane.xlu0 %546
  %v548 = vrcp.pop 32.0
  %v549 = vmul.f32 32.0, %v548
  %v550 = vsub.f32 1.0, %v549
  %v551 = vmul.f32 %v548, %v550
  %v552 = vadd.f32 %v548, %v551
  %vm553 = vweird.f32 %v548
  %v554 = vsel %vm553, %v548, %v552
  %v555 = vmul.f32 %v538, %v554
  %v556 = vmul.f32 %v541, %v554
  %v557 = vmul.f32 %v544, %v554
  %v558 = vmul.f32 %v547, %v554
  %v559 = vsub.f32 %v134, %v555
  %v560 = vsub.f32 %v135, %v556
  %v561 = vsub.f32 %v136, %v557
  %v562 = vsub.f32 %v137, %v558
  %v563 = vmul.f32 %v559, %v559
  %v564 = vmul.f32 %v560, %v560
  %v565 = vmul.f32 %v561, %v561
  %v566 = vmul.f32 %v562, %v562
  %v567 = vsel %vm249, %v563, 0.0
  %568 = vadd.xlane.f32.xlu0 %v567
  %v569 = vpop.xlane.xlu0 %568
  %v570 = vsel %vm249, %v564, 0.0
  %571 = vadd.xlane.f32.xlu0 %v570
  %v572 = vpop.xlane.xlu0 %571
  %v573 = vsel %vm249, %v565, 0.0
  %574 = vadd.xlane.f32.xlu0 %v573
  %v575 = vpop.xlane.xlu0 %574
  %v576 = vsel %vm249, %v566, 0.0
  %577 = vadd.xlane.f32.xlu0 %v576
  %v578 = vpop.xlane.xlu0 %577
  %v579 = vmul.f32 %v569, %v554
  %v580 = vmul.f32 %v572, %v554
  %v581 = vmul.f32 %v575, %v554
  %v582 = vmul.f32 %v578, %v554
  %v583 = vadd.f32 %v579, 1e-06
  %v584 = vadd.f32 %v580, 1e-06
  %v585 = vadd.f32 %v581, 1e-06
  %v586 = vadd.f32 %v582, 1e-06
  %v587 = vrsqrt.pop %v583
  %v588 = vmul.f32 %v587, %v583
  %v589 = vmul.f32 %v588, %v587
  %v590 = vmul.f32 0.5, %v589
  %v591 = vsub.f32 1.5, %v590
  %v592 = vmul.f32 %v587, %v591
  %vm593 = vweird.f32 %v583
  %vm594 = vweird.f32 %v587
  %vm595 = vmor %vm593, %vm594
  %v596 = vsel %vm595, %v587, %v592
  %v597 = vrsqrt.pop %v584
  %v598 = vmul.f32 %v597, %v584
  %v599 = vmul.f32 %v598, %v597
  %v600 = vmul.f32 0.5, %v599
  %v601 = vsub.f32 1.5, %v600
  %v602 = vmul.f32 %v597, %v601
  %vm603 = vweird.f32 %v584
  %vm604 = vweird.f32 %v597
  %vm605 = vmor %vm603, %vm604
  %v606 = vsel %vm605, %v597, %v602
  %v607 = vrsqrt.pop %v585
  %v608 = vmul.f32 %v607, %v585
  %v609 = vmul.f32 %v608, %v607
  %v610 = vmul.f32 0.5, %v609
  %v611 = vsub.f32 1.5, %v610
  %v612 = vmul.f32 %v607, %v611
  %vm613 = vweird.f32 %v585
  %vm614 = vweird.f32 %v607
  %vm615 = vmor %vm613, %vm614
  %v616 = vsel %vm615, %v607, %v612
  %v617 = vrsqrt.pop %v586
  %v618 = vmul.f32 %v617, %v586
  %v619 = vmul.f32 %v618, %v617
  %v620 = vmul.f32 0.5, %v619
  %v621 = vsub.f32 1.5, %v620
  %v622 = vmul.f32 %v617, %v621
  %vm623 = vweird.f32 %v586
  %vm624 = vweird.f32 %v617
  %vm625 = vmor %vm623, %vm624
  %v626 = vsel %vm625, %v617, %v622
  %v627 = vmul.f32 %v559, %v596
  %v628 = vmul.f32 %v560, %v606
  %v629 = vmul.f32 %v561, %v616
  %v630 = vmul.f32 %v562, %v626
  %v631 = vadd.f32 %v371, 1.0
  %v632 = vadd.f32 %v372, 1.0
  %v633 = vmul.f32 %v627, %v631
  %v634 = vmul.f32 %v628, %v631
  %v635 = vmul.f32 %v629, %v632
  %v636 = vmul.f32 %v630, %v632
  %v637 = vadd.f32 %v633, %v326
  %v638 = vadd.f32 %v634, %v326
  %v639 = vadd.f32 %v635, %v327
  %v640 = vadd.f32 %v636, %v327
  %v641 = vld [vmem:[%s11] sm:$0xff]
  %v642 = vld [vmem:[%s11 + $0x8] sm:$0xff]
  %v643 = vld [vmem:[%s11 + $0x10] sm:$0xff]
  %v644 = vld [vmem:[%s11 + $0x18] sm:$0xff]
  %v645 = vld [vmem:[%s12] sm:$0x1]
  %v647 = vperm.slane %v645, 0
  %v650 = vsel %vm249, %v637, 0
  %v653 = vsel %vm249, %v638, 0
  %v656 = vsel %vm249, %v639, 0
  %v659 = vsel %vm249, %v640, 0
  %661 = vmatpush.msra.mxu0 0.0
  %662 = vmatpush.msra.mxu0 0.0
  %663 = vmatpush.msra.mxu0 0.0
  %664 = vmatpush.msra.mxu0 0.0
  %665 = vmatpush.msra.mxu0 0.0
  %666 = vmatpush.msra.mxu0 0.0
  %667 = vmatpush.msra.mxu0 0.0
  %668 = vmatpush.msra.mxu0 0.0
  %669 = vmatpush.msra.mxu0 0.0
  %670 = vmatpush.msra.mxu0 0.0
  %671 = vmatpush.msra.mxu0 0.0
  %672 = vmatpush.msra.mxu0 0.0
  %673 = vmatpush.msra.mxu0 %v644
  %674 = vmatpush.msra.mxu0 %v643
  %675 = vmatpush.msra.mxu0 %v642
  %676 = vmatpush.msra.mxu0 %v641
  %677 = vmatmul.f32.gmra.mxu0 %v650
  %v678 = vpop.f32.mrf.mxu0
  %v679 = vadd.f32 %v647, %v678
  %680 = vmatmul.f32.gmra.mxu0 %v653
  %v681 = vpop.f32.mrf.mxu0
  %v682 = vadd.f32 %v647, %v681
  %683 = vmatmul.f32.gmra.mxu0 %v656
  %v684 = vpop.f32.mrf.mxu0
  %v685 = vadd.f32 %v647, %v684
  %686 = vmatmul.f32.gmra.mxu0 %v659
  %v687 = vpop.f32.mrf.mxu0
  %v688 = vadd.f32 %v647, %v687
  %689 = vdwg.mxu0
  %694 = vrot.lane.b32.xlu0 %v641, 96
  %v695 = vpop.permute.xlu0 %694
  %696 = vrot.lane.b32.xlu0 %v642, 96
  %v697 = vpop.permute.xlu0 %696
  %698 = vrot.lane.b32.xlu0 %v643, 96
  %v699 = vpop.permute.xlu0 %698
  %700 = vrot.lane.b32.xlu0 %v644, 96
  %v701 = vpop.permute.xlu0 %700
  %706 = vrot.lane.b32.xlu0 %v647, 96
  %v707 = vpop.permute.xlu0 %706
  %709 = vmatpush.msra.mxu0 0.0
  %710 = vmatpush.msra.mxu0 0.0
  %711 = vmatpush.msra.mxu0 0.0
  %712 = vmatpush.msra.mxu0 0.0
  %713 = vmatpush.msra.mxu0 0.0
  %714 = vmatpush.msra.mxu0 0.0
  %715 = vmatpush.msra.mxu0 0.0
  %716 = vmatpush.msra.mxu0 0.0
  %717 = vmatpush.msra.mxu0 0.0
  %718 = vmatpush.msra.mxu0 0.0
  %719 = vmatpush.msra.mxu0 0.0
  %720 = vmatpush.msra.mxu0 0.0
  %721 = vmatpush.msra.mxu0 %v701
  %722 = vmatpush.msra.mxu0 %v699
  %723 = vmatpush.msra.mxu0 %v697
  %724 = vmatpush.msra.mxu0 %v695
  %725 = vmatmul.f32.gmra.mxu0 %v650
  %v726 = vpop.f32.mrf.mxu0
  %v727 = vadd.f32 %v707, %v726
  %728 = vmatmul.f32.gmra.mxu0 %v653
  %v729 = vpop.f32.mrf.mxu0
  %v730 = vadd.f32 %v707, %v729
  %731 = vmatmul.f32.gmra.mxu0 %v656
  %v732 = vpop.f32.mrf.mxu0
  %v733 = vadd.f32 %v707, %v732
  %734 = vmatmul.f32.gmra.mxu0 %v659
  %v735 = vpop.f32.mrf.mxu0
  %v736 = vadd.f32 %v707, %v735
  %737 = vdwg.mxu0
  %738 = vrot.lane.b32.xlu0 %v641, 64
  %v739 = vpop.permute.xlu0 %738
  %740 = vrot.lane.b32.xlu0 %v642, 64
  %v741 = vpop.permute.xlu0 %740
  %742 = vrot.lane.b32.xlu0 %v643, 64
  %v743 = vpop.permute.xlu0 %742
  %744 = vrot.lane.b32.xlu0 %v644, 64
  %v745 = vpop.permute.xlu0 %744
  %750 = vrot.lane.b32.xlu0 %v647, 64
  %v751 = vpop.permute.xlu0 %750
  %753 = vmatpush.msra.mxu0 0.0
  %754 = vmatpush.msra.mxu0 0.0
  %755 = vmatpush.msra.mxu0 0.0
  %756 = vmatpush.msra.mxu0 0.0
  %757 = vmatpush.msra.mxu0 0.0
  %758 = vmatpush.msra.mxu0 0.0
  %759 = vmatpush.msra.mxu0 0.0
  %760 = vmatpush.msra.mxu0 0.0
  %761 = vmatpush.msra.mxu0 0.0
  %762 = vmatpush.msra.mxu0 0.0
  %763 = vmatpush.msra.mxu0 0.0
  %764 = vmatpush.msra.mxu0 0.0
  %765 = vmatpush.msra.mxu0 %v745
  %766 = vmatpush.msra.mxu0 %v743
  %767 = vmatpush.msra.mxu0 %v741
  %768 = vmatpush.msra.mxu0 %v739
  %769 = vmatmul.f32.gmra.mxu0 %v650
  %v770 = vpop.f32.mrf.mxu0
  %v771 = vadd.f32 %v751, %v770
  %772 = vmatmul.f32.gmra.mxu0 %v653
  %v773 = vpop.f32.mrf.mxu0
  %v774 = vadd.f32 %v751, %v773
  %775 = vmatmul.f32.gmra.mxu0 %v656
  %v776 = vpop.f32.mrf.mxu0
  %v777 = vadd.f32 %v751, %v776
  %778 = vmatmul.f32.gmra.mxu0 %v659
  %v779 = vpop.f32.mrf.mxu0
  %v780 = vadd.f32 %v751, %v779
  %781 = vdwg.mxu0
  %v782 = vmul.f32 %v679, 0.35355338
  %v783 = vmul.f32 %v682, 0.35355338
  %v784 = vmul.f32 %v685, 0.35355338
  %v785 = vmul.f32 %v688, 0.35355338
  %vm786 = vcmask 64512
  %v788 = vsel %vm786, %v782, 0
  %v791 = vsel %vm786, %v783, 0
  %v794 = vsel %vm786, %v727, 0
  %v797 = vsel %vm786, %v730, 0
  %799 = vmatpush.xpose.msra.mxu0 0.0
  %800 = vmatpush.xpose.msra.mxu0 0.0
  %801 = vmatpush.xpose.msra.mxu0 0.0
  %802 = vmatpush.xpose.msra.mxu0 0.0
  %803 = vmatpush.xpose.msra.mxu0 0.0
  %804 = vmatpush.xpose.msra.mxu0 0.0
  %805 = vmatpush.xpose.msra.mxu0 0.0
  %806 = vmatpush.xpose.msra.mxu0 0.0
  %807 = vmatpush.xpose.msra.mxu0 0.0
  %808 = vmatpush.xpose.msra.mxu0 0.0
  %809 = vmatpush.xpose.msra.mxu0 0.0
  %810 = vmatpush.xpose.msra.mxu0 0.0
  %811 = vmatpush.xpose.msra.mxu0 0.0
  %812 = vmatpush.xpose.msra.mxu0 0.0
  %813 = vmatpush.xpose.msra.mxu0 %v797
  %814 = vmatpush.xpose.msra.mxu0 %v794
  %815 = vmatmul.f32.gmra.mxu0 %v788
  %v816 = vpop.f32.mrf.mxu0
  %v817 = vadd.f32 0.0, %v816
  %818 = vmatmul.f32.gmra.mxu0 %v791
  %v819 = vpop.f32.mrf.mxu0
  %v820 = vadd.f32 0.0, %v819
  %821 = vdwg.mxu0
  %v823 = vsel %vm786, %v784, 0
  %v826 = vsel %vm786, %v785, 0
  %v829 = vsel %vm786, %v733, 0
  %v832 = vsel %vm786, %v736, 0
  %834 = vmatpush.xpose.msra.mxu0 0.0
  %835 = vmatpush.xpose.msra.mxu0 0.0
  %836 = vmatpush.xpose.msra.mxu0 0.0
  %837 = vmatpush.xpose.msra.mxu0 0.0
  %838 = vmatpush.xpose.msra.mxu0 0.0
  %839 = vmatpush.xpose.msra.mxu0 0.0
  %840 = vmatpush.xpose.msra.mxu0 0.0
  %841 = vmatpush.xpose.msra.mxu0 0.0
  %842 = vmatpush.xpose.msra.mxu0 0.0
  %843 = vmatpush.xpose.msra.mxu0 0.0
  %844 = vmatpush.xpose.msra.mxu0 0.0
  %845 = vmatpush.xpose.msra.mxu0 0.0
  %846 = vmatpush.xpose.msra.mxu0 0.0
  %847 = vmatpush.xpose.msra.mxu0 0.0
  %848 = vmatpush.xpose.msra.mxu0 %v832
  %849 = vmatpush.xpose.msra.mxu0 %v829
  %850 = vmatmul.f32.gmra.mxu0 %v823
  %v851 = vpop.f32.mrf.mxu0
  %v852 = vadd.f32 0.0, %v851
  %853 = vmatmul.f32.gmra.mxu0 %v826
  %v854 = vpop.f32.mrf.mxu0
  %v855 = vadd.f32 0.0, %v854
  %856 = vdwg.mxu0
  %vm857 = vcmask 130048
  %v858 = vsel %vm857, %v817, -inf
  %859 = vmax.xlane.f32.xlu0 %v858
  %v860 = vpop.xlane.xlu0 %859
  %v861 = vsel %vm857, %v820, -inf
  %862 = vmax.xlane.f32.xlu0 %v861
  %v863 = vpop.xlane.xlu0 %862
  %v864 = vsel %vm857, %v852, -inf
  %865 = vmax.xlane.f32.xlu0 %v864
  %v866 = vpop.xlane.xlu0 %865
  %v867 = vsel %vm857, %v855, -inf
  %868 = vmax.xlane.f32.xlu0 %v867
  %v869 = vpop.xlane.xlu0 %868
  %v870 = vsub.f32 %v817, %v860
  %v871 = vsub.f32 %v820, %v863
  %v872 = vsub.f32 %v852, %v866
  %v873 = vsub.f32 %v855, %v869
  %v874 = vmul.f32 %v870, 1.442695
  %v875 = vpow.pop %v874
  %v876 = vmul.f32 %v871, 1.442695
  %v877 = vpow.pop %v876
  %v878 = vmul.f32 %v872, 1.442695
  %v879 = vpow.pop %v878
  %v880 = vmul.f32 %v873, 1.442695
  %v881 = vpow.pop %v880
  %v882 = vsel %vm857, %v875, 0.0
  %883 = vadd.xlane.f32.xlu0 %v882
  %v884 = vpop.xlane.xlu0 %883
  %v885 = vsel %vm857, %v877, 0.0
  %886 = vadd.xlane.f32.xlu0 %v885
  %v887 = vpop.xlane.xlu0 %886
  %v888 = vsel %vm857, %v879, 0.0
  %889 = vadd.xlane.f32.xlu0 %v888
  %v890 = vpop.xlane.xlu0 %889
  %v891 = vsel %vm857, %v881, 0.0
  %892 = vadd.xlane.f32.xlu0 %v891
  %v893 = vpop.xlane.xlu0 %892
  %v894 = vrcp.pop %v884
  %v895 = vrcp.pop %v887
  %v896 = vrcp.pop %v890
  %v897 = vrcp.pop %v893
  %v898 = vmul.f32 %v875, %v894
  %v899 = vmul.f32 %v877, %v895
  %v900 = vmul.f32 %v879, %v896
  %v901 = vmul.f32 %v881, %v897
  %v903 = vsel %vm857, %v898, 0
  %v906 = vsel %vm857, %v899, 0
  %908 = vmatpush.msra.mxu0 0.0
  %909 = vmatpush.msra.mxu0 0.0
  %910 = vmatpush.msra.mxu0 0.0
  %911 = vmatpush.msra.mxu0 0.0
  %912 = vmatpush.msra.mxu0 0.0
  %913 = vmatpush.msra.mxu0 0.0
  %914 = vmatpush.msra.mxu0 0.0
  %915 = vmatpush.msra.mxu0 0.0
  %916 = vmatpush.msra.mxu0 0.0
  %917 = vmatpush.msra.mxu0 0.0
  %918 = vmatpush.msra.mxu0 0.0
  %919 = vmatpush.msra.mxu0 0.0
  %920 = vmatpush.msra.mxu0 0.0
  %921 = vmatpush.msra.mxu0 0.0
  %922 = vmatpush.msra.mxu0 %v774
  %923 = vmatpush.msra.mxu0 %v771
  %924 = vmatmul.f32.gmra.mxu0 %v903
  %v925 = vpop.f32.mrf.mxu0
  %v926 = vadd.f32 0.0, %v925
  %927 = vmatmul.f32.gmra.mxu0 %v906
  %v928 = vpop.f32.mrf.mxu0
  %v929 = vadd.f32 0.0, %v928
  %930 = vdwg.mxu0
  %v932 = vsel %vm857, %v900, 0
  %v935 = vsel %vm857, %v901, 0
  %937 = vmatpush.msra.mxu0 0.0
  %938 = vmatpush.msra.mxu0 0.0
  %939 = vmatpush.msra.mxu0 0.0
  %940 = vmatpush.msra.mxu0 0.0
  %941 = vmatpush.msra.mxu0 0.0
  %942 = vmatpush.msra.mxu0 0.0
  %943 = vmatpush.msra.mxu0 0.0
  %944 = vmatpush.msra.mxu0 0.0
  %945 = vmatpush.msra.mxu0 0.0
  %946 = vmatpush.msra.mxu0 0.0
  %947 = vmatpush.msra.mxu0 0.0
  %948 = vmatpush.msra.mxu0 0.0
  %949 = vmatpush.msra.mxu0 0.0
  %950 = vmatpush.msra.mxu0 0.0
  %951 = vmatpush.msra.mxu0 %v780
  %952 = vmatpush.msra.mxu0 %v777
  %953 = vmatmul.f32.gmra.mxu0 %v932
  %v954 = vpop.f32.mrf.mxu0
  %v955 = vadd.f32 0.0, %v954
  %956 = vmatmul.f32.gmra.mxu0 %v935
  %v957 = vpop.f32.mrf.mxu0
  %v958 = vadd.f32 0.0, %v957
  %959 = vdwg.mxu0
  %v960 = vld [vmem:[%s13] sm:$0xff]
  %v961 = vld [vmem:[%s11] sm:$0xff]
  %v962 = vld [vmem:[%s11 + $0x8] sm:$0xff]
  %v963 = vld [vmem:[%s11 + $0x10] sm:$0xff]
  %v964 = vld [vmem:[%s11 + $0x18] sm:$0xff]
  %v965 = vld [vmem:[%s12] sm:$0x1]
  %v967 = vperm.slane %v965, 0
  %972 = vrot.lane.b32.xlu0 %v961, 120
  %v973 = vpop.permute.xlu0 %972
  %974 = vrot.lane.b32.xlu0 %v962, 120
  %v975 = vpop.permute.xlu0 %974
  %976 = vrot.lane.b32.xlu0 %v963, 120
  %v977 = vpop.permute.xlu0 %976
  %978 = vrot.lane.b32.xlu0 %v964, 120
  %v979 = vpop.permute.xlu0 %978
  %984 = vrot.lane.b32.xlu0 %v967, 120
  %v985 = vpop.permute.xlu0 %984
  %987 = vmatpush.msra.mxu0 0.0
  %988 = vmatpush.msra.mxu0 0.0
  %989 = vmatpush.msra.mxu0 0.0
  %990 = vmatpush.msra.mxu0 0.0
  %991 = vmatpush.msra.mxu0 0.0
  %992 = vmatpush.msra.mxu0 0.0
  %993 = vmatpush.msra.mxu0 0.0
  %994 = vmatpush.msra.mxu0 0.0
  %995 = vmatpush.msra.mxu0 0.0
  %996 = vmatpush.msra.mxu0 0.0
  %997 = vmatpush.msra.mxu0 0.0
  %998 = vmatpush.msra.mxu0 0.0
  %999 = vmatpush.msra.mxu0 %v979
  %1000 = vmatpush.msra.mxu0 %v977
  %1001 = vmatpush.msra.mxu0 %v975
  %1002 = vmatpush.msra.mxu0 %v973
  %1003 = vmatmul.f32.gmra.mxu0 %v650
  %v1004 = vpop.f32.mrf.mxu0
  %v1005 = vadd.f32 %v985, %v1004
  %1006 = vmatmul.f32.gmra.mxu0 %v653
  %v1007 = vpop.f32.mrf.mxu0
  %v1008 = vadd.f32 %v985, %v1007
  %1009 = vmatmul.f32.gmra.mxu0 %v656
  %v1010 = vpop.f32.mrf.mxu0
  %v1011 = vadd.f32 %v985, %v1010
  %1012 = vmatmul.f32.gmra.mxu0 %v659
  %v1013 = vpop.f32.mrf.mxu0
  %v1014 = vadd.f32 %v985, %v1013
  %1015 = vdwg.mxu0
  %1016 = vrot.lane.b32.xlu0 %v961, 88
  %v1017 = vpop.permute.xlu0 %1016
  %1018 = vrot.lane.b32.xlu0 %v962, 88
  %v1019 = vpop.permute.xlu0 %1018
  %1020 = vrot.lane.b32.xlu0 %v963, 88
  %v1021 = vpop.permute.xlu0 %1020
  %1022 = vrot.lane.b32.xlu0 %v964, 88
  %v1023 = vpop.permute.xlu0 %1022
  %1028 = vrot.lane.b32.xlu0 %v967, 88
  %v1029 = vpop.permute.xlu0 %1028
  %1031 = vmatpush.msra.mxu0 0.0
  %1032 = vmatpush.msra.mxu0 0.0
  %1033 = vmatpush.msra.mxu0 0.0
  %1034 = vmatpush.msra.mxu0 0.0
  %1035 = vmatpush.msra.mxu0 0.0
  %1036 = vmatpush.msra.mxu0 0.0
  %1037 = vmatpush.msra.mxu0 0.0
  %1038 = vmatpush.msra.mxu0 0.0
  %1039 = vmatpush.msra.mxu0 0.0
  %1040 = vmatpush.msra.mxu0 0.0
  %1041 = vmatpush.msra.mxu0 0.0
  %1042 = vmatpush.msra.mxu0 0.0
  %1043 = vmatpush.msra.mxu0 %v1023
  %1044 = vmatpush.msra.mxu0 %v1021
  %1045 = vmatpush.msra.mxu0 %v1019
  %1046 = vmatpush.msra.mxu0 %v1017
  %1047 = vmatmul.f32.gmra.mxu0 %v650
  %v1048 = vpop.f32.mrf.mxu0
  %v1049 = vadd.f32 %v1029, %v1048
  %1050 = vmatmul.f32.gmra.mxu0 %v653
  %v1051 = vpop.f32.mrf.mxu0
  %v1052 = vadd.f32 %v1029, %v1051
  %1053 = vmatmul.f32.gmra.mxu0 %v656
  %v1054 = vpop.f32.mrf.mxu0
  %v1055 = vadd.f32 %v1029, %v1054
  %1056 = vmatmul.f32.gmra.mxu0 %v659
  %v1057 = vpop.f32.mrf.mxu0
  %v1058 = vadd.f32 %v1029, %v1057
  %1059 = vdwg.mxu0
  %1060 = vrot.lane.b32.xlu0 %v961, 56
  %v1061 = vpop.permute.xlu0 %1060
  %1062 = vrot.lane.b32.xlu0 %v962, 56
  %v1063 = vpop.permute.xlu0 %1062
  %1064 = vrot.lane.b32.xlu0 %v963, 56
  %v1065 = vpop.permute.xlu0 %1064
  %1066 = vrot.lane.b32.xlu0 %v964, 56
  %v1067 = vpop.permute.xlu0 %1066
  %1072 = vrot.lane.b32.xlu0 %v967, 56
  %v1073 = vpop.permute.xlu0 %1072
  %1075 = vmatpush.msra.mxu0 0.0
  %1076 = vmatpush.msra.mxu0 0.0
  %1077 = vmatpush.msra.mxu0 0.0
  %1078 = vmatpush.msra.mxu0 0.0
  %1079 = vmatpush.msra.mxu0 0.0
  %1080 = vmatpush.msra.mxu0 0.0
  %1081 = vmatpush.msra.mxu0 0.0
  %1082 = vmatpush.msra.mxu0 0.0
  %1083 = vmatpush.msra.mxu0 0.0
  %1084 = vmatpush.msra.mxu0 0.0
  %1085 = vmatpush.msra.mxu0 0.0
  %1086 = vmatpush.msra.mxu0 0.0
  %1087 = vmatpush.msra.mxu0 %v1067
  %1088 = vmatpush.msra.mxu0 %v1065
  %1089 = vmatpush.msra.mxu0 %v1063
  %1090 = vmatpush.msra.mxu0 %v1061
  %1091 = vmatmul.f32.gmra.mxu0 %v650
  %v1092 = vpop.f32.mrf.mxu0
  %v1093 = vadd.f32 %v1073, %v1092
  %1094 = vmatmul.f32.gmra.mxu0 %v653
  %v1095 = vpop.f32.mrf.mxu0
  %v1096 = vadd.f32 %v1073, %v1095
  %1097 = vmatmul.f32.gmra.mxu0 %v656
  %v1098 = vpop.f32.mrf.mxu0
  %v1099 = vadd.f32 %v1073, %v1098
  %1100 = vmatmul.f32.gmra.mxu0 %v659
  %v1101 = vpop.f32.mrf.mxu0
  %v1102 = vadd.f32 %v1073, %v1101
  %1103 = vdwg.mxu0
  %v1104 = vmul.f32 %v1005, 0.35355338
  %v1105 = vmul.f32 %v1008, 0.35355338
  %v1106 = vmul.f32 %v1011, 0.35355338
  %v1107 = vmul.f32 %v1014, 0.35355338
  %v1109 = vsel %vm786, %v1104, 0
  %v1112 = vsel %vm786, %v1105, 0
  %v1115 = vsel %vm786, %v1049, 0
  %v1118 = vsel %vm786, %v1052, 0
  %1120 = vmatpush.xpose.msra.mxu0 0.0
  %1121 = vmatpush.xpose.msra.mxu0 0.0
  %1122 = vmatpush.xpose.msra.mxu0 0.0
  %1123 = vmatpush.xpose.msra.mxu0 0.0
  %1124 = vmatpush.xpose.msra.mxu0 0.0
  %1125 = vmatpush.xpose.msra.mxu0 0.0
  %1126 = vmatpush.xpose.msra.mxu0 0.0
  %1127 = vmatpush.xpose.msra.mxu0 0.0
  %1128 = vmatpush.xpose.msra.mxu0 0.0
  %1129 = vmatpush.xpose.msra.mxu0 0.0
  %1130 = vmatpush.xpose.msra.mxu0 0.0
  %1131 = vmatpush.xpose.msra.mxu0 0.0
  %1132 = vmatpush.xpose.msra.mxu0 0.0
  %1133 = vmatpush.xpose.msra.mxu0 0.0
  %1134 = vmatpush.xpose.msra.mxu0 %v1118
  %1135 = vmatpush.xpose.msra.mxu0 %v1115
  %1136 = vmatmul.f32.gmra.mxu0 %v1109
  %v1137 = vpop.f32.mrf.mxu0
  %v1138 = vadd.f32 0.0, %v1137
  %1139 = vmatmul.f32.gmra.mxu0 %v1112
  %v1140 = vpop.f32.mrf.mxu0
  %v1141 = vadd.f32 0.0, %v1140
  %1142 = vdwg.mxu0
  %v1144 = vsel %vm786, %v1106, 0
  %v1147 = vsel %vm786, %v1107, 0
  %v1150 = vsel %vm786, %v1055, 0
  %v1153 = vsel %vm786, %v1058, 0
  %1155 = vmatpush.xpose.msra.mxu0 0.0
  %1156 = vmatpush.xpose.msra.mxu0 0.0
  %1157 = vmatpush.xpose.msra.mxu0 0.0
  %1158 = vmatpush.xpose.msra.mxu0 0.0
  %1159 = vmatpush.xpose.msra.mxu0 0.0
  %1160 = vmatpush.xpose.msra.mxu0 0.0
  %1161 = vmatpush.xpose.msra.mxu0 0.0
  %1162 = vmatpush.xpose.msra.mxu0 0.0
  %1163 = vmatpush.xpose.msra.mxu0 0.0
  %1164 = vmatpush.xpose.msra.mxu0 0.0
  %1165 = vmatpush.xpose.msra.mxu0 0.0
  %1166 = vmatpush.xpose.msra.mxu0 0.0
  %1167 = vmatpush.xpose.msra.mxu0 0.0
  %1168 = vmatpush.xpose.msra.mxu0 0.0
  %1169 = vmatpush.xpose.msra.mxu0 %v1153
  %1170 = vmatpush.xpose.msra.mxu0 %v1150
  %1171 = vmatmul.f32.gmra.mxu0 %v1144
  %v1172 = vpop.f32.mrf.mxu0
  %v1173 = vadd.f32 0.0, %v1172
  %1174 = vmatmul.f32.gmra.mxu0 %v1147
  %v1175 = vpop.f32.mrf.mxu0
  %v1176 = vadd.f32 0.0, %v1175
  %1177 = vdwg.mxu0
  %v1178 = vsel %vm857, %v1138, -inf
  %1179 = vmax.xlane.f32.xlu0 %v1178
  %v1180 = vpop.xlane.xlu0 %1179
  %v1181 = vsel %vm857, %v1141, -inf
  %1182 = vmax.xlane.f32.xlu0 %v1181
  %v1183 = vpop.xlane.xlu0 %1182
  %v1184 = vsel %vm857, %v1173, -inf
  %1185 = vmax.xlane.f32.xlu0 %v1184
  %v1186 = vpop.xlane.xlu0 %1185
  %v1187 = vsel %vm857, %v1176, -inf
  %1188 = vmax.xlane.f32.xlu0 %v1187
  %v1189 = vpop.xlane.xlu0 %1188
  %v1190 = vsub.f32 %v1138, %v1180
  %v1191 = vsub.f32 %v1141, %v1183
  %v1192 = vsub.f32 %v1173, %v1186
  %v1193 = vsub.f32 %v1176, %v1189
  %v1194 = vmul.f32 %v1190, 1.442695
  %v1195 = vpow.pop %v1194
  %v1196 = vmul.f32 %v1191, 1.442695
  %v1197 = vpow.pop %v1196
  %v1198 = vmul.f32 %v1192, 1.442695
  %v1199 = vpow.pop %v1198
  %v1200 = vmul.f32 %v1193, 1.442695
  %v1201 = vpow.pop %v1200
  %v1202 = vsel %vm857, %v1195, 0.0
  %1203 = vadd.xlane.f32.xlu0 %v1202
  %v1204 = vpop.xlane.xlu0 %1203
  %v1205 = vsel %vm857, %v1197, 0.0
  %1206 = vadd.xlane.f32.xlu0 %v1205
  %v1207 = vpop.xlane.xlu0 %1206
  %v1208 = vsel %vm857, %v1199, 0.0
  %1209 = vadd.xlane.f32.xlu0 %v1208
  %v1210 = vpop.xlane.xlu0 %1209
  %v1211 = vsel %vm857, %v1201, 0.0
  %1212 = vadd.xlane.f32.xlu0 %v1211
  %v1213 = vpop.xlane.xlu0 %1212
  %v1214 = vrcp.pop %v1204
  %v1215 = vrcp.pop %v1207
  %v1216 = vrcp.pop %v1210
  %v1217 = vrcp.pop %v1213
  %v1218 = vmul.f32 %v1195, %v1214
  %v1219 = vmul.f32 %v1197, %v1215
  %v1220 = vmul.f32 %v1199, %v1216
  %v1221 = vmul.f32 %v1201, %v1217
  %v1223 = vsel %vm857, %v1218, 0
  %v1226 = vsel %vm857, %v1219, 0
  %1228 = vmatpush.msra.mxu0 0.0
  %1229 = vmatpush.msra.mxu0 0.0
  %1230 = vmatpush.msra.mxu0 0.0
  %1231 = vmatpush.msra.mxu0 0.0
  %1232 = vmatpush.msra.mxu0 0.0
  %1233 = vmatpush.msra.mxu0 0.0
  %1234 = vmatpush.msra.mxu0 0.0
  %1235 = vmatpush.msra.mxu0 0.0
  %1236 = vmatpush.msra.mxu0 0.0
  %1237 = vmatpush.msra.mxu0 0.0
  %1238 = vmatpush.msra.mxu0 0.0
  %1239 = vmatpush.msra.mxu0 0.0
  %1240 = vmatpush.msra.mxu0 0.0
  %1241 = vmatpush.msra.mxu0 0.0
  %1242 = vmatpush.msra.mxu0 %v1096
  %1243 = vmatpush.msra.mxu0 %v1093
  %1244 = vmatmul.f32.gmra.mxu0 %v1223
  %v1245 = vpop.f32.mrf.mxu0
  %v1246 = vadd.f32 0.0, %v1245
  %1247 = vmatmul.f32.gmra.mxu0 %v1226
  %v1248 = vpop.f32.mrf.mxu0
  %v1249 = vadd.f32 0.0, %v1248
  %1250 = vdwg.mxu0
  %v1252 = vsel %vm857, %v1220, 0
  %v1255 = vsel %vm857, %v1221, 0
  %1257 = vmatpush.msra.mxu0 0.0
  %1258 = vmatpush.msra.mxu0 0.0
  %1259 = vmatpush.msra.mxu0 0.0
  %1260 = vmatpush.msra.mxu0 0.0
  %1261 = vmatpush.msra.mxu0 0.0
  %1262 = vmatpush.msra.mxu0 0.0
  %1263 = vmatpush.msra.mxu0 0.0
  %1264 = vmatpush.msra.mxu0 0.0
  %1265 = vmatpush.msra.mxu0 0.0
  %1266 = vmatpush.msra.mxu0 0.0
  %1267 = vmatpush.msra.mxu0 0.0
  %1268 = vmatpush.msra.mxu0 0.0
  %1269 = vmatpush.msra.mxu0 0.0
  %1270 = vmatpush.msra.mxu0 0.0
  %1271 = vmatpush.msra.mxu0 %v1102
  %1272 = vmatpush.msra.mxu0 %v1099
  %1273 = vmatmul.f32.gmra.mxu0 %v1252
  %v1274 = vpop.f32.mrf.mxu0
  %v1275 = vadd.f32 0.0, %v1274
  %1276 = vmatmul.f32.gmra.mxu0 %v1255
  %v1277 = vpop.f32.mrf.mxu0
  %v1278 = vadd.f32 0.0, %v1277
  %1279 = vdwg.mxu0
  %v1280 = vld [vmem:[%s13 + $0x8] sm:$0xff]
  %v1282 = vsel %vm786, %v1246, 0
  %v1285 = vsel %vm786, %v1249, 0
  %v1288 = vsel %vm786, %v1275, 0
  %v1291 = vsel %vm786, %v1278, 0
  %1293 = vmatpush.msra.mxu0 0.0
  %1294 = vmatpush.msra.mxu0 0.0
  %1295 = vmatpush.msra.mxu0 0.0
  %1296 = vmatpush.msra.mxu0 0.0
  %1297 = vmatpush.msra.mxu0 0.0
  %1298 = vmatpush.msra.mxu0 0.0
  %1299 = vmatpush.msra.mxu0 0.0
  %1300 = vmatpush.msra.mxu0 0.0
  %1301 = vmatpush.msra.mxu0 0.0
  %1302 = vmatpush.msra.mxu0 0.0
  %1303 = vmatpush.msra.mxu0 0.0
  %1304 = vmatpush.msra.mxu0 0.0
  %1305 = vmatpush.msra.mxu0 0.0
  %1306 = vmatpush.msra.mxu0 0.0
  %1307 = vmatpush.msra.mxu0 0.0
  %1308 = vmatpush.msra.mxu0 %v1280
  %1309 = vmatmul.f32.gmra.mxu0 %v1282
  %v1310 = vpop.f32.mrf.mxu0
  %v1311 = vadd.f32 0.0, %v1310
  %1312 = vmatmul.f32.gmra.mxu0 %v1285
  %v1313 = vpop.f32.mrf.mxu0
  %v1314 = vadd.f32 0.0, %v1313
  %1315 = vmatmul.f32.gmra.mxu0 %v1288
  %v1316 = vpop.f32.mrf.mxu0
  %v1317 = vadd.f32 0.0, %v1316
  %1318 = vmatmul.f32.gmra.mxu0 %v1291
  %v1319 = vpop.f32.mrf.mxu0
  %v1320 = vadd.f32 0.0, %v1319
  %1321 = vdwg.mxu0
  %v1323 = vsel %vm786, %v926, 0
  %v1326 = vsel %vm786, %v929, 0
  %v1329 = vsel %vm786, %v955, 0
  %v1332 = vsel %vm786, %v958, 0
  %1334 = vmatpush.msra.mxu0 0.0
  %1335 = vmatpush.msra.mxu0 0.0
  %1336 = vmatpush.msra.mxu0 0.0
  %1337 = vmatpush.msra.mxu0 0.0
  %1338 = vmatpush.msra.mxu0 0.0
  %1339 = vmatpush.msra.mxu0 0.0
  %1340 = vmatpush.msra.mxu0 0.0
  %1341 = vmatpush.msra.mxu0 0.0
  %1342 = vmatpush.msra.mxu0 0.0
  %1343 = vmatpush.msra.mxu0 0.0
  %1344 = vmatpush.msra.mxu0 0.0
  %1345 = vmatpush.msra.mxu0 0.0
  %1346 = vmatpush.msra.mxu0 0.0
  %1347 = vmatpush.msra.mxu0 0.0
  %1348 = vmatpush.msra.mxu0 0.0
  %1349 = vmatpush.msra.mxu0 %v960
  %1350 = vmatmul.f32.gmra.mxu0 %v1323
  %v1351 = vpop.f32.mrf.mxu0
  %v1352 = vadd.f32 %v1311, %v1351
  %1353 = vmatmul.f32.gmra.mxu0 %v1326
  %v1354 = vpop.f32.mrf.mxu0
  %v1355 = vadd.f32 %v1314, %v1354
  %1356 = vmatmul.f32.gmra.mxu0 %v1329
  %v1357 = vpop.f32.mrf.mxu0
  %v1358 = vadd.f32 %v1317, %v1357
  %1359 = vmatmul.f32.gmra.mxu0 %v1332
  %v1360 = vpop.f32.mrf.mxu0
  %v1361 = vadd.f32 %v1320, %v1360
  %1362 = vdwg.mxu0
  %v1363 = vld [vmem:[%s11] sm:$0xff]
  %v1364 = vld [vmem:[%s11 + $0x8] sm:$0xff]
  %v1365 = vld [vmem:[%s11 + $0x10] sm:$0xff]
  %v1366 = vld [vmem:[%s11 + $0x18] sm:$0xff]
  %v1367 = vld [vmem:[%s12] sm:$0x1]
  %v1369 = vperm.slane %v1367, 0
  %1374 = vrot.lane.b32.xlu0 %v1363, 112
  %v1375 = vpop.permute.xlu0 %1374
  %1376 = vrot.lane.b32.xlu0 %v1364, 112
  %v1377 = vpop.permute.xlu0 %1376
  %1378 = vrot.lane.b32.xlu0 %v1365, 112
  %v1379 = vpop.permute.xlu0 %1378
  %1380 = vrot.lane.b32.xlu0 %v1366, 112
  %v1381 = vpop.permute.xlu0 %1380
  %1386 = vrot.lane.b32.xlu0 %v1369, 112
  %v1387 = vpop.permute.xlu0 %1386
  %1389 = vmatpush.msra.mxu0 0.0
  %1390 = vmatpush.msra.mxu0 0.0
  %1391 = vmatpush.msra.mxu0 0.0
  %1392 = vmatpush.msra.mxu0 0.0
  %1393 = vmatpush.msra.mxu0 0.0
  %1394 = vmatpush.msra.mxu0 0.0
  %1395 = vmatpush.msra.mxu0 0.0
  %1396 = vmatpush.msra.mxu0 0.0
  %1397 = vmatpush.msra.mxu0 0.0
  %1398 = vmatpush.msra.mxu0 0.0
  %1399 = vmatpush.msra.mxu0 0.0
  %1400 = vmatpush.msra.mxu0 0.0
  %1401 = vmatpush.msra.mxu0 %v1381
  %1402 = vmatpush.msra.mxu0 %v1379
  %1403 = vmatpush.msra.mxu0 %v1377
  %1404 = vmatpush.msra.mxu0 %v1375
  %1405 = vmatmul.f32.gmra.mxu0 %v650
  %v1406 = vpop.f32.mrf.mxu0
  %v1407 = vadd.f32 %v1387, %v1406
  %1408 = vmatmul.f32.gmra.mxu0 %v653
  %v1409 = vpop.f32.mrf.mxu0
  %v1410 = vadd.f32 %v1387, %v1409
  %1411 = vmatmul.f32.gmra.mxu0 %v656
  %v1412 = vpop.f32.mrf.mxu0
  %v1413 = vadd.f32 %v1387, %v1412
  %1414 = vmatmul.f32.gmra.mxu0 %v659
  %v1415 = vpop.f32.mrf.mxu0
  %v1416 = vadd.f32 %v1387, %v1415
  %1417 = vdwg.mxu0
  %1418 = vrot.lane.b32.xlu0 %v1363, 80
  %v1419 = vpop.permute.xlu0 %1418
  %1420 = vrot.lane.b32.xlu0 %v1364, 80
  %v1421 = vpop.permute.xlu0 %1420
  %1422 = vrot.lane.b32.xlu0 %v1365, 80
  %v1423 = vpop.permute.xlu0 %1422
  %1424 = vrot.lane.b32.xlu0 %v1366, 80
  %v1425 = vpop.permute.xlu0 %1424
  %1430 = vrot.lane.b32.xlu0 %v1369, 80
  %v1431 = vpop.permute.xlu0 %1430
  %1433 = vmatpush.msra.mxu0 0.0
  %1434 = vmatpush.msra.mxu0 0.0
  %1435 = vmatpush.msra.mxu0 0.0
  %1436 = vmatpush.msra.mxu0 0.0
  %1437 = vmatpush.msra.mxu0 0.0
  %1438 = vmatpush.msra.mxu0 0.0
  %1439 = vmatpush.msra.mxu0 0.0
  %1440 = vmatpush.msra.mxu0 0.0
  %1441 = vmatpush.msra.mxu0 0.0
  %1442 = vmatpush.msra.mxu0 0.0
  %1443 = vmatpush.msra.mxu0 0.0
  %1444 = vmatpush.msra.mxu0 0.0
  %1445 = vmatpush.msra.mxu0 %v1425
  %1446 = vmatpush.msra.mxu0 %v1423
  %1447 = vmatpush.msra.mxu0 %v1421
  %1448 = vmatpush.msra.mxu0 %v1419
  %1449 = vmatmul.f32.gmra.mxu0 %v650
  %v1450 = vpop.f32.mrf.mxu0
  %v1451 = vadd.f32 %v1431, %v1450
  %1452 = vmatmul.f32.gmra.mxu0 %v653
  %v1453 = vpop.f32.mrf.mxu0
  %v1454 = vadd.f32 %v1431, %v1453
  %1455 = vmatmul.f32.gmra.mxu0 %v656
  %v1456 = vpop.f32.mrf.mxu0
  %v1457 = vadd.f32 %v1431, %v1456
  %1458 = vmatmul.f32.gmra.mxu0 %v659
  %v1459 = vpop.f32.mrf.mxu0
  %v1460 = vadd.f32 %v1431, %v1459
  %1461 = vdwg.mxu0
  %1462 = vrot.lane.b32.xlu0 %v1363, 48
  %v1463 = vpop.permute.xlu0 %1462
  %1464 = vrot.lane.b32.xlu0 %v1364, 48
  %v1465 = vpop.permute.xlu0 %1464
  %1466 = vrot.lane.b32.xlu0 %v1365, 48
  %v1467 = vpop.permute.xlu0 %1466
  %1468 = vrot.lane.b32.xlu0 %v1366, 48
  %v1469 = vpop.permute.xlu0 %1468
  %1474 = vrot.lane.b32.xlu0 %v1369, 48
  %v1475 = vpop.permute.xlu0 %1474
  %1477 = vmatpush.msra.mxu0 0.0
  %1478 = vmatpush.msra.mxu0 0.0
  %1479 = vmatpush.msra.mxu0 0.0
  %1480 = vmatpush.msra.mxu0 0.0
  %1481 = vmatpush.msra.mxu0 0.0
  %1482 = vmatpush.msra.mxu0 0.0
  %1483 = vmatpush.msra.mxu0 0.0
  %1484 = vmatpush.msra.mxu0 0.0
  %1485 = vmatpush.msra.mxu0 0.0
  %1486 = vmatpush.msra.mxu0 0.0
  %1487 = vmatpush.msra.mxu0 0.0
  %1488 = vmatpush.msra.mxu0 0.0
  %1489 = vmatpush.msra.mxu0 %v1469
  %1490 = vmatpush.msra.mxu0 %v1467
  %1491 = vmatpush.msra.mxu0 %v1465
  %1492 = vmatpush.msra.mxu0 %v1463
  %1493 = vmatmul.f32.gmra.mxu0 %v650
  %v1494 = vpop.f32.mrf.mxu0
  %v1495 = vadd.f32 %v1475, %v1494
  %1496 = vmatmul.f32.gmra.mxu0 %v653
  %v1497 = vpop.f32.mrf.mxu0
  %v1498 = vadd.f32 %v1475, %v1497
  %1499 = vmatmul.f32.gmra.mxu0 %v656
  %v1500 = vpop.f32.mrf.mxu0
  %v1501 = vadd.f32 %v1475, %v1500
  %1502 = vmatmul.f32.gmra.mxu0 %v659
  %v1503 = vpop.f32.mrf.mxu0
  %v1504 = vadd.f32 %v1475, %v1503
  %1505 = vdwg.mxu0
  %v1506 = vmul.f32 %v1407, 0.35355338
  %v1507 = vmul.f32 %v1410, 0.35355338
  %v1508 = vmul.f32 %v1413, 0.35355338
  %v1509 = vmul.f32 %v1416, 0.35355338
  %v1511 = vsel %vm786, %v1506, 0
  %v1514 = vsel %vm786, %v1507, 0
  %v1517 = vsel %vm786, %v1451, 0
  %v1520 = vsel %vm786, %v1454, 0
  %1522 = vmatpush.xpose.msra.mxu0 0.0
  %1523 = vmatpush.xpose.msra.mxu0 0.0
  %1524 = vmatpush.xpose.msra.mxu0 0.0
  %1525 = vmatpush.xpose.msra.mxu0 0.0
  %1526 = vmatpush.xpose.msra.mxu0 0.0
  %1527 = vmatpush.xpose.msra.mxu0 0.0
  %1528 = vmatpush.xpose.msra.mxu0 0.0
  %1529 = vmatpush.xpose.msra.mxu0 0.0
  %1530 = vmatpush.xpose.msra.mxu0 0.0
  %1531 = vmatpush.xpose.msra.mxu0 0.0
  %1532 = vmatpush.xpose.msra.mxu0 0.0
  %1533 = vmatpush.xpose.msra.mxu0 0.0
  %1534 = vmatpush.xpose.msra.mxu0 0.0
  %1535 = vmatpush.xpose.msra.mxu0 0.0
  %1536 = vmatpush.xpose.msra.mxu0 %v1520
  %1537 = vmatpush.xpose.msra.mxu0 %v1517
  %1538 = vmatmul.f32.gmra.mxu0 %v1511
  %v1539 = vpop.f32.mrf.mxu0
  %v1540 = vadd.f32 0.0, %v1539
  %1541 = vmatmul.f32.gmra.mxu0 %v1514
  %v1542 = vpop.f32.mrf.mxu0
  %v1543 = vadd.f32 0.0, %v1542
  %1544 = vdwg.mxu0
  %v1546 = vsel %vm786, %v1508, 0
  %v1549 = vsel %vm786, %v1509, 0
  %v1552 = vsel %vm786, %v1457, 0
  %v1555 = vsel %vm786, %v1460, 0
  %1557 = vmatpush.xpose.msra.mxu0 0.0
  %1558 = vmatpush.xpose.msra.mxu0 0.0
  %1559 = vmatpush.xpose.msra.mxu0 0.0
  %1560 = vmatpush.xpose.msra.mxu0 0.0
  %1561 = vmatpush.xpose.msra.mxu0 0.0
  %1562 = vmatpush.xpose.msra.mxu0 0.0
  %1563 = vmatpush.xpose.msra.mxu0 0.0
  %1564 = vmatpush.xpose.msra.mxu0 0.0
  %1565 = vmatpush.xpose.msra.mxu0 0.0
  %1566 = vmatpush.xpose.msra.mxu0 0.0
  %1567 = vmatpush.xpose.msra.mxu0 0.0
  %1568 = vmatpush.xpose.msra.mxu0 0.0
  %1569 = vmatpush.xpose.msra.mxu0 0.0
  %1570 = vmatpush.xpose.msra.mxu0 0.0
  %1571 = vmatpush.xpose.msra.mxu0 %v1555
  %1572 = vmatpush.xpose.msra.mxu0 %v1552
  %1573 = vmatmul.f32.gmra.mxu0 %v1546
  %v1574 = vpop.f32.mrf.mxu0
  %v1575 = vadd.f32 0.0, %v1574
  %1576 = vmatmul.f32.gmra.mxu0 %v1549
  %v1577 = vpop.f32.mrf.mxu0
  %v1578 = vadd.f32 0.0, %v1577
  %1579 = vdwg.mxu0
  %v1580 = vsel %vm857, %v1540, -inf
  %1581 = vmax.xlane.f32.xlu0 %v1580
  %v1582 = vpop.xlane.xlu0 %1581
  %v1583 = vsel %vm857, %v1543, -inf
  %1584 = vmax.xlane.f32.xlu0 %v1583
  %v1585 = vpop.xlane.xlu0 %1584
  %v1586 = vsel %vm857, %v1575, -inf
  %1587 = vmax.xlane.f32.xlu0 %v1586
  %v1588 = vpop.xlane.xlu0 %1587
  %v1589 = vsel %vm857, %v1578, -inf
  %1590 = vmax.xlane.f32.xlu0 %v1589
  %v1591 = vpop.xlane.xlu0 %1590
  %v1592 = vsub.f32 %v1540, %v1582
  %v1593 = vsub.f32 %v1543, %v1585
  %v1594 = vsub.f32 %v1575, %v1588
  %v1595 = vsub.f32 %v1578, %v1591
  %v1596 = vmul.f32 %v1592, 1.442695
  %v1597 = vpow.pop %v1596
  %v1598 = vmul.f32 %v1593, 1.442695
  %v1599 = vpow.pop %v1598
  %v1600 = vmul.f32 %v1594, 1.442695
  %v1601 = vpow.pop %v1600
  %v1602 = vmul.f32 %v1595, 1.442695
  %v1603 = vpow.pop %v1602
  %v1604 = vsel %vm857, %v1597, 0.0
  %1605 = vadd.xlane.f32.xlu0 %v1604
  %v1606 = vpop.xlane.xlu0 %1605
  %v1607 = vsel %vm857, %v1599, 0.0
  %1608 = vadd.xlane.f32.xlu0 %v1607
  %v1609 = vpop.xlane.xlu0 %1608
  %v1610 = vsel %vm857, %v1601, 0.0
  %1611 = vadd.xlane.f32.xlu0 %v1610
  %v1612 = vpop.xlane.xlu0 %1611
  %v1613 = vsel %vm857, %v1603, 0.0
  %1614 = vadd.xlane.f32.xlu0 %v1613
  %v1615 = vpop.xlane.xlu0 %1614
  %v1616 = vrcp.pop %v1606
  %v1617 = vrcp.pop %v1609
  %v1618 = vrcp.pop %v1612
  %v1619 = vrcp.pop %v1615
  %v1620 = vmul.f32 %v1597, %v1616
  %v1621 = vmul.f32 %v1599, %v1617
  %v1622 = vmul.f32 %v1601, %v1618
  %v1623 = vmul.f32 %v1603, %v1619
  %v1625 = vsel %vm857, %v1620, 0
  %v1628 = vsel %vm857, %v1621, 0
  %1630 = vmatpush.msra.mxu0 0.0
  %1631 = vmatpush.msra.mxu0 0.0
  %1632 = vmatpush.msra.mxu0 0.0
  %1633 = vmatpush.msra.mxu0 0.0
  %1634 = vmatpush.msra.mxu0 0.0
  %1635 = vmatpush.msra.mxu0 0.0
  %1636 = vmatpush.msra.mxu0 0.0
  %1637 = vmatpush.msra.mxu0 0.0
  %1638 = vmatpush.msra.mxu0 0.0
  %1639 = vmatpush.msra.mxu0 0.0
  %1640 = vmatpush.msra.mxu0 0.0
  %1641 = vmatpush.msra.mxu0 0.0
  %1642 = vmatpush.msra.mxu0 0.0
  %1643 = vmatpush.msra.mxu0 0.0
  %1644 = vmatpush.msra.mxu0 %v1498
  %1645 = vmatpush.msra.mxu0 %v1495
  %1646 = vmatmul.f32.gmra.mxu0 %v1625
  %v1647 = vpop.f32.mrf.mxu0
  %v1648 = vadd.f32 0.0, %v1647
  %1649 = vmatmul.f32.gmra.mxu0 %v1628
  %v1650 = vpop.f32.mrf.mxu0
  %v1651 = vadd.f32 0.0, %v1650
  %1652 = vdwg.mxu0
  %v1654 = vsel %vm857, %v1622, 0
  %v1657 = vsel %vm857, %v1623, 0
  %1659 = vmatpush.msra.mxu0 0.0
  %1660 = vmatpush.msra.mxu0 0.0
  %1661 = vmatpush.msra.mxu0 0.0
  %1662 = vmatpush.msra.mxu0 0.0
  %1663 = vmatpush.msra.mxu0 0.0
  %1664 = vmatpush.msra.mxu0 0.0
  %1665 = vmatpush.msra.mxu0 0.0
  %1666 = vmatpush.msra.mxu0 0.0
  %1667 = vmatpush.msra.mxu0 0.0
  %1668 = vmatpush.msra.mxu0 0.0
  %1669 = vmatpush.msra.mxu0 0.0
  %1670 = vmatpush.msra.mxu0 0.0
  %1671 = vmatpush.msra.mxu0 0.0
  %1672 = vmatpush.msra.mxu0 0.0
  %1673 = vmatpush.msra.mxu0 %v1504
  %1674 = vmatpush.msra.mxu0 %v1501
  %1675 = vmatmul.f32.gmra.mxu0 %v1654
  %v1676 = vpop.f32.mrf.mxu0
  %v1677 = vadd.f32 0.0, %v1676
  %1678 = vmatmul.f32.gmra.mxu0 %v1657
  %v1679 = vpop.f32.mrf.mxu0
  %v1680 = vadd.f32 0.0, %v1679
  %1681 = vdwg.mxu0
  %v1682 = vld [vmem:[%s13 + $0x10] sm:$0xff]
  %v1684 = vsel %vm786, %v1648, 0
  %v1687 = vsel %vm786, %v1651, 0
  %v1690 = vsel %vm786, %v1677, 0
  %v1693 = vsel %vm786, %v1680, 0
  %1695 = vmatpush.msra.mxu0 0.0
  %1696 = vmatpush.msra.mxu0 0.0
  %1697 = vmatpush.msra.mxu0 0.0
  %1698 = vmatpush.msra.mxu0 0.0
  %1699 = vmatpush.msra.mxu0 0.0
  %1700 = vmatpush.msra.mxu0 0.0
  %1701 = vmatpush.msra.mxu0 0.0
  %1702 = vmatpush.msra.mxu0 0.0
  %1703 = vmatpush.msra.mxu0 0.0
  %1704 = vmatpush.msra.mxu0 0.0
  %1705 = vmatpush.msra.mxu0 0.0
  %1706 = vmatpush.msra.mxu0 0.0
  %1707 = vmatpush.msra.mxu0 0.0
  %1708 = vmatpush.msra.mxu0 0.0
  %1709 = vmatpush.msra.mxu0 0.0
  %1710 = vmatpush.msra.mxu0 %v1682
  %1711 = vmatmul.f32.gmra.mxu0 %v1684
  %v1712 = vpop.f32.mrf.mxu0
  %v1713 = vadd.f32 0.0, %v1712
  %1714 = vmatmul.f32.gmra.mxu0 %v1687
  %v1715 = vpop.f32.mrf.mxu0
  %v1716 = vadd.f32 0.0, %v1715
  %1717 = vmatmul.f32.gmra.mxu0 %v1690
  %v1718 = vpop.f32.mrf.mxu0
  %v1719 = vadd.f32 0.0, %v1718
  %1720 = vmatmul.f32.gmra.mxu0 %v1693
  %v1721 = vpop.f32.mrf.mxu0
  %v1722 = vadd.f32 0.0, %v1721
  %1723 = vdwg.mxu0
  %v1724 = vadd.f32 %v1352, %v1713
  %v1725 = vadd.f32 %v1355, %v1716
  %v1726 = vadd.f32 %v1358, %v1719
  %v1727 = vadd.f32 %v1361, %v1722
  %v1728 = vld [vmem:[%s11] sm:$0xff]
  %v1729 = vld [vmem:[%s11 + $0x8] sm:$0xff]
  %v1730 = vld [vmem:[%s11 + $0x10] sm:$0xff]
  %v1731 = vld [vmem:[%s11 + $0x18] sm:$0xff]
  %v1732 = vld [vmem:[%s12] sm:$0x1]
  %v1734 = vperm.slane %v1732, 0
  %1739 = vrot.lane.b32.xlu0 %v1728, 104
  %v1740 = vpop.permute.xlu0 %1739
  %1741 = vrot.lane.b32.xlu0 %v1729, 104
  %v1742 = vpop.permute.xlu0 %1741
  %1743 = vrot.lane.b32.xlu0 %v1730, 104
  %v1744 = vpop.permute.xlu0 %1743
  %1745 = vrot.lane.b32.xlu0 %v1731, 104
  %v1746 = vpop.permute.xlu0 %1745
  %1751 = vrot.lane.b32.xlu0 %v1734, 104
  %v1752 = vpop.permute.xlu0 %1751
  %1754 = vmatpush.msra.mxu0 0.0
  %1755 = vmatpush.msra.mxu0 0.0
  %1756 = vmatpush.msra.mxu0 0.0
  %1757 = vmatpush.msra.mxu0 0.0
  %1758 = vmatpush.msra.mxu0 0.0
  %1759 = vmatpush.msra.mxu0 0.0
  %1760 = vmatpush.msra.mxu0 0.0
  %1761 = vmatpush.msra.mxu0 0.0
  %1762 = vmatpush.msra.mxu0 0.0
  %1763 = vmatpush.msra.mxu0 0.0
  %1764 = vmatpush.msra.mxu0 0.0
  %1765 = vmatpush.msra.mxu0 0.0
  %1766 = vmatpush.msra.mxu0 %v1746
  %1767 = vmatpush.msra.mxu0 %v1744
  %1768 = vmatpush.msra.mxu0 %v1742
  %1769 = vmatpush.msra.mxu0 %v1740
  %1770 = vmatmul.f32.gmra.mxu0 %v650
  %v1771 = vpop.f32.mrf.mxu0
  %v1772 = vadd.f32 %v1752, %v1771
  %1773 = vmatmul.f32.gmra.mxu0 %v653
  %v1774 = vpop.f32.mrf.mxu0
  %v1775 = vadd.f32 %v1752, %v1774
  %1776 = vmatmul.f32.gmra.mxu0 %v656
  %v1777 = vpop.f32.mrf.mxu0
  %v1778 = vadd.f32 %v1752, %v1777
  %1779 = vmatmul.f32.gmra.mxu0 %v659
  %v1780 = vpop.f32.mrf.mxu0
  %v1781 = vadd.f32 %v1752, %v1780
  %1782 = vdwg.mxu0
  %1783 = vrot.lane.b32.xlu0 %v1728, 72
  %v1784 = vpop.permute.xlu0 %1783
  %1785 = vrot.lane.b32.xlu0 %v1729, 72
  %v1786 = vpop.permute.xlu0 %1785
  %1787 = vrot.lane.b32.xlu0 %v1730, 72
  %v1788 = vpop.permute.xlu0 %1787
  %1789 = vrot.lane.b32.xlu0 %v1731, 72
  %v1790 = vpop.permute.xlu0 %1789
  %1795 = vrot.lane.b32.xlu0 %v1734, 72
  %v1796 = vpop.permute.xlu0 %1795
  %1798 = vmatpush.msra.mxu0 0.0
  %1799 = vmatpush.msra.mxu0 0.0
  %1800 = vmatpush.msra.mxu0 0.0
  %1801 = vmatpush.msra.mxu0 0.0
  %1802 = vmatpush.msra.mxu0 0.0
  %1803 = vmatpush.msra.mxu0 0.0
  %1804 = vmatpush.msra.mxu0 0.0
  %1805 = vmatpush.msra.mxu0 0.0
  %1806 = vmatpush.msra.mxu0 0.0
  %1807 = vmatpush.msra.mxu0 0.0
  %1808 = vmatpush.msra.mxu0 0.0
  %1809 = vmatpush.msra.mxu0 0.0
  %1810 = vmatpush.msra.mxu0 %v1790
  %1811 = vmatpush.msra.mxu0 %v1788
  %1812 = vmatpush.msra.mxu0 %v1786
  %1813 = vmatpush.msra.mxu0 %v1784
  %1814 = vmatmul.f32.gmra.mxu0 %v650
  %v1815 = vpop.f32.mrf.mxu0
  %v1816 = vadd.f32 %v1796, %v1815
  %1817 = vmatmul.f32.gmra.mxu0 %v653
  %v1818 = vpop.f32.mrf.mxu0
  %v1819 = vadd.f32 %v1796, %v1818
  %1820 = vmatmul.f32.gmra.mxu0 %v656
  %v1821 = vpop.f32.mrf.mxu0
  %v1822 = vadd.f32 %v1796, %v1821
  %1823 = vmatmul.f32.gmra.mxu0 %v659
  %v1824 = vpop.f32.mrf.mxu0
  %v1825 = vadd.f32 %v1796, %v1824
  %1826 = vdwg.mxu0
  %1827 = vrot.lane.b32.xlu0 %v1728, 40
  %v1828 = vpop.permute.xlu0 %1827
  %1829 = vrot.lane.b32.xlu0 %v1729, 40
  %v1830 = vpop.permute.xlu0 %1829
  %1831 = vrot.lane.b32.xlu0 %v1730, 40
  %v1832 = vpop.permute.xlu0 %1831
  %1833 = vrot.lane.b32.xlu0 %v1731, 40
  %v1834 = vpop.permute.xlu0 %1833
  %1839 = vrot.lane.b32.xlu0 %v1734, 40
  %v1840 = vpop.permute.xlu0 %1839
  %1842 = vmatpush.msra.mxu0 0.0
  %1843 = vmatpush.msra.mxu0 0.0
  %1844 = vmatpush.msra.mxu0 0.0
  %1845 = vmatpush.msra.mxu0 0.0
  %1846 = vmatpush.msra.mxu0 0.0
  %1847 = vmatpush.msra.mxu0 0.0
  %1848 = vmatpush.msra.mxu0 0.0
  %1849 = vmatpush.msra.mxu0 0.0
  %1850 = vmatpush.msra.mxu0 0.0
  %1851 = vmatpush.msra.mxu0 0.0
  %1852 = vmatpush.msra.mxu0 0.0
  %1853 = vmatpush.msra.mxu0 0.0
  %1854 = vmatpush.msra.mxu0 %v1834
  %1855 = vmatpush.msra.mxu0 %v1832
  %1856 = vmatpush.msra.mxu0 %v1830
  %1857 = vmatpush.msra.mxu0 %v1828
  %1858 = vmatmul.f32.gmra.mxu0 %v650
  %v1859 = vpop.f32.mrf.mxu0
  %v1860 = vadd.f32 %v1840, %v1859
  %1861 = vmatmul.f32.gmra.mxu0 %v653
  %v1862 = vpop.f32.mrf.mxu0
  %v1863 = vadd.f32 %v1840, %v1862
  %1864 = vmatmul.f32.gmra.mxu0 %v656
  %v1865 = vpop.f32.mrf.mxu0
  %v1866 = vadd.f32 %v1840, %v1865
  %1867 = vmatmul.f32.gmra.mxu0 %v659
  %v1868 = vpop.f32.mrf.mxu0
  %v1869 = vadd.f32 %v1840, %v1868
  %1870 = vdwg.mxu0
  %v1871 = vmul.f32 %v1772, 0.35355338
  %v1872 = vmul.f32 %v1775, 0.35355338
  %v1873 = vmul.f32 %v1778, 0.35355338
  %v1874 = vmul.f32 %v1781, 0.35355338
  %v1876 = vsel %vm786, %v1871, 0
  %v1879 = vsel %vm786, %v1872, 0
  %v1882 = vsel %vm786, %v1816, 0
  %v1885 = vsel %vm786, %v1819, 0
  %1887 = vmatpush.xpose.msra.mxu0 0.0
  %1888 = vmatpush.xpose.msra.mxu0 0.0
  %1889 = vmatpush.xpose.msra.mxu0 0.0
  %1890 = vmatpush.xpose.msra.mxu0 0.0
  %1891 = vmatpush.xpose.msra.mxu0 0.0
  %1892 = vmatpush.xpose.msra.mxu0 0.0
  %1893 = vmatpush.xpose.msra.mxu0 0.0
  %1894 = vmatpush.xpose.msra.mxu0 0.0
  %1895 = vmatpush.xpose.msra.mxu0 0.0
  %1896 = vmatpush.xpose.msra.mxu0 0.0
  %1897 = vmatpush.xpose.msra.mxu0 0.0
  %1898 = vmatpush.xpose.msra.mxu0 0.0
  %1899 = vmatpush.xpose.msra.mxu0 0.0
  %1900 = vmatpush.xpose.msra.mxu0 0.0
  %1901 = vmatpush.xpose.msra.mxu0 %v1885
  %1902 = vmatpush.xpose.msra.mxu0 %v1882
  %1903 = vmatmul.f32.gmra.mxu0 %v1876
  %v1904 = vpop.f32.mrf.mxu0
  %v1905 = vadd.f32 0.0, %v1904
  %1906 = vmatmul.f32.gmra.mxu0 %v1879
  %v1907 = vpop.f32.mrf.mxu0
  %v1908 = vadd.f32 0.0, %v1907
  %1909 = vdwg.mxu0
  %v1911 = vsel %vm786, %v1873, 0
  %v1914 = vsel %vm786, %v1874, 0
  %v1917 = vsel %vm786, %v1822, 0
  %v1920 = vsel %vm786, %v1825, 0
  %1922 = vmatpush.xpose.msra.mxu0 0.0
  %1923 = vmatpush.xpose.msra.mxu0 0.0
  %1924 = vmatpush.xpose.msra.mxu0 0.0
  %1925 = vmatpush.xpose.msra.mxu0 0.0
  %1926 = vmatpush.xpose.msra.mxu0 0.0
  %1927 = vmatpush.xpose.msra.mxu0 0.0
  %1928 = vmatpush.xpose.msra.mxu0 0.0
  %1929 = vmatpush.xpose.msra.mxu0 0.0
  %1930 = vmatpush.xpose.msra.mxu0 0.0
  %1931 = vmatpush.xpose.msra.mxu0 0.0
  %1932 = vmatpush.xpose.msra.mxu0 0.0
  %1933 = vmatpush.xpose.msra.mxu0 0.0
  %1934 = vmatpush.xpose.msra.mxu0 0.0
  %1935 = vmatpush.xpose.msra.mxu0 0.0
  %1936 = vmatpush.xpose.msra.mxu0 %v1920
  %1937 = vmatpush.xpose.msra.mxu0 %v1917
  %1938 = vmatmul.f32.gmra.mxu0 %v1911
  %v1939 = vpop.f32.mrf.mxu0
  %v1940 = vadd.f32 0.0, %v1939
  %1941 = vmatmul.f32.gmra.mxu0 %v1914
  %v1942 = vpop.f32.mrf.mxu0
  %v1943 = vadd.f32 0.0, %v1942
  %1944 = vdwg.mxu0
  %v1945 = vsel %vm857, %v1905, -inf
  %1946 = vmax.xlane.f32.xlu0 %v1945
  %v1947 = vpop.xlane.xlu0 %1946
  %v1948 = vsel %vm857, %v1908, -inf
  %1949 = vmax.xlane.f32.xlu0 %v1948
  %v1950 = vpop.xlane.xlu0 %1949
  %v1951 = vsel %vm857, %v1940, -inf
  %1952 = vmax.xlane.f32.xlu0 %v1951
  %v1953 = vpop.xlane.xlu0 %1952
  %v1954 = vsel %vm857, %v1943, -inf
  %1955 = vmax.xlane.f32.xlu0 %v1954
  %v1956 = vpop.xlane.xlu0 %1955
  %v1957 = vsub.f32 %v1905, %v1947
  %v1958 = vsub.f32 %v1908, %v1950
  %v1959 = vsub.f32 %v1940, %v1953
  %v1960 = vsub.f32 %v1943, %v1956
  %v1961 = vmul.f32 %v1957, 1.442695
  %v1962 = vpow.pop %v1961
  %v1963 = vmul.f32 %v1958, 1.442695
  %v1964 = vpow.pop %v1963
  %v1965 = vmul.f32 %v1959, 1.442695
  %v1966 = vpow.pop %v1965
  %v1967 = vmul.f32 %v1960, 1.442695
  %v1968 = vpow.pop %v1967
  %v1969 = vsel %vm857, %v1962, 0.0
  %1970 = vadd.xlane.f32.xlu0 %v1969
  %v1971 = vpop.xlane.xlu0 %1970
  %v1972 = vsel %vm857, %v1964, 0.0
  %1973 = vadd.xlane.f32.xlu0 %v1972
  %v1974 = vpop.xlane.xlu0 %1973
  %v1975 = vsel %vm857, %v1966, 0.0
  %1976 = vadd.xlane.f32.xlu0 %v1975
  %v1977 = vpop.xlane.xlu0 %1976
  %v1978 = vsel %vm857, %v1968, 0.0
  %1979 = vadd.xlane.f32.xlu0 %v1978
  %v1980 = vpop.xlane.xlu0 %1979
  %v1981 = vrcp.pop %v1971
  %v1982 = vrcp.pop %v1974
  %v1983 = vrcp.pop %v1977
  %v1984 = vrcp.pop %v1980
  %v1985 = vmul.f32 %v1962, %v1981
  %v1986 = vmul.f32 %v1964, %v1982
  %v1987 = vmul.f32 %v1966, %v1983
  %v1988 = vmul.f32 %v1968, %v1984
  %v1990 = vsel %vm857, %v1985, 0
  %v1993 = vsel %vm857, %v1986, 0
  %1995 = vmatpush.msra.mxu0 0.0
  %1996 = vmatpush.msra.mxu0 0.0
  %1997 = vmatpush.msra.mxu0 0.0
  %1998 = vmatpush.msra.mxu0 0.0
  %1999 = vmatpush.msra.mxu0 0.0
  %2000 = vmatpush.msra.mxu0 0.0
  %2001 = vmatpush.msra.mxu0 0.0
  %2002 = vmatpush.msra.mxu0 0.0
  %2003 = vmatpush.msra.mxu0 0.0
  %2004 = vmatpush.msra.mxu0 0.0
  %2005 = vmatpush.msra.mxu0 0.0
  %2006 = vmatpush.msra.mxu0 0.0
  %2007 = vmatpush.msra.mxu0 0.0
  %2008 = vmatpush.msra.mxu0 0.0
  %2009 = vmatpush.msra.mxu0 %v1863
  %2010 = vmatpush.msra.mxu0 %v1860
  %2011 = vmatmul.f32.gmra.mxu0 %v1990
  %v2012 = vpop.f32.mrf.mxu0
  %v2013 = vadd.f32 0.0, %v2012
  %2014 = vmatmul.f32.gmra.mxu0 %v1993
  %v2015 = vpop.f32.mrf.mxu0
  %v2016 = vadd.f32 0.0, %v2015
  %2017 = vdwg.mxu0
  %v2019 = vsel %vm857, %v1987, 0
  %v2022 = vsel %vm857, %v1988, 0
  %2024 = vmatpush.msra.mxu0 0.0
  %2025 = vmatpush.msra.mxu0 0.0
  %2026 = vmatpush.msra.mxu0 0.0
  %2027 = vmatpush.msra.mxu0 0.0
  %2028 = vmatpush.msra.mxu0 0.0
  %2029 = vmatpush.msra.mxu0 0.0
  %2030 = vmatpush.msra.mxu0 0.0
  %2031 = vmatpush.msra.mxu0 0.0
  %2032 = vmatpush.msra.mxu0 0.0
  %2033 = vmatpush.msra.mxu0 0.0
  %2034 = vmatpush.msra.mxu0 0.0
  %2035 = vmatpush.msra.mxu0 0.0
  %2036 = vmatpush.msra.mxu0 0.0
  %2037 = vmatpush.msra.mxu0 0.0
  %2038 = vmatpush.msra.mxu0 %v1869
  %2039 = vmatpush.msra.mxu0 %v1866
  %2040 = vmatmul.f32.gmra.mxu0 %v2019
  %v2041 = vpop.f32.mrf.mxu0
  %v2042 = vadd.f32 0.0, %v2041
  %2043 = vmatmul.f32.gmra.mxu0 %v2022
  %v2044 = vpop.f32.mrf.mxu0
  %v2045 = vadd.f32 0.0, %v2044
  %2046 = vdwg.mxu0
  %v2047 = vld [vmem:[%s13 + $0x18] sm:$0xff]
  %v2049 = vsel %vm786, %v2013, 0
  %v2052 = vsel %vm786, %v2016, 0
  %v2055 = vsel %vm786, %v2042, 0
  %v2058 = vsel %vm786, %v2045, 0
  %2060 = vmatpush.msra.mxu0 0.0
  %2061 = vmatpush.msra.mxu0 0.0
  %2062 = vmatpush.msra.mxu0 0.0
  %2063 = vmatpush.msra.mxu0 0.0
  %2064 = vmatpush.msra.mxu0 0.0
  %2065 = vmatpush.msra.mxu0 0.0
  %2066 = vmatpush.msra.mxu0 0.0
  %2067 = vmatpush.msra.mxu0 0.0
  %2068 = vmatpush.msra.mxu0 0.0
  %2069 = vmatpush.msra.mxu0 0.0
  %2070 = vmatpush.msra.mxu0 0.0
  %2071 = vmatpush.msra.mxu0 0.0
  %2072 = vmatpush.msra.mxu0 0.0
  %2073 = vmatpush.msra.mxu0 0.0
  %2074 = vmatpush.msra.mxu0 0.0
  %2075 = vmatpush.msra.mxu0 %v2047
  %2076 = vmatmul.f32.gmra.mxu0 %v2049
  %v2077 = vpop.f32.mrf.mxu0
  %v2078 = vadd.f32 0.0, %v2077
  %2079 = vmatmul.f32.gmra.mxu0 %v2052
  %v2080 = vpop.f32.mrf.mxu0
  %v2081 = vadd.f32 0.0, %v2080
  %2082 = vmatmul.f32.gmra.mxu0 %v2055
  %v2083 = vpop.f32.mrf.mxu0
  %v2084 = vadd.f32 0.0, %v2083
  %2085 = vmatmul.f32.gmra.mxu0 %v2058
  %v2086 = vpop.f32.mrf.mxu0
  %v2087 = vadd.f32 0.0, %v2086
  %2088 = vdwg.mxu0
  %v2089 = vadd.f32 %v1724, %v2078
  %v2090 = vadd.f32 %v1725, %v2081
  %v2091 = vadd.f32 %v1726, %v2084
  %v2092 = vadd.f32 %v1727, %v2087
  %v2093 = vld [vmem:[%s14] sm:$0x1]
  %v2095 = vperm.slane %v2093, 0
  %v2097 = vadd.f32 %v2089, %v2095
  %v2098 = vadd.f32 %v2090, %v2095
  %v2099 = vadd.f32 %v2091, %v2095
  %v2100 = vadd.f32 %v2092, %v2095
  %v2101 = vmul.f32 %v412, %v2097
  %v2102 = vmul.f32 %v412, %v2098
  %v2103 = vmul.f32 %v413, %v2099
  %v2104 = vmul.f32 %v413, %v2100
  %v2105 = vadd.f32 %v134, %v2101
  %v2106 = vadd.f32 %v135, %v2102
  %v2107 = vadd.f32 %v136, %v2103
  %v2108 = vadd.f32 %v137, %v2104
  %v2109 = vsel %vm249, %v2105, 0.0
  %2110 = vadd.xlane.f32.xlu0 %v2109
  %v2111 = vpop.xlane.xlu0 %2110
  %v2112 = vsel %vm249, %v2106, 0.0
  %2113 = vadd.xlane.f32.xlu0 %v2112
  %v2114 = vpop.xlane.xlu0 %2113
  %v2115 = vsel %vm249, %v2107, 0.0
  %2116 = vadd.xlane.f32.xlu0 %v2115
  %v2117 = vpop.xlane.xlu0 %2116
  %v2118 = vsel %vm249, %v2108, 0.0
  %2119 = vadd.xlane.f32.xlu0 %v2118
  %v2120 = vpop.xlane.xlu0 %2119
  %v2121 = vmul.f32 %v2111, %v554
  %v2122 = vmul.f32 %v2114, %v554
  %v2123 = vmul.f32 %v2117, %v554
  %v2124 = vmul.f32 %v2120, %v554
  %v2125 = vsub.f32 %v2105, %v2121
  %v2126 = vsub.f32 %v2106, %v2122
  %v2127 = vsub.f32 %v2107, %v2123
  %v2128 = vsub.f32 %v2108, %v2124
  %v2129 = vmul.f32 %v2125, %v2125
  %v2130 = vmul.f32 %v2126, %v2126
  %v2131 = vmul.f32 %v2127, %v2127
  %v2132 = vmul.f32 %v2128, %v2128
  %v2133 = vsel %vm249, %v2129, 0.0
  %2134 = vadd.xlane.f32.xlu0 %v2133
  %v2135 = vpop.xlane.xlu0 %2134
  %v2136 = vsel %vm249, %v2130, 0.0
  %2137 = vadd.xlane.f32.xlu0 %v2136
  %v2138 = vpop.xlane.xlu0 %2137
  %v2139 = vsel %vm249, %v2131, 0.0
  %2140 = vadd.xlane.f32.xlu0 %v2139
  %v2141 = vpop.xlane.xlu0 %2140
  %v2142 = vsel %vm249, %v2132, 0.0
  %2143 = vadd.xlane.f32.xlu0 %v2142
  %v2144 = vpop.xlane.xlu0 %2143
  %v2145 = vmul.f32 %v2135, %v554
  %v2146 = vmul.f32 %v2138, %v554
  %v2147 = vmul.f32 %v2141, %v554
  %v2148 = vmul.f32 %v2144, %v554
  %v2149 = vadd.f32 %v2145, 1e-06
  %v2150 = vadd.f32 %v2146, 1e-06
  %v2151 = vadd.f32 %v2147, 1e-06
  %v2152 = vadd.f32 %v2148, 1e-06
  %v2153 = vrsqrt.pop %v2149
  %v2154 = vmul.f32 %v2153, %v2149
  %v2155 = vmul.f32 %v2154, %v2153
  %v2156 = vmul.f32 0.5, %v2155
  %v2157 = vsub.f32 1.5, %v2156
  %v2158 = vmul.f32 %v2153, %v2157
  %vm2159 = vweird.f32 %v2149
  %vm2160 = vweird.f32 %v2153
  %vm2161 = vmor %vm2159, %vm2160
  %v2162 = vsel %vm2161, %v2153, %v2158
  %v2163 = vrsqrt.pop %v2150
  %v2164 = vmul.f32 %v2163, %v2150
  %v2165 = vmul.f32 %v2164, %v2163
  %v2166 = vmul.f32 0.5, %v2165
  %v2167 = vsub.f32 1.5, %v2166
  %v2168 = vmul.f32 %v2163, %v2167
  %vm2169 = vweird.f32 %v2150
  %vm2170 = vweird.f32 %v2163
  %vm2171 = vmor %vm2169, %vm2170
  %v2172 = vsel %vm2171, %v2163, %v2168
  %v2173 = vrsqrt.pop %v2151
  %v2174 = vmul.f32 %v2173, %v2151
  %v2175 = vmul.f32 %v2174, %v2173
  %v2176 = vmul.f32 0.5, %v2175
  %v2177 = vsub.f32 1.5, %v2176
  %v2178 = vmul.f32 %v2173, %v2177
  %vm2179 = vweird.f32 %v2151
  %vm2180 = vweird.f32 %v2173
  %vm2181 = vmor %vm2179, %vm2180
  %v2182 = vsel %vm2181, %v2173, %v2178
  %v2183 = vrsqrt.pop %v2152
  %v2184 = vmul.f32 %v2183, %v2152
  %v2185 = vmul.f32 %v2184, %v2183
  %v2186 = vmul.f32 0.5, %v2185
  %v2187 = vsub.f32 1.5, %v2186
  %v2188 = vmul.f32 %v2183, %v2187
  %vm2189 = vweird.f32 %v2152
  %vm2190 = vweird.f32 %v2183
  %vm2191 = vmor %vm2189, %vm2190
  %v2192 = vsel %vm2191, %v2183, %v2188
  %v2193 = vmul.f32 %v2125, %v2162
  %v2194 = vmul.f32 %v2126, %v2172
  %v2195 = vmul.f32 %v2127, %v2182
  %v2196 = vmul.f32 %v2128, %v2192
  %v2197 = vadd.f32 %v487, 1.0
  %v2198 = vadd.f32 %v488, 1.0
  %v2199 = vmul.f32 %v2193, %v2197
  %v2200 = vmul.f32 %v2194, %v2197
  %v2201 = vmul.f32 %v2195, %v2198
  %v2202 = vmul.f32 %v2196, %v2198
  %v2203 = vadd.f32 %v2199, %v453
  %v2204 = vadd.f32 %v2200, %v453
  %v2205 = vadd.f32 %v2201, %v454
  %v2206 = vadd.f32 %v2202, %v454
  %v2207 = vld [vmem:[%s15] sm:$0xff]
  %v2208 = vld [vmem:[%s15 + $0x8] sm:$0xff]
  %v2209 = vld [vmem:[%s15 + $0x10] sm:$0xff]
  %v2210 = vld [vmem:[%s15 + $0x18] sm:$0xff]
  %v2211 = vld [vmem:[%s16] sm:$0x1]
  %v2213 = vperm.slane %v2211, 0
  %v2216 = vsel %vm249, %v2203, 0
  %v2219 = vsel %vm249, %v2204, 0
  %v2222 = vsel %vm249, %v2205, 0
  %v2225 = vsel %vm249, %v2206, 0
  %2227 = vmatpush.msra.mxu0 0.0
  %2228 = vmatpush.msra.mxu0 0.0
  %2229 = vmatpush.msra.mxu0 0.0
  %2230 = vmatpush.msra.mxu0 0.0
  %2231 = vmatpush.msra.mxu0 0.0
  %2232 = vmatpush.msra.mxu0 0.0
  %2233 = vmatpush.msra.mxu0 0.0
  %2234 = vmatpush.msra.mxu0 0.0
  %2235 = vmatpush.msra.mxu0 0.0
  %2236 = vmatpush.msra.mxu0 0.0
  %2237 = vmatpush.msra.mxu0 0.0
  %2238 = vmatpush.msra.mxu0 0.0
  %2239 = vmatpush.msra.mxu0 %v2210
  %2240 = vmatpush.msra.mxu0 %v2209
  %2241 = vmatpush.msra.mxu0 %v2208
  %2242 = vmatpush.msra.mxu0 %v2207
  %2243 = vmatmul.f32.gmra.mxu0 %v2216
  %v2244 = vpop.f32.mrf.mxu0
  %v2245 = vadd.f32 %v2213, %v2244
  %2246 = vmatmul.f32.gmra.mxu0 %v2219
  %v2247 = vpop.f32.mrf.mxu0
  %v2248 = vadd.f32 %v2213, %v2247
  %2249 = vmatmul.f32.gmra.mxu0 %v2222
  %v2250 = vpop.f32.mrf.mxu0
  %v2251 = vadd.f32 %v2213, %v2250
  %2252 = vmatmul.f32.gmra.mxu0 %v2225
  %v2253 = vpop.f32.mrf.mxu0
  %v2254 = vadd.f32 %v2213, %v2253
  %2255 = vdwg.mxu0
  %v2256 = vmul.f32 %v2245, %v2245
  %v2257 = vmul.f32 %v2248, %v2248
  %v2258 = vmul.f32 %v2251, %v2251
  %v2259 = vmul.f32 %v2254, %v2254
  %v2260 = vmul.f32 %v2245, %v2256
  %v2261 = vmul.f32 %v2248, %v2257
  %v2262 = vmul.f32 %v2251, %v2258
  %v2263 = vmul.f32 %v2254, %v2259
  %v2264 = vmul.f32 %v2260, 0.044715
  %v2265 = vmul.f32 %v2261, 0.044715
  %v2266 = vmul.f32 %v2262, 0.044715
  %v2267 = vmul.f32 %v2263, 0.044715
  %v2268 = vadd.f32 %v2245, %v2264
  %v2269 = vadd.f32 %v2248, %v2265
  %v2270 = vadd.f32 %v2251, %v2266
  %v2271 = vadd.f32 %v2254, %v2267
  %v2272 = vmul.f32 %v2268, 0.7978846
  %v2273 = vmul.f32 %v2269, 0.7978846
  %v2274 = vmul.f32 %v2270, 0.7978846
  %v2275 = vmul.f32 %v2271, 0.7978846
  %v2276 = vtanh.pop %v2272
  %v2277 = vtanh.pop %v2273
  %v2278 = vtanh.pop %v2274
  %v2279 = vtanh.pop %v2275
  %v2280 = vadd.f32 %v2276, 1.0
  %v2281 = vadd.f32 %v2277, 1.0
  %v2282 = vadd.f32 %v2278, 1.0
  %v2283 = vadd.f32 %v2279, 1.0
  %v2284 = vmul.f32 %v2280, 0.5
  %v2285 = vmul.f32 %v2281, 0.5
  %v2286 = vmul.f32 %v2282, 0.5
  %v2287 = vmul.f32 %v2283, 0.5
  %v2288 = vmul.f32 %v2245, %v2284
  %v2289 = vmul.f32 %v2248, %v2285
  %v2290 = vmul.f32 %v2251, %v2286
  %v2291 = vmul.f32 %v2254, %v2287
  %v2292 = vld [vmem:[%s17] sm:$0xff]
  %v2293 = vld [vmem:[%s17 + $0x8] sm:$0xff]
  %v2294 = vld [vmem:[%s17 + $0x10] sm:$0xff]
  %v2295 = vld [vmem:[%s17 + $0x18] sm:$0xff]
  %v2296 = vld [vmem:[%s17 + $0x20] sm:$0xff]
  %v2297 = vld [vmem:[%s17 + $0x28] sm:$0xff]
  %v2298 = vld [vmem:[%s17 + $0x30] sm:$0xff]
  %v2299 = vld [vmem:[%s17 + $0x38] sm:$0xff]
  %v2300 = vld [vmem:[%s17 + $0x40] sm:$0xff]
  %v2301 = vld [vmem:[%s17 + $0x48] sm:$0xff]
  %v2302 = vld [vmem:[%s17 + $0x50] sm:$0xff]
  %v2303 = vld [vmem:[%s17 + $0x58] sm:$0xff]
  %v2304 = vld [vmem:[%s17 + $0x60] sm:$0xff]
  %v2305 = vld [vmem:[%s17 + $0x68] sm:$0xff]
  %v2306 = vld [vmem:[%s17 + $0x70] sm:$0xff]
  %v2307 = vld [vmem:[%s17 + $0x78] sm:$0xff]
  %v2308 = vld [vmem:[%s18] sm:$0x1]
  %v2310 = vperm.slane %v2308, 0
  %2312 = vmatpush.msra.mxu0 %v2307
  %2313 = vmatpush.msra.mxu0 %v2306
  %2314 = vmatpush.msra.mxu0 %v2305
  %2315 = vmatpush.msra.mxu0 %v2304
  %2316 = vmatpush.msra.mxu0 %v2303
  %2317 = vmatpush.msra.mxu0 %v2302
  %2318 = vmatpush.msra.mxu0 %v2301
  %2319 = vmatpush.msra.mxu0 %v2300
  %2320 = vmatpush.msra.mxu0 %v2299
  %2321 = vmatpush.msra.mxu0 %v2298
  %2322 = vmatpush.msra.mxu0 %v2297
  %2323 = vmatpush.msra.mxu0 %v2296
  %2324 = vmatpush.msra.mxu0 %v2295
  %2325 = vmatpush.msra.mxu0 %v2294
  %2326 = vmatpush.msra.mxu0 %v2293
  %2327 = vmatpush.msra.mxu0 %v2292
  %2328 = vmatmul.f32.gmra.mxu0 %v2288
  %v2329 = vpop.f32.mrf.mxu0
  %v2330 = vadd.f32 %v2310, %v2329
  %2331 = vmatmul.f32.gmra.mxu0 %v2289
  %v2332 = vpop.f32.mrf.mxu0
  %v2333 = vadd.f32 %v2310, %v2332
  %2334 = vmatmul.f32.gmra.mxu0 %v2290
  %v2335 = vpop.f32.mrf.mxu0
  %v2336 = vadd.f32 %v2310, %v2335
  %2337 = vmatmul.f32.gmra.mxu0 %v2291
  %v2338 = vpop.f32.mrf.mxu0
  %v2339 = vadd.f32 %v2310, %v2338
  %2340 = vdwg.mxu0
  %v2341 = vmul.f32 %v532, %v2330
  %v2342 = vmul.f32 %v532, %v2333
  %v2343 = vmul.f32 %v533, %v2336
  %v2344 = vmul.f32 %v533, %v2339
  %v2345 = vadd.f32 %v2105, %v2341
  %v2346 = vadd.f32 %v2106, %v2342
  %v2347 = vadd.f32 %v2107, %v2343
  %v2348 = vadd.f32 %v2108, %v2344
  %s2349 = scalar_lea.vmem %s9, 64
  %v2350 = vld [vmem:[%s2349] sm:$0xff]
  %v2351 = vld [vmem:[%s2349 + $0x10] sm:$0xff]
  %v2352 = vld [vmem:[%s2349 + $0x20] sm:$0xff]
  %v2353 = vld [vmem:[%s2349 + $0x30] sm:$0xff]
  %s2354 = scalar_lea.vmem %s10, 2
  %v2355 = vld [vmem:[%s2354] sm:$0x1]
  %v2357 = vperm.slane %v2355, 0
  %2359 = vmatpush.msra.mxu0 0.0
  %2360 = vmatpush.msra.mxu0 0.0
  %2361 = vmatpush.msra.mxu0 0.0
  %2362 = vmatpush.msra.mxu0 0.0
  %2363 = vmatpush.msra.mxu0 0.0
  %2364 = vmatpush.msra.mxu0 0.0
  %2365 = vmatpush.msra.mxu0 0.0
  %2366 = vmatpush.msra.mxu0 0.0
  %2367 = vmatpush.msra.mxu0 0.0
  %2368 = vmatpush.msra.mxu0 0.0
  %2369 = vmatpush.msra.mxu0 0.0
  %2370 = vmatpush.msra.mxu0 0.0
  %2371 = vmatpush.msra.mxu0 %v2353
  %2372 = vmatpush.msra.mxu0 %v2352
  %2373 = vmatpush.msra.mxu0 %v2351
  %2374 = vmatpush.msra.mxu0 %v2350
  %2375 = vmatmul.f32.gmra.mxu0 %v302
  %v2376 = vpop.f32.mrf.mxu0
  %v2377 = vadd.f32 %v2357, %v2376
  %2378 = vdwg.mxu0
  %v2380 = vrot.slane %v2377, 1
  %v2381 = vperm.slane %v2377, 0
  %v2382 = vperm.slane %v2380, 0
  %2389 = vrot.lane.b32.xlu0 %v2350, 96
  %v2390 = vpop.permute.xlu0 %2389
  %2391 = vrot.lane.b32.xlu0 %v2351, 96
  %v2392 = vpop.permute.xlu0 %2391
  %2393 = vrot.lane.b32.xlu0 %v2352, 96
  %v2394 = vpop.permute.xlu0 %2393
  %2395 = vrot.lane.b32.xlu0 %v2353, 96
  %v2396 = vpop.permute.xlu0 %2395
  %2401 = vrot.lane.b32.xlu0 %v2357, 96
  %v2402 = vpop.permute.xlu0 %2401
  %2404 = vmatpush.msra.mxu0 0.0
  %2405 = vmatpush.msra.mxu0 0.0
  %2406 = vmatpush.msra.mxu0 0.0
  %2407 = vmatpush.msra.mxu0 0.0
  %2408 = vmatpush.msra.mxu0 0.0
  %2409 = vmatpush.msra.mxu0 0.0
  %2410 = vmatpush.msra.mxu0 0.0
  %2411 = vmatpush.msra.mxu0 0.0
  %2412 = vmatpush.msra.mxu0 0.0
  %2413 = vmatpush.msra.mxu0 0.0
  %2414 = vmatpush.msra.mxu0 0.0
  %2415 = vmatpush.msra.mxu0 0.0
  %2416 = vmatpush.msra.mxu0 %v2396
  %2417 = vmatpush.msra.mxu0 %v2394
  %2418 = vmatpush.msra.mxu0 %v2392
  %2419 = vmatpush.msra.mxu0 %v2390
  %2420 = vmatmul.f32.gmra.mxu0 %v302
  %v2421 = vpop.f32.mrf.mxu0
  %v2422 = vadd.f32 %v2402, %v2421
  %2423 = vdwg.mxu0
  %v2425 = vrot.slane %v2422, 1
  %v2426 = vperm.slane %v2422, 0
  %v2427 = vperm.slane %v2425, 0
  %2430 = vrot.lane.b32.xlu0 %v2350, 64
  %v2431 = vpop.permute.xlu0 %2430
  %2432 = vrot.lane.b32.xlu0 %v2351, 64
  %v2433 = vpop.permute.xlu0 %2432
  %2434 = vrot.lane.b32.xlu0 %v2352, 64
  %v2435 = vpop.permute.xlu0 %2434
  %2436 = vrot.lane.b32.xlu0 %v2353, 64
  %v2437 = vpop.permute.xlu0 %2436
  %2442 = vrot.lane.b32.xlu0 %v2357, 64
  %v2443 = vpop.permute.xlu0 %2442
  %2445 = vmatpush.msra.mxu0 0.0
  %2446 = vmatpush.msra.mxu0 0.0
  %2447 = vmatpush.msra.mxu0 0.0
  %2448 = vmatpush.msra.mxu0 0.0
  %2449 = vmatpush.msra.mxu0 0.0
  %2450 = vmatpush.msra.mxu0 0.0
  %2451 = vmatpush.msra.mxu0 0.0
  %2452 = vmatpush.msra.mxu0 0.0
  %2453 = vmatpush.msra.mxu0 0.0
  %2454 = vmatpush.msra.mxu0 0.0
  %2455 = vmatpush.msra.mxu0 0.0
  %2456 = vmatpush.msra.mxu0 0.0
  %2457 = vmatpush.msra.mxu0 %v2437
  %2458 = vmatpush.msra.mxu0 %v2435
  %2459 = vmatpush.msra.mxu0 %v2433
  %2460 = vmatpush.msra.mxu0 %v2431
  %2461 = vmatmul.f32.gmra.mxu0 %v302
  %v2462 = vpop.f32.mrf.mxu0
  %v2463 = vadd.f32 %v2443, %v2462
  %2464 = vdwg.mxu0
  %v2466 = vrot.slane %v2463, 1
  %v2467 = vperm.slane %v2463, 0
  %v2468 = vperm.slane %v2466, 0
  %2471 = vrot.lane.b32.xlu0 %v2350, 32
  %v2472 = vpop.permute.xlu0 %2471
  %2473 = vrot.lane.b32.xlu0 %v2351, 32
  %v2474 = vpop.permute.xlu0 %2473
  %2475 = vrot.lane.b32.xlu0 %v2352, 32
  %v2476 = vpop.permute.xlu0 %2475
  %2477 = vrot.lane.b32.xlu0 %v2353, 32
  %v2478 = vpop.permute.xlu0 %2477
  %2483 = vrot.lane.b32.xlu0 %v2357, 32
  %v2484 = vpop.permute.xlu0 %2483
  %2486 = vmatpush.msra.mxu0 0.0
  %2487 = vmatpush.msra.mxu0 0.0
  %2488 = vmatpush.msra.mxu0 0.0
  %2489 = vmatpush.msra.mxu0 0.0
  %2490 = vmatpush.msra.mxu0 0.0
  %2491 = vmatpush.msra.mxu0 0.0
  %2492 = vmatpush.msra.mxu0 0.0
  %2493 = vmatpush.msra.mxu0 0.0
  %2494 = vmatpush.msra.mxu0 0.0
  %2495 = vmatpush.msra.mxu0 0.0
  %2496 = vmatpush.msra.mxu0 0.0
  %2497 = vmatpush.msra.mxu0 0.0
  %2498 = vmatpush.msra.mxu0 %v2478
  %2499 = vmatpush.msra.mxu0 %v2476
  %2500 = vmatpush.msra.mxu0 %v2474
  %2501 = vmatpush.msra.mxu0 %v2472
  %2502 = vmatmul.f32.gmra.mxu0 %v302
  %v2503 = vpop.f32.mrf.mxu0
  %v2504 = vadd.f32 %v2484, %v2503
  %2505 = vdwg.mxu0
  %v2507 = vrot.slane %v2504, 1
  %v2508 = vperm.slane %v2504, 0
  %v2509 = vperm.slane %v2507, 0
  %v2512 = vld [vmem:[%s2349 + $0x8] sm:$0xff]
  %v2513 = vld [vmem:[%s2349 + $0x18] sm:$0xff]
  %v2514 = vld [vmem:[%s2349 + $0x28] sm:$0xff]
  %v2515 = vld [vmem:[%s2349 + $0x38] sm:$0xff]
  %v2516 = vld [vmem:[%s2354 + $0x1] sm:$0x1]
  %v2518 = vperm.slane %v2516, 0
  %2520 = vmatpush.msra.mxu0 0.0
  %2521 = vmatpush.msra.mxu0 0.0
  %2522 = vmatpush.msra.mxu0 0.0
  %2523 = vmatpush.msra.mxu0 0.0
  %2524 = vmatpush.msra.mxu0 0.0
  %2525 = vmatpush.msra.mxu0 0.0
  %2526 = vmatpush.msra.mxu0 0.0
  %2527 = vmatpush.msra.mxu0 0.0
  %2528 = vmatpush.msra.mxu0 0.0
  %2529 = vmatpush.msra.mxu0 0.0
  %2530 = vmatpush.msra.mxu0 0.0
  %2531 = vmatpush.msra.mxu0 0.0
  %2532 = vmatpush.msra.mxu0 %v2515
  %2533 = vmatpush.msra.mxu0 %v2514
  %2534 = vmatpush.msra.mxu0 %v2513
  %2535 = vmatpush.msra.mxu0 %v2512
  %2536 = vmatmul.f32.gmra.mxu0 %v302
  %v2537 = vpop.f32.mrf.mxu0
  %v2538 = vadd.f32 %v2518, %v2537
  %2539 = vdwg.mxu0
  %v2541 = vrot.slane %v2538, 1
  %v2542 = vperm.slane %v2538, 0
  %v2543 = vperm.slane %v2541, 0
  %2550 = vrot.lane.b32.xlu0 %v2512, 96
  %v2551 = vpop.permute.xlu0 %2550
  %2552 = vrot.lane.b32.xlu0 %v2513, 96
  %v2553 = vpop.permute.xlu0 %2552
  %2554 = vrot.lane.b32.xlu0 %v2514, 96
  %v2555 = vpop.permute.xlu0 %2554
  %2556 = vrot.lane.b32.xlu0 %v2515, 96
  %v2557 = vpop.permute.xlu0 %2556
  %2562 = vrot.lane.b32.xlu0 %v2518, 96
  %v2563 = vpop.permute.xlu0 %2562
  %2565 = vmatpush.msra.mxu0 0.0
  %2566 = vmatpush.msra.mxu0 0.0
  %2567 = vmatpush.msra.mxu0 0.0
  %2568 = vmatpush.msra.mxu0 0.0
  %2569 = vmatpush.msra.mxu0 0.0
  %2570 = vmatpush.msra.mxu0 0.0
  %2571 = vmatpush.msra.mxu0 0.0
  %2572 = vmatpush.msra.mxu0 0.0
  %2573 = vmatpush.msra.mxu0 0.0
  %2574 = vmatpush.msra.mxu0 0.0
  %2575 = vmatpush.msra.mxu0 0.0
  %2576 = vmatpush.msra.mxu0 0.0
  %2577 = vmatpush.msra.mxu0 %v2557
  %2578 = vmatpush.msra.mxu0 %v2555
  %2579 = vmatpush.msra.mxu0 %v2553
  %2580 = vmatpush.msra.mxu0 %v2551
  %2581 = vmatmul.f32.gmra.mxu0 %v302
  %v2582 = vpop.f32.mrf.mxu0
  %v2583 = vadd.f32 %v2563, %v2582
  %2584 = vdwg.mxu0
  %v2586 = vrot.slane %v2583, 1
  %v2587 = vperm.slane %v2583, 0
  %v2588 = vperm.slane %v2586, 0
  %v2591 = vsel %vm249, %v2345, 0.0
  %2592 = vadd.xlane.f32.xlu0 %v2591
  %v2593 = vpop.xlane.xlu0 %2592
  %v2594 = vsel %vm249, %v2346, 0.0
  %2595 = vadd.xlane.f32.xlu0 %v2594
  %v2596 = vpop.xlane.xlu0 %2595
  %v2597 = vsel %vm249, %v2347, 0.0
  %2598 = vadd.xlane.f32.xlu0 %v2597
  %v2599 = vpop.xlane.xlu0 %2598
  %v2600 = vsel %vm249, %v2348, 0.0
  %2601 = vadd.xlane.f32.xlu0 %v2600
  %v2602 = vpop.xlane.xlu0 %2601
  %v2603 = vmul.f32 %v2593, %v554
  %v2604 = vmul.f32 %v2596, %v554
  %v2605 = vmul.f32 %v2599, %v554
  %v2606 = vmul.f32 %v2602, %v554
  %v2607 = vsub.f32 %v2345, %v2603
  %v2608 = vsub.f32 %v2346, %v2604
  %v2609 = vsub.f32 %v2347, %v2605
  %v2610 = vsub.f32 %v2348, %v2606
  %v2611 = vmul.f32 %v2607, %v2607
  %v2612 = vmul.f32 %v2608, %v2608
  %v2613 = vmul.f32 %v2609, %v2609
  %v2614 = vmul.f32 %v2610, %v2610
  %v2615 = vsel %vm249, %v2611, 0.0
  %2616 = vadd.xlane.f32.xlu0 %v2615
  %v2617 = vpop.xlane.xlu0 %2616
  %v2618 = vsel %vm249, %v2612, 0.0
  %2619 = vadd.xlane.f32.xlu0 %v2618
  %v2620 = vpop.xlane.xlu0 %2619
  %v2621 = vsel %vm249, %v2613, 0.0
  %2622 = vadd.xlane.f32.xlu0 %v2621
  %v2623 = vpop.xlane.xlu0 %2622
  %v2624 = vsel %vm249, %v2614, 0.0
  %2625 = vadd.xlane.f32.xlu0 %v2624
  %v2626 = vpop.xlane.xlu0 %2625
  %v2627 = vmul.f32 %v2617, %v554
  %v2628 = vmul.f32 %v2620, %v554
  %v2629 = vmul.f32 %v2623, %v554
  %v2630 = vmul.f32 %v2626, %v554
  %v2631 = vadd.f32 %v2627, 1e-06
  %v2632 = vadd.f32 %v2628, 1e-06
  %v2633 = vadd.f32 %v2629, 1e-06
  %v2634 = vadd.f32 %v2630, 1e-06
  %v2635 = vrsqrt.pop %v2631
  %v2636 = vmul.f32 %v2635, %v2631
  %v2637 = vmul.f32 %v2636, %v2635
  %v2638 = vmul.f32 0.5, %v2637
  %v2639 = vsub.f32 1.5, %v2638
  %v2640 = vmul.f32 %v2635, %v2639
  %vm2641 = vweird.f32 %v2631
  %vm2642 = vweird.f32 %v2635
  %vm2643 = vmor %vm2641, %vm2642
  %v2644 = vsel %vm2643, %v2635, %v2640
  %v2645 = vrsqrt.pop %v2632
  %v2646 = vmul.f32 %v2645, %v2632
  %v2647 = vmul.f32 %v2646, %v2645
  %v2648 = vmul.f32 0.5, %v2647
  %v2649 = vsub.f32 1.5, %v2648
  %v2650 = vmul.f32 %v2645, %v2649
  %vm2651 = vweird.f32 %v2632
  %vm2652 = vweird.f32 %v2645
  %vm2653 = vmor %vm2651, %vm2652
  %v2654 = vsel %vm2653, %v2645, %v2650
  %v2655 = vrsqrt.pop %v2633
  %v2656 = vmul.f32 %v2655, %v2633
  %v2657 = vmul.f32 %v2656, %v2655
  %v2658 = vmul.f32 0.5, %v2657
  %v2659 = vsub.f32 1.5, %v2658
  %v2660 = vmul.f32 %v2655, %v2659
  %vm2661 = vweird.f32 %v2633
  %vm2662 = vweird.f32 %v2655
  %vm2663 = vmor %vm2661, %vm2662
  %v2664 = vsel %vm2663, %v2655, %v2660
  %v2665 = vrsqrt.pop %v2634
  %v2666 = vmul.f32 %v2665, %v2634
  %v2667 = vmul.f32 %v2666, %v2665
  %v2668 = vmul.f32 0.5, %v2667
  %v2669 = vsub.f32 1.5, %v2668
  %v2670 = vmul.f32 %v2665, %v2669
  %vm2671 = vweird.f32 %v2634
  %vm2672 = vweird.f32 %v2665
  %vm2673 = vmor %vm2671, %vm2672
  %v2674 = vsel %vm2673, %v2665, %v2670
  %v2675 = vmul.f32 %v2607, %v2644
  %v2676 = vmul.f32 %v2608, %v2654
  %v2677 = vmul.f32 %v2609, %v2664
  %v2678 = vmul.f32 %v2610, %v2674
  %v2679 = vadd.f32 %v2426, 1.0
  %v2680 = vadd.f32 %v2427, 1.0
  %v2681 = vmul.f32 %v2675, %v2679
  %v2682 = vmul.f32 %v2676, %v2679
  %v2683 = vmul.f32 %v2677, %v2680
  %v2684 = vmul.f32 %v2678, %v2680
  %v2685 = vadd.f32 %v2681, %v2381
  %v2686 = vadd.f32 %v2682, %v2381
  %v2687 = vadd.f32 %v2683, %v2382
  %v2688 = vadd.f32 %v2684, %v2382
  %s2689 = scalar_lea.vmem %s11, 32
  %v2690 = vld [vmem:[%s2689] sm:$0xff]
  %v2691 = vld [vmem:[%s2689 + $0x8] sm:$0xff]
  %v2692 = vld [vmem:[%s2689 + $0x10] sm:$0xff]
  %v2693 = vld [vmem:[%s2689 + $0x18] sm:$0xff]
  %s2694 = scalar_lea.vmem %s12, 1
  %v2695 = vld [vmem:[%s2694] sm:$0x1]
  %v2697 = vperm.slane %v2695, 0
  %v2700 = vsel %vm249, %v2685, 0
  %v2703 = vsel %vm249, %v2686, 0
  %v2706 = vsel %vm249, %v2687, 0
  %v2709 = vsel %vm249, %v2688, 0
  %2711 = vmatpush.msra.mxu0 0.0
  %2712 = vmatpush.msra.mxu0 0.0
  %2713 = vmatpush.msra.mxu0 0.0
  %2714 = vmatpush.msra.mxu0 0.0
  %2715 = vmatpush.msra.mxu0 0.0
  %2716 = vmatpush.msra.mxu0 0.0
  %2717 = vmatpush.msra.mxu0 0.0
  %2718 = vmatpush.msra.mxu0 0.0
  %2719 = vmatpush.msra.mxu0 0.0
  %2720 = vmatpush.msra.mxu0 0.0
  %2721 = vmatpush.msra.mxu0 0.0
  %2722 = vmatpush.msra.mxu0 0.0
  %2723 = vmatpush.msra.mxu0 %v2693
  %2724 = vmatpush.msra.mxu0 %v2692
  %2725 = vmatpush.msra.mxu0 %v2691
  %2726 = vmatpush.msra.mxu0 %v2690
  %2727 = vmatmul.f32.gmra.mxu0 %v2700
  %v2728 = vpop.f32.mrf.mxu0
  %v2729 = vadd.f32 %v2697, %v2728
  %2730 = vmatmul.f32.gmra.mxu0 %v2703
  %v2731 = vpop.f32.mrf.mxu0
  %v2732 = vadd.f32 %v2697, %v2731
  %2733 = vmatmul.f32.gmra.mxu0 %v2706
  %v2734 = vpop.f32.mrf.mxu0
  %v2735 = vadd.f32 %v2697, %v2734
  %2736 = vmatmul.f32.gmra.mxu0 %v2709
  %v2737 = vpop.f32.mrf.mxu0
  %v2738 = vadd.f32 %v2697, %v2737
  %2739 = vdwg.mxu0
  %2744 = vrot.lane.b32.xlu0 %v2690, 96
  %v2745 = vpop.permute.xlu0 %2744
  %2746 = vrot.lane.b32.xlu0 %v2691, 96
  %v2747 = vpop.permute.xlu0 %2746
  %2748 = vrot.lane.b32.xlu0 %v2692, 96
  %v2749 = vpop.permute.xlu0 %2748
  %2750 = vrot.lane.b32.xlu0 %v2693, 96
  %v2751 = vpop.permute.xlu0 %2750
  %2756 = vrot.lane.b32.xlu0 %v2697, 96
  %v2757 = vpop.permute.xlu0 %2756
  %2759 = vmatpush.msra.mxu0 0.0
  %2760 = vmatpush.msra.mxu0 0.0
  %2761 = vmatpush.msra.mxu0 0.0
  %2762 = vmatpush.msra.mxu0 0.0
  %2763 = vmatpush.msra.mxu0 0.0
  %2764 = vmatpush.msra.mxu0 0.0
  %2765 = vmatpush.msra.mxu0 0.0
  %2766 = vmatpush.msra.mxu0 0.0
  %2767 = vmatpush.msra.mxu0 0.0
  %2768 = vmatpush.msra.mxu0 0.0
  %2769 = vmatpush.msra.mxu0 0.0
  %2770 = vmatpush.msra.mxu0 0.0
  %2771 = vmatpush.msra.mxu0 %v2751
  %2772 = vmatpush.msra.mxu0 %v2749
  %2773 = vmatpush.msra.mxu0 %v2747
  %2774 = vmatpush.msra.mxu0 %v2745
  %2775 = vmatmul.f32.gmra.mxu0 %v2700
  %v2776 = vpop.f32.mrf.mxu0
  %v2777 = vadd.f32 %v2757, %v2776
  %2778 = vmatmul.f32.gmra.mxu0 %v2703
  %v2779 = vpop.f32.mrf.mxu0
  %v2780 = vadd.f32 %v2757, %v2779
  %2781 = vmatmul.f32.gmra.mxu0 %v2706
  %v2782 = vpop.f32.mrf.mxu0
  %v2783 = vadd.f32 %v2757, %v2782
  %2784 = vmatmul.f32.gmra.mxu0 %v2709
  %v2785 = vpop.f32.mrf.mxu0
  %v2786 = vadd.f32 %v2757, %v2785
  %2787 = vdwg.mxu0
  %2788 = vrot.lane.b32.xlu0 %v2690, 64
  %v2789 = vpop.permute.xlu0 %2788
  %2790 = vrot.lane.b32.xlu0 %v2691, 64
  %v2791 = vpop.permute.xlu0 %2790
  %2792 = vrot.lane.b32.xlu0 %v2692, 64
  %v2793 = vpop.permute.xlu0 %2792
  %2794 = vrot.lane.b32.xlu0 %v2693, 64
  %v2795 = vpop.permute.xlu0 %2794
  %2800 = vrot.lane.b32.xlu0 %v2697, 64
  %v2801 = vpop.permute.xlu0 %2800
  %2803 = vmatpush.msra.mxu0 0.0
  %2804 = vmatpush.msra.mxu0 0.0
  %2805 = vmatpush.msra.mxu0 0.0
  %2806 = vmatpush.msra.mxu0 0.0
  %2807 = vmatpush.msra.mxu0 0.0
  %2808 = vmatpush.msra.mxu0 0.0
  %2809 = vmatpush.msra.mxu0 0.0
  %2810 = vmatpush.msra.mxu0 0.0
  %2811 = vmatpush.msra.mxu0 0.0
  %2812 = vmatpush.msra.mxu0 0.0
  %2813 = vmatpush.msra.mxu0 0.0
  %2814 = vmatpush.msra.mxu0 0.0
  %2815 = vmatpush.msra.mxu0 %v2795
  %2816 = vmatpush.msra.mxu0 %v2793
  %2817 = vmatpush.msra.mxu0 %v2791
  %2818 = vmatpush.msra.mxu0 %v2789
  %2819 = vmatmul.f32.gmra.mxu0 %v2700
  %v2820 = vpop.f32.mrf.mxu0
  %v2821 = vadd.f32 %v2801, %v2820
  %2822 = vmatmul.f32.gmra.mxu0 %v2703
  %v2823 = vpop.f32.mrf.mxu0
  %v2824 = vadd.f32 %v2801, %v2823
  %2825 = vmatmul.f32.gmra.mxu0 %v2706
  %v2826 = vpop.f32.mrf.mxu0
  %v2827 = vadd.f32 %v2801, %v2826
  %2828 = vmatmul.f32.gmra.mxu0 %v2709
  %v2829 = vpop.f32.mrf.mxu0
  %v2830 = vadd.f32 %v2801, %v2829
  %2831 = vdwg.mxu0
  %v2832 = vmul.f32 %v2729, 0.35355338
  %v2833 = vmul.f32 %v2732, 0.35355338
  %v2834 = vmul.f32 %v2735, 0.35355338
  %v2835 = vmul.f32 %v2738, 0.35355338
  %v2837 = vsel %vm786, %v2832, 0
  %v2840 = vsel %vm786, %v2833, 0
  %v2843 = vsel %vm786, %v2777, 0
  %v2846 = vsel %vm786, %v2780, 0
  %2848 = vmatpush.xpose.msra.mxu0 0.0
  %2849 = vmatpush.xpose.msra.mxu0 0.0
  %2850 = vmatpush.xpose.msra.mxu0 0.0
  %2851 = vmatpush.xpose.msra.mxu0 0.0
  %2852 = vmatpush.xpose.msra.mxu0 0.0
  %2853 = vmatpush.xpose.msra.mxu0 0.0
  %2854 = vmatpush.xpose.msra.mxu0 0.0
  %2855 = vmatpush.xpose.msra.mxu0 0.0
  %2856 = vmatpush.xpose.msra.mxu0 0.0
  %2857 = vmatpush.xpose.msra.mxu0 0.0
  %2858 = vmatpush.xpose.msra.mxu0 0.0
  %2859 = vmatpush.xpose.msra.mxu0 0.0
  %2860 = vmatpush.xpose.msra.mxu0 0.0
  %2861 = vmatpush.xpose.msra.mxu0 0.0
  %2862 = vmatpush.xpose.msra.mxu0 %v2846
  %2863 = vmatpush.xpose.msra.mxu0 %v2843
  %2864 = vmatmul.f32.gmra.mxu0 %v2837
  %v2865 = vpop.f32.mrf.mxu0
  %v2866 = vadd.f32 0.0, %v2865
  %2867 = vmatmul.f32.gmra.mxu0 %v2840
  %v2868 = vpop.f32.mrf.mxu0
  %v2869 = vadd.f32 0.0, %v2868
  %2870 = vdwg.mxu0
  %v2872 = vsel %vm786, %v2834, 0
  %v2875 = vsel %vm786, %v2835, 0
  %v2878 = vsel %vm786, %v2783, 0
  %v2881 = vsel %vm786, %v2786, 0
  %2883 = vmatpush.xpose.msra.mxu0 0.0
  %2884 = vmatpush.xpose.msra.mxu0 0.0
  %2885 = vmatpush.xpose.msra.mxu0 0.0
  %2886 = vmatpush.xpose.msra.mxu0 0.0
  %2887 = vmatpush.xpose.msra.mxu0 0.0
  %2888 = vmatpush.xpose.msra.mxu0 0.0
  %2889 = vmatpush.xpose.msra.mxu0 0.0
  %2890 = vmatpush.xpose.msra.mxu0 0.0
  %2891 = vmatpush.xpose.msra.mxu0 0.0
  %2892 = vmatpush.xpose.msra.mxu0 0.0
  %2893 = vmatpush.xpose.msra.mxu0 0.0
  %2894 = vmatpush.xpose.msra.mxu0 0.0
  %2895 = vmatpush.xpose.msra.mxu0 0.0
  %2896 = vmatpush.xpose.msra.mxu0 0.0
  %2897 = vmatpush.xpose.msra.mxu0 %v2881
  %2898 = vmatpush.xpose.msra.mxu0 %v2878
  %2899 = vmatmul.f32.gmra.mxu0 %v2872
  %v2900 = vpop.f32.mrf.mxu0
  %v2901 = vadd.f32 0.0, %v2900
  %2902 = vmatmul.f32.gmra.mxu0 %v2875
  %v2903 = vpop.f32.mrf.mxu0
  %v2904 = vadd.f32 0.0, %v2903
  %2905 = vdwg.mxu0
  %v2906 = vsel %vm857, %v2866, -inf
  %2907 = vmax.xlane.f32.xlu0 %v2906
  %v2908 = vpop.xlane.xlu0 %2907
  %v2909 = vsel %vm857, %v2869, -inf
  %2910 = vmax.xlane.f32.xlu0 %v2909
  %v2911 = vpop.xlane.xlu0 %2910
  %v2912 = vsel %vm857, %v2901, -inf
  %2913 = vmax.xlane.f32.xlu0 %v2912
  %v2914 = vpop.xlane.xlu0 %2913
  %v2915 = vsel %vm857, %v2904, -inf
  %2916 = vmax.xlane.f32.xlu0 %v2915
  %v2917 = vpop.xlane.xlu0 %2916
  %v2918 = vsub.f32 %v2866, %v2908
  %v2919 = vsub.f32 %v2869, %v2911
  %v2920 = vsub.f32 %v2901, %v2914
  %v2921 = vsub.f32 %v2904, %v2917
  %v2922 = vmul.f32 %v2918, 1.442695
  %v2923 = vpow.pop %v2922
  %v2924 = vmul.f32 %v2919, 1.442695
  %v2925 = vpow.pop %v2924
  %v2926 = vmul.f32 %v2920, 1.442695
  %v2927 = vpow.pop %v2926
  %v2928 = vmul.f32 %v2921, 1.442695
  %v2929 = vpow.pop %v2928
  %v2930 = vsel %vm857, %v2923, 0.0
  %2931 = vadd.xlane.f32.xlu0 %v2930
  %v2932 = vpop.xlane.xlu0 %2931
  %v2933 = vsel %vm857, %v2925, 0.0
  %2934 = vadd.xlane.f32.xlu0 %v2933
  %v2935 = vpop.xlane.xlu0 %2934
  %v2936 = vsel %vm857, %v2927, 0.0
  %2937 = vadd.xlane.f32.xlu0 %v2936
  %v2938 = vpop.xlane.xlu0 %2937
  %v2939 = vsel %vm857, %v2929, 0.0
  %2940 = vadd.xlane.f32.xlu0 %v2939
  %v2941 = vpop.xlane.xlu0 %2940
  %v2942 = vrcp.pop %v2932
  %v2943 = vrcp.pop %v2935
  %v2944 = vrcp.pop %v2938
  %v2945 = vrcp.pop %v2941
  %v2946 = vmul.f32 %v2923, %v2942
  %v2947 = vmul.f32 %v2925, %v2943
  %v2948 = vmul.f32 %v2927, %v2944
  %v2949 = vmul.f32 %v2929, %v2945
  %v2951 = vsel %vm857, %v2946, 0
  %v2954 = vsel %vm857, %v2947, 0
  %2956 = vmatpush.msra.mxu0 0.0
  %2957 = vmatpush.msra.mxu0 0.0
  %2958 = vmatpush.msra.mxu0 0.0
  %2959 = vmatpush.msra.mxu0 0.0
  %2960 = vmatpush.msra.mxu0 0.0
  %2961 = vmatpush.msra.mxu0 0.0
  %2962 = vmatpush.msra.mxu0 0.0
  %2963 = vmatpush.msra.mxu0 0.0
  %2964 = vmatpush.msra.mxu0 0.0
  %2965 = vmatpush.msra.mxu0 0.0
  %2966 = vmatpush.msra.mxu0 0.0
  %2967 = vmatpush.msra.mxu0 0.0
  %2968 = vmatpush.msra.mxu0 0.0
  %2969 = vmatpush.msra.mxu0 0.0
  %2970 = vmatpush.msra.mxu0 %v2824
  %2971 = vmatpush.msra.mxu0 %v2821
  %2972 = vmatmul.f32.gmra.mxu0 %v2951
  %v2973 = vpop.f32.mrf.mxu0
  %v2974 = vadd.f32 0.0, %v2973
  %2975 = vmatmul.f32.gmra.mxu0 %v2954
  %v2976 = vpop.f32.mrf.mxu0
  %v2977 = vadd.f32 0.0, %v2976
  %2978 = vdwg.mxu0
  %v2980 = vsel %vm857, %v2948, 0
  %v2983 = vsel %vm857, %v2949, 0
  %2985 = vmatpush.msra.mxu0 0.0
  %2986 = vmatpush.msra.mxu0 0.0
  %2987 = vmatpush.msra.mxu0 0.0
  %2988 = vmatpush.msra.mxu0 0.0
  %2989 = vmatpush.msra.mxu0 0.0
  %2990 = vmatpush.msra.mxu0 0.0
  %2991 = vmatpush.msra.mxu0 0.0
  %2992 = vmatpush.msra.mxu0 0.0
  %2993 = vmatpush.msra.mxu0 0.0
  %2994 = vmatpush.msra.mxu0 0.0
  %2995 = vmatpush.msra.mxu0 0.0
  %2996 = vmatpush.msra.mxu0 0.0
  %2997 = vmatpush.msra.mxu0 0.0
  %2998 = vmatpush.msra.mxu0 0.0
  %2999 = vmatpush.msra.mxu0 %v2830
  %3000 = vmatpush.msra.mxu0 %v2827
  %3001 = vmatmul.f32.gmra.mxu0 %v2980
  %v3002 = vpop.f32.mrf.mxu0
  %v3003 = vadd.f32 0.0, %v3002
  %3004 = vmatmul.f32.gmra.mxu0 %v2983
  %v3005 = vpop.f32.mrf.mxu0
  %v3006 = vadd.f32 0.0, %v3005
  %3007 = vdwg.mxu0
  %s3008 = scalar_lea.vmem %s13, 32
  %v3009 = vld [vmem:[%s3008] sm:$0xff]
  %v3010 = vld [vmem:[%s2689] sm:$0xff]
  %v3011 = vld [vmem:[%s2689 + $0x8] sm:$0xff]
  %v3012 = vld [vmem:[%s2689 + $0x10] sm:$0xff]
  %v3013 = vld [vmem:[%s2689 + $0x18] sm:$0xff]
  %v3014 = vld [vmem:[%s2694] sm:$0x1]
  %v3016 = vperm.slane %v3014, 0
  %3021 = vrot.lane.b32.xlu0 %v3010, 120
  %v3022 = vpop.permute.xlu0 %3021
  %3023 = vrot.lane.b32.xlu0 %v3011, 120
  %v3024 = vpop.permute.xlu0 %3023
  %3025 = vrot.lane.b32.xlu0 %v3012, 120
  %v3026 = vpop.permute.xlu0 %3025
  %3027 = vrot.lane.b32.xlu0 %v3013, 120
  %v3028 = vpop.permute.xlu0 %3027
  %3033 = vrot.lane.b32.xlu0 %v3016, 120
  %v3034 = vpop.permute.xlu0 %3033
  %3036 = vmatpush.msra.mxu0 0.0
  %3037 = vmatpush.msra.mxu0 0.0
  %3038 = vmatpush.msra.mxu0 0.0
  %3039 = vmatpush.msra.mxu0 0.0
  %3040 = vmatpush.msra.mxu0 0.0
  %3041 = vmatpush.msra.mxu0 0.0
  %3042 = vmatpush.msra.mxu0 0.0
  %3043 = vmatpush.msra.mxu0 0.0
  %3044 = vmatpush.msra.mxu0 0.0
  %3045 = vmatpush.msra.mxu0 0.0
  %3046 = vmatpush.msra.mxu0 0.0
  %3047 = vmatpush.msra.mxu0 0.0
  %3048 = vmatpush.msra.mxu0 %v3028
  %3049 = vmatpush.msra.mxu0 %v3026
  %3050 = vmatpush.msra.mxu0 %v3024
  %3051 = vmatpush.msra.mxu0 %v3022
  %3052 = vmatmul.f32.gmra.mxu0 %v2700
  %v3053 = vpop.f32.mrf.mxu0
  %v3054 = vadd.f32 %v3034, %v3053
  %3055 = vmatmul.f32.gmra.mxu0 %v2703
  %v3056 = vpop.f32.mrf.mxu0
  %v3057 = vadd.f32 %v3034, %v3056
  %3058 = vmatmul.f32.gmra.mxu0 %v2706
  %v3059 = vpop.f32.mrf.mxu0
  %v3060 = vadd.f32 %v3034, %v3059
  %3061 = vmatmul.f32.gmra.mxu0 %v2709
  %v3062 = vpop.f32.mrf.mxu0
  %v3063 = vadd.f32 %v3034, %v3062
  %3064 = vdwg.mxu0
  %3065 = vrot.lane.b32.xlu0 %v3010, 88
  %v3066 = vpop.permute.xlu0 %3065
  %3067 = vrot.lane.b32.xlu0 %v3011, 88
  %v3068 = vpop.permute.xlu0 %3067
  %3069 = vrot.lane.b32.xlu0 %v3012, 88
  %v3070 = vpop.permute.xlu0 %3069
  %3071 = vrot.lane.b32.xlu0 %v3013, 88
  %v3072 = vpop.permute.xlu0 %3071
  %3077 = vrot.lane.b32.xlu0 %v3016, 88
  %v3078 = vpop.permute.xlu0 %3077
  %3080 = vmatpush.msra.mxu0 0.0
  %3081 = vmatpush.msra.mxu0 0.0
  %3082 = vmatpush.msra.mxu0 0.0
  %3083 = vmatpush.msra.mxu0 0.0
  %3084 = vmatpush.msra.mxu0 0.0
  %3085 = vmatpush.msra.mxu0 0.0
  %3086 = vmatpush.msra.mxu0 0.0
  %3087 = vmatpush.msra.mxu0 0.0
  %3088 = vmatpush.msra.mxu0 0.0
  %3089 = vmatpush.msra.mxu0 0.0
  %3090 = vmatpush.msra.mxu0 0.0
  %3091 = vmatpush.msra.mxu0 0.0
  %3092 = vmatpush.msra.mxu0 %v3072
  %3093 = vmatpush.msra.mxu0 %v3070
  %3094 = vmatpush.msra.mxu0 %v3068
  %3095 = vmatpush.msra.mxu0 %v3066
  %3096 = vmatmul.f32.gmra.mxu0 %v2700
  %v3097 = vpop.f32.mrf.mxu0
  %v3098 = vadd.f32 %v3078, %v3097
  %3099 = vmatmul.f32.gmra.mxu0 %v2703
  %v3100 = vpop.f32.mrf.mxu0
  %v3101 = vadd.f32 %v3078, %v3100
  %3102 = vmatmul.f32.gmra.mxu0 %v2706
  %v3103 = vpop.f32.mrf.mxu0
  %v3104 = vadd.f32 %v3078, %v3103
  %3105 = vmatmul.f32.gmra.mxu0 %v2709
  %v3106 = vpop.f32.mrf.mxu0
  %v3107 = vadd.f32 %v3078, %v3106
  %3108 = vdwg.mxu0
  %3109 = vrot.lane.b32.xlu0 %v3010, 56
  %v3110 = vpop.permute.xlu0 %3109
  %3111 = vrot.lane.b32.xlu0 %v3011, 56
  %v3112 = vpop.permute.xlu0 %3111
  %3113 = vrot.lane.b32.xlu0 %v3012, 56
  %v3114 = vpop.permute.xlu0 %3113
  %3115 = vrot.lane.b32.xlu0 %v3013, 56
  %v3116 = vpop.permute.xlu0 %3115
  %3121 = vrot.lane.b32.xlu0 %v3016, 56
  %v3122 = vpop.permute.xlu0 %3121
  %3124 = vmatpush.msra.mxu0 0.0
  %3125 = vmatpush.msra.mxu0 0.0
  %3126 = vmatpush.msra.mxu0 0.0
  %3127 = vmatpush.msra.mxu0 0.0
  %3128 = vmatpush.msra.mxu0 0.0
  %3129 = vmatpush.msra.mxu0 0.0
  %3130 = vmatpush.msra.mxu0 0.0
  %3131 = vmatpush.msra.mxu0 0.0
  %3132 = vmatpush.msra.mxu0 0.0
  %3133 = vmatpush.msra.mxu0 0.0
  %3134 = vmatpush.msra.mxu0 0.0
  %3135 = vmatpush.msra.mxu0 0.0
  %3136 = vmatpush.msra.mxu0 %v3116
  %3137 = vmatpush.msra.mxu0 %v3114
  %3138 = vmatpush.msra.mxu0 %v3112
  %3139 = vmatpush.msra.mxu0 %v3110
  %3140 = vmatmul.f32.gmra.mxu0 %v2700
  %v3141 = vpop.f32.mrf.mxu0
  %v3142 = vadd.f32 %v3122, %v3141
  %3143 = vmatmul.f32.gmra.mxu0 %v2703
  %v3144 = vpop.f32.mrf.mxu0
  %v3145 = vadd.f32 %v3122, %v3144
  %3146 = vmatmul.f32.gmra.mxu0 %v2706
  %v3147 = vpop.f32.mrf.mxu0
  %v3148 = vadd.f32 %v3122, %v3147
  %3149 = vmatmul.f32.gmra.mxu0 %v2709
  %v3150 = vpop.f32.mrf.mxu0
  %v3151 = vadd.f32 %v3122, %v3150
  %3152 = vdwg.mxu0
  %v3153 = vmul.f32 %v3054, 0.35355338
  %v3154 = vmul.f32 %v3057, 0.35355338
  %v3155 = vmul.f32 %v3060, 0.35355338
  %v3156 = vmul.f32 %v3063, 0.35355338
  %v3158 = vsel %vm786, %v3153, 0
  %v3161 = vsel %vm786, %v3154, 0
  %v3164 = vsel %vm786, %v3098, 0
  %v3167 = vsel %vm786, %v3101, 0
  %3169 = vmatpush.xpose.msra.mxu0 0.0
  %3170 = vmatpush.xpose.msra.mxu0 0.0
  %3171 = vmatpush.xpose.msra.mxu0 0.0
  %3172 = vmatpush.xpose.msra.mxu0 0.0
  %3173 = vmatpush.xpose.msra.mxu0 0.0
  %3174 = vmatpush.xpose.msra.mxu0 0.0
  %3175 = vmatpush.xpose.msra.mxu0 0.0
  %3176 = vmatpush.xpose.msra.mxu0 0.0
  %3177 = vmatpush.xpose.msra.mxu0 0.0
  %3178 = vmatpush.xpose.msra.mxu0 0.0
  %3179 = vmatpush.xpose.msra.mxu0 0.0
  %3180 = vmatpush.xpose.msra.mxu0 0.0
  %3181 = vmatpush.xpose.msra.mxu0 0.0
  %3182 = vmatpush.xpose.msra.mxu0 0.0
  %3183 = vmatpush.xpose.msra.mxu0 %v3167
  %3184 = vmatpush.xpose.msra.mxu0 %v3164
  %3185 = vmatmul.f32.gmra.mxu0 %v3158
  %v3186 = vpop.f32.mrf.mxu0
  %v3187 = vadd.f32 0.0, %v3186
  %3188 = vmatmul.f32.gmra.mxu0 %v3161
  %v3189 = vpop.f32.mrf.mxu0
  %v3190 = vadd.f32 0.0, %v3189
  %3191 = vdwg.mxu0
  %v3193 = vsel %vm786, %v3155, 0
  %v3196 = vsel %vm786, %v3156, 0
  %v3199 = vsel %vm786, %v3104, 0
  %v3202 = vsel %vm786, %v3107, 0
  %3204 = vmatpush.xpose.msra.mxu0 0.0
  %3205 = vmatpush.xpose.msra.mxu0 0.0
  %3206 = vmatpush.xpose.msra.mxu0 0.0
  %3207 = vmatpush.xpose.msra.mxu0 0.0
  %3208 = vmatpush.xpose.msra.mxu0 0.0
  %3209 = vmatpush.xpose.msra.mxu0 0.0
  %3210 = vmatpush.xpose.msra.mxu0 0.0
  %3211 = vmatpush.xpose.msra.mxu0 0.0
  %3212 = vmatpush.xpose.msra.mxu0 0.0
  %3213 = vmatpush.xpose.msra.mxu0 0.0
  %3214 = vmatpush.xpose.msra.mxu0 0.0
  %3215 = vmatpush.xpose.msra.mxu0 0.0
  %3216 = vmatpush.xpose.msra.mxu0 0.0
  %3217 = vmatpush.xpose.msra.mxu0 0.0
  %3218 = vmatpush.xpose.msra.mxu0 %v3202
  %3219 = vmatpush.xpose.msra.mxu0 %v3199
  %3220 = vmatmul.f32.gmra.mxu0 %v3193
  %v3221 = vpop.f32.mrf.mxu0
  %v3222 = vadd.f32 0.0, %v3221
  %3223 = vmatmul.f32.gmra.mxu0 %v3196
  %v3224 = vpop.f32.mrf.mxu0
  %v3225 = vadd.f32 0.0, %v3224
  %3226 = vdwg.mxu0
  %v3227 = vsel %vm857, %v3187, -inf
  %3228 = vmax.xlane.f32.xlu0 %v3227
  %v3229 = vpop.xlane.xlu0 %3228
  %v3230 = vsel %vm857, %v3190, -inf
  %3231 = vmax.xlane.f32.xlu0 %v3230
  %v3232 = vpop.xlane.xlu0 %3231
  %v3233 = vsel %vm857, %v3222, -inf
  %3234 = vmax.xlane.f32.xlu0 %v3233
  %v3235 = vpop.xlane.xlu0 %3234
  %v3236 = vsel %vm857, %v3225, -inf
  %3237 = vmax.xlane.f32.xlu0 %v3236
  %v3238 = vpop.xlane.xlu0 %3237
  %v3239 = vsub.f32 %v3187, %v3229
  %v3240 = vsub.f32 %v3190, %v3232
  %v3241 = vsub.f32 %v3222, %v3235
  %v3242 = vsub.f32 %v3225, %v3238
  %v3243 = vmul.f32 %v3239, 1.442695
  %v3244 = vpow.pop %v3243
  %v3245 = vmul.f32 %v3240, 1.442695
  %v3246 = vpow.pop %v3245
  %v3247 = vmul.f32 %v3241, 1.442695
  %v3248 = vpow.pop %v3247
  %v3249 = vmul.f32 %v3242, 1.442695
  %v3250 = vpow.pop %v3249
  %v3251 = vsel %vm857, %v3244, 0.0
  %3252 = vadd.xlane.f32.xlu0 %v3251
  %v3253 = vpop.xlane.xlu0 %3252
  %v3254 = vsel %vm857, %v3246, 0.0
  %3255 = vadd.xlane.f32.xlu0 %v3254
  %v3256 = vpop.xlane.xlu0 %3255
  %v3257 = vsel %vm857, %v3248, 0.0
  %3258 = vadd.xlane.f32.xlu0 %v3257
  %v3259 = vpop.xlane.xlu0 %3258
  %v3260 = vsel %vm857, %v3250, 0.0
  %3261 = vadd.xlane.f32.xlu0 %v3260
  %v3262 = vpop.xlane.xlu0 %3261
  %v3263 = vrcp.pop %v3253
  %v3264 = vrcp.pop %v3256
  %v3265 = vrcp.pop %v3259
  %v3266 = vrcp.pop %v3262
  %v3267 = vmul.f32 %v3244, %v3263
  %v3268 = vmul.f32 %v3246, %v3264
  %v3269 = vmul.f32 %v3248, %v3265
  %v3270 = vmul.f32 %v3250, %v3266
  %v3272 = vsel %vm857, %v3267, 0
  %v3275 = vsel %vm857, %v3268, 0
  %3277 = vmatpush.msra.mxu0 0.0
  %3278 = vmatpush.msra.mxu0 0.0
  %3279 = vmatpush.msra.mxu0 0.0
  %3280 = vmatpush.msra.mxu0 0.0
  %3281 = vmatpush.msra.mxu0 0.0
  %3282 = vmatpush.msra.mxu0 0.0
  %3283 = vmatpush.msra.mxu0 0.0
  %3284 = vmatpush.msra.mxu0 0.0
  %3285 = vmatpush.msra.mxu0 0.0
  %3286 = vmatpush.msra.mxu0 0.0
  %3287 = vmatpush.msra.mxu0 0.0
  %3288 = vmatpush.msra.mxu0 0.0
  %3289 = vmatpush.msra.mxu0 0.0
  %3290 = vmatpush.msra.mxu0 0.0
  %3291 = vmatpush.msra.mxu0 %v3145
  %3292 = vmatpush.msra.mxu0 %v3142
  %3293 = vmatmul.f32.gmra.mxu0 %v3272
  %v3294 = vpop.f32.mrf.mxu0
  %v3295 = vadd.f32 0.0, %v3294
  %3296 = vmatmul.f32.gmra.mxu0 %v3275
  %v3297 = vpop.f32.mrf.mxu0
  %v3298 = vadd.f32 0.0, %v3297
  %3299 = vdwg.mxu0
  %v3301 = vsel %vm857, %v3269, 0
  %v3304 = vsel %vm857, %v3270, 0
  %3306 = vmatpush.msra.mxu0 0.0
  %3307 = vmatpush.msra.mxu0 0.0
  %3308 = vmatpush.msra.mxu0 0.0
  %3309 = vmatpush.msra.mxu0 0.0
  %3310 = vmatpush.msra.mxu0 0.0
  %3311 = vmatpush.msra.mxu0 0.0
  %3312 = vmatpush.msra.mxu0 0.0
  %3313 = vmatpush.msra.mxu0 0.0
  %3314 = vmatpush.msra.mxu0 0.0
  %3315 = vmatpush.msra.mxu0 0.0
  %3316 = vmatpush.msra.mxu0 0.0
  %3317 = vmatpush.msra.mxu0 0.0
  %3318 = vmatpush.msra.mxu0 0.0
  %3319 = vmatpush.msra.mxu0 0.0
  %3320 = vmatpush.msra.mxu0 %v3151
  %3321 = vmatpush.msra.mxu0 %v3148
  %3322 = vmatmul.f32.gmra.mxu0 %v3301
  %v3323 = vpop.f32.mrf.mxu0
  %v3324 = vadd.f32 0.0, %v3323
  %3325 = vmatmul.f32.gmra.mxu0 %v3304
  %v3326 = vpop.f32.mrf.mxu0
  %v3327 = vadd.f32 0.0, %v3326
  %3328 = vdwg.mxu0
  %v3329 = vld [vmem:[%s3008 + $0x8] sm:$0xff]
  %v3331 = vsel %vm786, %v3295, 0
  %v3334 = vsel %vm786, %v3298, 0
  %v3337 = vsel %vm786, %v3324, 0
  %v3340 = vsel %vm786, %v3327, 0
  %3342 = vmatpush.msra.mxu0 0.0
  %3343 = vmatpush.msra.mxu0 0.0
  %3344 = vmatpush.msra.mxu0 0.0
  %3345 = vmatpush.msra.mxu0 0.0
  %3346 = vmatpush.msra.mxu0 0.0
  %3347 = vmatpush.msra.mxu0 0.0
  %3348 = vmatpush.msra.mxu0 0.0
  %3349 = vmatpush.msra.mxu0 0.0
  %3350 = vmatpush.msra.mxu0 0.0
  %3351 = vmatpush.msra.mxu0 0.0
  %3352 = vmatpush.msra.mxu0 0.0
  %3353 = vmatpush.msra.mxu0 0.0
  %3354 = vmatpush.msra.mxu0 0.0
  %3355 = vmatpush.msra.mxu0 0.0
  %3356 = vmatpush.msra.mxu0 0.0
  %3357 = vmatpush.msra.mxu0 %v3329
  %3358 = vmatmul.f32.gmra.mxu0 %v3331
  %v3359 = vpop.f32.mrf.mxu0
  %v3360 = vadd.f32 0.0, %v3359
  %3361 = vmatmul.f32.gmra.mxu0 %v3334
  %v3362 = vpop.f32.mrf.mxu0
  %v3363 = vadd.f32 0.0, %v3362
  %3364 = vmatmul.f32.gmra.mxu0 %v3337
  %v3365 = vpop.f32.mrf.mxu0
  %v3366 = vadd.f32 0.0, %v3365
  %3367 = vmatmul.f32.gmra.mxu0 %v3340
  %v3368 = vpop.f32.mrf.mxu0
  %v3369 = vadd.f32 0.0, %v3368
  %3370 = vdwg.mxu0
  %v3372 = vsel %vm786, %v2974, 0
  %v3375 = vsel %vm786, %v2977, 0
  %v3378 = vsel %vm786, %v3003, 0
  %v3381 = vsel %vm786, %v3006, 0
  %3383 = vmatpush.msra.mxu0 0.0
  %3384 = vmatpush.msra.mxu0 0.0
  %3385 = vmatpush.msra.mxu0 0.0
  %3386 = vmatpush.msra.mxu0 0.0
  %3387 = vmatpush.msra.mxu0 0.0
  %3388 = vmatpush.msra.mxu0 0.0
  %3389 = vmatpush.msra.mxu0 0.0
  %3390 = vmatpush.msra.mxu0 0.0
  %3391 = vmatpush.msra.mxu0 0.0
  %3392 = vmatpush.msra.mxu0 0.0
  %3393 = vmatpush.msra.mxu0 0.0
  %3394 = vmatpush.msra.mxu0 0.0
  %3395 = vmatpush.msra.mxu0 0.0
  %3396 = vmatpush.msra.mxu0 0.0
  %3397 = vmatpush.msra.mxu0 0.0
  %3398 = vmatpush.msra.mxu0 %v3009
  %3399 = vmatmul.f32.gmra.mxu0 %v3372
  %v3400 = vpop.f32.mrf.mxu0
  %v3401 = vadd.f32 %v3360, %v3400
  %3402 = vmatmul.f32.gmra.mxu0 %v3375
  %v3403 = vpop.f32.mrf.mxu0
  %v3404 = vadd.f32 %v3363, %v3403
  %3405 = vmatmul.f32.gmra.mxu0 %v3378
  %v3406 = vpop.f32.mrf.mxu0
  %v3407 = vadd.f32 %v3366, %v3406
  %3408 = vmatmul.f32.gmra.mxu0 %v3381
  %v3409 = vpop.f32.mrf.mxu0
  %v3410 = vadd.f32 %v3369, %v3409
  %3411 = vdwg.mxu0
  %v3412 = vld [vmem:[%s2689] sm:$0xff]
  %v3413 = vld [vmem:[%s2689 + $0x8] sm:$0xff]
  %v3414 = vld [vmem:[%s2689 + $0x10] sm:$0xff]
  %v3415 = vld [vmem:[%s2689 + $0x18] sm:$0xff]
  %v3416 = vld [vmem:[%s2694] sm:$0x1]
  %v3418 = vperm.slane %v3416, 0
  %3423 = vrot.lane.b32.xlu0 %v3412, 112
  %v3424 = vpop.permute.xlu0 %3423
  %3425 = vrot.lane.b32.xlu0 %v3413, 112
  %v3426 = vpop.permute.xlu0 %3425
  %3427 = vrot.lane.b32.xlu0 %v3414, 112
  %v3428 = vpop.permute.xlu0 %3427
  %3429 = vrot.lane.b32.xlu0 %v3415, 112
  %v3430 = vpop.permute.xlu0 %3429
  %3435 = vrot.lane.b32.xlu0 %v3418, 112
  %v3436 = vpop.permute.xlu0 %3435
  %3438 = vmatpush.msra.mxu0 0.0
  %3439 = vmatpush.msra.mxu0 0.0
  %3440 = vmatpush.msra.mxu0 0.0
  %3441 = vmatpush.msra.mxu0 0.0
  %3442 = vmatpush.msra.mxu0 0.0
  %3443 = vmatpush.msra.mxu0 0.0
  %3444 = vmatpush.msra.mxu0 0.0
  %3445 = vmatpush.msra.mxu0 0.0
  %3446 = vmatpush.msra.mxu0 0.0
  %3447 = vmatpush.msra.mxu0 0.0
  %3448 = vmatpush.msra.mxu0 0.0
  %3449 = vmatpush.msra.mxu0 0.0
  %3450 = vmatpush.msra.mxu0 %v3430
  %3451 = vmatpush.msra.mxu0 %v3428
  %3452 = vmatpush.msra.mxu0 %v3426
  %3453 = vmatpush.msra.mxu0 %v3424
  %3454 = vmatmul.f32.gmra.mxu0 %v2700
  %v3455 = vpop.f32.mrf.mxu0
  %v3456 = vadd.f32 %v3436, %v3455
  %3457 = vmatmul.f32.gmra.mxu0 %v2703
  %v3458 = vpop.f32.mrf.mxu0
  %v3459 = vadd.f32 %v3436, %v3458
  %3460 = vmatmul.f32.gmra.mxu0 %v2706
  %v3461 = vpop.f32.mrf.mxu0
  %v3462 = vadd.f32 %v3436, %v3461
  %3463 = vmatmul.f32.gmra.mxu0 %v2709
  %v3464 = vpop.f32.mrf.mxu0
  %v3465 = vadd.f32 %v3436, %v3464
  %3466 = vdwg.mxu0
  %3467 = vrot.lane.b32.xlu0 %v3412, 80
  %v3468 = vpop.permute.xlu0 %3467
  %3469 = vrot.lane.b32.xlu0 %v3413, 80
  %v3470 = vpop.permute.xlu0 %3469
  %3471 = vrot.lane.b32.xlu0 %v3414, 80
  %v3472 = vpop.permute.xlu0 %3471
  %3473 = vrot.lane.b32.xlu0 %v3415, 80
  %v3474 = vpop.permute.xlu0 %3473
  %3479 = vrot.lane.b32.xlu0 %v3418, 80
  %v3480 = vpop.permute.xlu0 %3479
  %3482 = vmatpush.msra.mxu0 0.0
  %3483 = vmatpush.msra.mxu0 0.0
  %3484 = vmatpush.msra.mxu0 0.0
  %3485 = vmatpush.msra.mxu0 0.0
  %3486 = vmatpush.msra.mxu0 0.0
  %3487 = vmatpush.msra.mxu0 0.0
  %3488 = vmatpush.msra.mxu0 0.0
  %3489 = vmatpush.msra.mxu0 0.0
  %3490 = vmatpush.msra.mxu0 0.0
  %3491 = vmatpush.msra.mxu0 0.0
  %3492 = vmatpush.msra.mxu0 0.0
  %3493 = vmatpush.msra.mxu0 0.0
  %3494 = vmatpush.msra.mxu0 %v3474
  %3495 = vmatpush.msra.mxu0 %v3472
  %3496 = vmatpush.msra.mxu0 %v3470
  %3497 = vmatpush.msra.mxu0 %v3468
  %3498 = vmatmul.f32.gmra.mxu0 %v2700
  %v3499 = vpop.f32.mrf.mxu0
  %v3500 = vadd.f32 %v3480, %v3499
  %3501 = vmatmul.f32.gmra.mxu0 %v2703
  %v3502 = vpop.f32.mrf.mxu0
  %v3503 = vadd.f32 %v3480, %v3502
  %3504 = vmatmul.f32.gmra.mxu0 %v2706
  %v3505 = vpop.f32.mrf.mxu0
  %v3506 = vadd.f32 %v3480, %v3505
  %3507 = vmatmul.f32.gmra.mxu0 %v2709
  %v3508 = vpop.f32.mrf.mxu0
  %v3509 = vadd.f32 %v3480, %v3508
  %3510 = vdwg.mxu0
  %3511 = vrot.lane.b32.xlu0 %v3412, 48
  %v3512 = vpop.permute.xlu0 %3511
  %3513 = vrot.lane.b32.xlu0 %v3413, 48
  %v3514 = vpop.permute.xlu0 %3513
  %3515 = vrot.lane.b32.xlu0 %v3414, 48
  %v3516 = vpop.permute.xlu0 %3515
  %3517 = vrot.lane.b32.xlu0 %v3415, 48
  %v3518 = vpop.permute.xlu0 %3517
  %3523 = vrot.lane.b32.xlu0 %v3418, 48
  %v3524 = vpop.permute.xlu0 %3523
  %3526 = vmatpush.msra.mxu0 0.0
  %3527 = vmatpush.msra.mxu0 0.0
  %3528 = vmatpush.msra.mxu0 0.0
  %3529 = vmatpush.msra.mxu0 0.0
  %3530 = vmatpush.msra.mxu0 0.0
  %3531 = vmatpush.msra.mxu0 0.0
  %3532 = vmatpush.msra.mxu0 0.0
  %3533 = vmatpush.msra.mxu0 0.0
  %3534 = vmatpush.msra.mxu0 0.0
  %3535 = vmatpush.msra.mxu0 0.0
  %3536 = vmatpush.msra.mxu0 0.0
  %3537 = vmatpush.msra.mxu0 0.0
  %3538 = vmatpush.msra.mxu0 %v3518
  %3539 = vmatpush.msra.mxu0 %v3516
  %3540 = vmatpush.msra.mxu0 %v3514
  %3541 = vmatpush.msra.mxu0 %v3512
  %3542 = vmatmul.f32.gmra.mxu0 %v2700
  %v3543 = vpop.f32.mrf.mxu0
  %v3544 = vadd.f32 %v3524, %v3543
  %3545 = vmatmul.f32.gmra.mxu0 %v2703
  %v3546 = vpop.f32.mrf.mxu0
  %v3547 = vadd.f32 %v3524, %v3546
  %3548 = vmatmul.f32.gmra.mxu0 %v2706
  %v3549 = vpop.f32.mrf.mxu0
  %v3550 = vadd.f32 %v3524, %v3549
  %3551 = vmatmul.f32.gmra.mxu0 %v2709
  %v3552 = vpop.f32.mrf.mxu0
  %v3553 = vadd.f32 %v3524, %v3552
  %3554 = vdwg.mxu0
  %v3555 = vmul.f32 %v3456, 0.35355338
  %v3556 = vmul.f32 %v3459, 0.35355338
  %v3557 = vmul.f32 %v3462, 0.35355338
  %v3558 = vmul.f32 %v3465, 0.35355338
  %v3560 = vsel %vm786, %v3555, 0
  %v3563 = vsel %vm786, %v3556, 0
  %v3566 = vsel %vm786, %v3500, 0
  %v3569 = vsel %vm786, %v3503, 0
  %3571 = vmatpush.xpose.msra.mxu0 0.0
  %3572 = vmatpush.xpose.msra.mxu0 0.0
  %3573 = vmatpush.xpose.msra.mxu0 0.0
  %3574 = vmatpush.xpose.msra.mxu0 0.0
  %3575 = vmatpush.xpose.msra.mxu0 0.0
  %3576 = vmatpush.xpose.msra.mxu0 0.0
  %3577 = vmatpush.xpose.msra.mxu0 0.0
  %3578 = vmatpush.xpose.msra.mxu0 0.0
  %3579 = vmatpush.xpose.msra.mxu0 0.0
  %3580 = vmatpush.xpose.msra.mxu0 0.0
  %3581 = vmatpush.xpose.msra.mxu0 0.0
  %3582 = vmatpush.xpose.msra.mxu0 0.0
  %3583 = vmatpush.xpose.msra.mxu0 0.0
  %3584 = vmatpush.xpose.msra.mxu0 0.0
  %3585 = vmatpush.xpose.msra.mxu0 %v3569
  %3586 = vmatpush.xpose.msra.mxu0 %v3566
  %3587 = vmatmul.f32.gmra.mxu0 %v3560
  %v3588 = vpop.f32.mrf.mxu0
  %v3589 = vadd.f32 0.0, %v3588
  %3590 = vmatmul.f32.gmra.mxu0 %v3563
  %v3591 = vpop.f32.mrf.mxu0
  %v3592 = vadd.f32 0.0, %v3591
  %3593 = vdwg.mxu0
  %v3595 = vsel %vm786, %v3557, 0
  %v3598 = vsel %vm786, %v3558, 0
  %v3601 = vsel %vm786, %v3506, 0
  %v3604 = vsel %vm786, %v3509, 0
  %3606 = vmatpush.xpose.msra.mxu0 0.0
  %3607 = vmatpush.xpose.msra.mxu0 0.0
  %3608 = vmatpush.xpose.msra.mxu0 0.0
  %3609 = vmatpush.xpose.msra.mxu0 0.0
  %3610 = vmatpush.xpose.msra.mxu0 0.0
  %3611 = vmatpush.xpose.msra.mxu0 0.0
  %3612 = vmatpush.xpose.msra.mxu0 0.0
  %3613 = vmatpush.xpose.msra.mxu0 0.0
  %3614 = vmatpush.xpose.msra.mxu0 0.0
  %3615 = vmatpush.xpose.msra.mxu0 0.0
  %3616 = vmatpush.xpose.msra.mxu0 0.0
  %3617 = vmatpush.xpose.msra.mxu0 0.0
  %3618 = vmatpush.xpose.msra.mxu0 0.0
  %3619 = vmatpush.xpose.msra.mxu0 0.0
  %3620 = vmatpush.xpose.msra.mxu0 %v3604
  %3621 = vmatpush.xpose.msra.mxu0 %v3601
  %3622 = vmatmul.f32.gmra.mxu0 %v3595
  %v3623 = vpop.f32.mrf.mxu0
  %v3624 = vadd.f32 0.0, %v3623
  %3625 = vmatmul.f32.gmra.mxu0 %v3598
  %v3626 = vpop.f32.mrf.mxu0
  %v3627 = vadd.f32 0.0, %v3626
  %3628 = vdwg.mxu0
  %v3629 = vsel %vm857, %v3589, -inf
  %3630 = vmax.xlane.f32.xlu0 %v3629
  %v3631 = vpop.xlane.xlu0 %3630
  %v3632 = vsel %vm857, %v3592, -inf
  %3633 = vmax.xlane.f32.xlu0 %v3632
  %v3634 = vpop.xlane.xlu0 %3633
  %v3635 = vsel %vm857, %v3624, -inf
  %3636 = vmax.xlane.f32.xlu0 %v3635
  %v3637 = vpop.xlane.xlu0 %3636
  %v3638 = vsel %vm857, %v3627, -inf
  %3639 = vmax.xlane.f32.xlu0 %v3638
  %v3640 = vpop.xlane.xlu0 %3639
  %v3641 = vsub.f32 %v3589, %v3631
  %v3642 = vsub.f32 %v3592, %v3634
  %v3643 = vsub.f32 %v3624, %v3637
  %v3644 = vsub.f32 %v3627, %v3640
  %v3645 = vmul.f32 %v3641, 1.442695
  %v3646 = vpow.pop %v3645
  %v3647 = vmul.f32 %v3642, 1.442695
  %v3648 = vpow.pop %v3647
  %v3649 = vmul.f32 %v3643, 1.442695
  %v3650 = vpow.pop %v3649
  %v3651 = vmul.f32 %v3644, 1.442695
  %v3652 = vpow.pop %v3651
  %v3653 = vsel %vm857, %v3646, 0.0
  %3654 = vadd.xlane.f32.xlu0 %v3653
  %v3655 = vpop.xlane.xlu0 %3654
  %v3656 = vsel %vm857, %v3648, 0.0
  %3657 = vadd.xlane.f32.xlu0 %v3656
  %v3658 = vpop.xlane.xlu0 %3657
  %v3659 = vsel %vm857, %v3650, 0.0
  %3660 = vadd.xlane.f32.xlu0 %v3659
  %v3661 = vpop.xlane.xlu0 %3660
  %v3662 = vsel %vm857, %v3652, 0.0
  %3663 = vadd.xlane.f32.xlu0 %v3662
  %v3664 = vpop.xlane.xlu0 %3663
  %v3665 = vrcp.pop %v3655
  %v3666 = vrcp.pop %v3658
  %v3667 = vrcp.pop %v3661
  %v3668 = vrcp.pop %v3664
  %v3669 = vmul.f32 %v3646, %v3665
  %v3670 = vmul.f32 %v3648, %v3666
  %v3671 = vmul.f32 %v3650, %v3667
  %v3672 = vmul.f32 %v3652, %v3668
  %v3674 = vsel %vm857, %v3669, 0
  %v3677 = vsel %vm857, %v3670, 0
  %3679 = vmatpush.msra.mxu0 0.0
  %3680 = vmatpush.msra.mxu0 0.0
  %3681 = vmatpush.msra.mxu0 0.0
  %3682 = vmatpush.msra.mxu0 0.0
  %3683 = vmatpush.msra.mxu0 0.0
  %3684 = vmatpush.msra.mxu0 0.0
  %3685 = vmatpush.msra.mxu0 0.0
  %3686 = vmatpush.msra.mxu0 0.0
  %3687 = vmatpush.msra.mxu0 0.0
  %3688 = vmatpush.msra.mxu0 0.0
  %3689 = vmatpush.msra.mxu0 0.0
  %3690 = vmatpush.msra.mxu0 0.0
  %3691 = vmatpush.msra.mxu0 0.0
  %3692 = vmatpush.msra.mxu0 0.0
  %3693 = vmatpush.msra.mxu0 %v3547
  %3694 = vmatpush.msra.mxu0 %v3544
  %3695 = vmatmul.f32.gmra.mxu0 %v3674
  %v3696 = vpop.f32.mrf.mxu0
  %v3697 = vadd.f32 0.0, %v3696
  %3698 = vmatmul.f32.gmra.mxu0 %v3677
  %v3699 = vpop.f32.mrf.mxu0
  %v3700 = vadd.f32 0.0, %v3699
  %3701 = vdwg.mxu0
  %v3703 = vsel %vm857, %v3671, 0
  %v3706 = vsel %vm857, %v3672, 0
  %3708 = vmatpush.msra.mxu0 0.0
  %3709 = vmatpush.msra.mxu0 0.0
  %3710 = vmatpush.msra.mxu0 0.0
  %3711 = vmatpush.msra.mxu0 0.0
  %3712 = vmatpush.msra.mxu0 0.0
  %3713 = vmatpush.msra.mxu0 0.0
  %3714 = vmatpush.msra.mxu0 0.0
  %3715 = vmatpush.msra.mxu0 0.0
  %3716 = vmatpush.msra.mxu0 0.0
  %3717 = vmatpush.msra.mxu0 0.0
  %3718 = vmatpush.msra.mxu0 0.0
  %3719 = vmatpush.msra.mxu0 0.0
  %3720 = vmatpush.msra.mxu0 0.0
  %3721 = vmatpush.msra.mxu0 0.0
  %3722 = vmatpush.msra.mxu0 %v3553
  %3723 = vmatpush.msra.mxu0 %v3550
  %3724 = vmatmul.f32.gmra.mxu0 %v3703
  %v3725 = vpop.f32.mrf.mxu0
  %v3726 = vadd.f32 0.0, %v3725
  %3727 = vmatmul.f32.gmra.mxu0 %v3706
  %v3728 = vpop.f32.mrf.mxu0
  %v3729 = vadd.f32 0.0, %v3728
  %3730 = vdwg.mxu0
  %v3731 = vld [vmem:[%s3008 + $0x10] sm:$0xff]
  %v3733 = vsel %vm786, %v3697, 0
  %v3736 = vsel %vm786, %v3700, 0
  %v3739 = vsel %vm786, %v3726, 0
  %v3742 = vsel %vm786, %v3729, 0
  %3744 = vmatpush.msra.mxu0 0.0
  %3745 = vmatpush.msra.mxu0 0.0
  %3746 = vmatpush.msra.mxu0 0.0
  %3747 = vmatpush.msra.mxu0 0.0
  %3748 = vmatpush.msra.mxu0 0.0
  %3749 = vmatpush.msra.mxu0 0.0
  %3750 = vmatpush.msra.mxu0 0.0
  %3751 = vmatpush.msra.mxu0 0.0
  %3752 = vmatpush.msra.mxu0 0.0
  %3753 = vmatpush.msra.mxu0 0.0
  %3754 = vmatpush.msra.mxu0 0.0
  %3755 = vmatpush.msra.mxu0 0.0
  %3756 = vmatpush.msra.mxu0 0.0
  %3757 = vmatpush.msra.mxu0 0.0
  %3758 = vmatpush.msra.mxu0 0.0
  %3759 = vmatpush.msra.mxu0 %v3731
  %3760 = vmatmul.f32.gmra.mxu0 %v3733
  %v3761 = vpop.f32.mrf.mxu0
  %v3762 = vadd.f32 0.0, %v3761
  %3763 = vmatmul.f32.gmra.mxu0 %v3736
  %v3764 = vpop.f32.mrf.mxu0
  %v3765 = vadd.f32 0.0, %v3764
  %3766 = vmatmul.f32.gmra.mxu0 %v3739
  %v3767 = vpop.f32.mrf.mxu0
  %v3768 = vadd.f32 0.0, %v3767
  %3769 = vmatmul.f32.gmra.mxu0 %v3742
  %v3770 = vpop.f32.mrf.mxu0
  %v3771 = vadd.f32 0.0, %v3770
  %3772 = vdwg.mxu0
  %v3773 = vadd.f32 %v3401, %v3762
  %v3774 = vadd.f32 %v3404, %v3765
  %v3775 = vadd.f32 %v3407, %v3768
  %v3776 = vadd.f32 %v3410, %v3771
  %v3777 = vld [vmem:[%s2689] sm:$0xff]
  %v3778 = vld [vmem:[%s2689 + $0x8] sm:$0xff]
  %v3779 = vld [vmem:[%s2689 + $0x10] sm:$0xff]
  %v3780 = vld [vmem:[%s2689 + $0x18] sm:$0xff]
  %v3781 = vld [vmem:[%s2694] sm:$0x1]
  %v3783 = vperm.slane %v3781, 0
  %3788 = vrot.lane.b32.xlu0 %v3777, 104
  %v3789 = vpop.permute.xlu0 %3788
  %3790 = vrot.lane.b32.xlu0 %v3778, 104
  %v3791 = vpop.permute.xlu0 %3790
  %3792 = vrot.lane.b32.xlu0 %v3779, 104
  %v3793 = vpop.permute.xlu0 %3792
  %3794 = vrot.lane.b32.xlu0 %v3780, 104
  %v3795 = vpop.permute.xlu0 %3794
  %3800 = vrot.lane.b32.xlu0 %v3783, 104
  %v3801 = vpop.permute.xlu0 %3800
  %3803 = vmatpush.msra.mxu0 0.0
  %3804 = vmatpush.msra.mxu0 0.0
  %3805 = vmatpush.msra.mxu0 0.0
  %3806 = vmatpush.msra.mxu0 0.0
  %3807 = vmatpush.msra.mxu0 0.0
  %3808 = vmatpush.msra.mxu0 0.0
  %3809 = vmatpush.msra.mxu0 0.0
  %3810 = vmatpush.msra.mxu0 0.0
  %3811 = vmatpush.msra.mxu0 0.0
  %3812 = vmatpush.msra.mxu0 0.0
  %3813 = vmatpush.msra.mxu0 0.0
  %3814 = vmatpush.msra.mxu0 0.0
  %3815 = vmatpush.msra.mxu0 %v3795
  %3816 = vmatpush.msra.mxu0 %v3793
  %3817 = vmatpush.msra.mxu0 %v3791
  %3818 = vmatpush.msra.mxu0 %v3789
  %3819 = vmatmul.f32.gmra.mxu0 %v2700
  %v3820 = vpop.f32.mrf.mxu0
  %v3821 = vadd.f32 %v3801, %v3820
  %3822 = vmatmul.f32.gmra.mxu0 %v2703
  %v3823 = vpop.f32.mrf.mxu0
  %v3824 = vadd.f32 %v3801, %v3823
  %3825 = vmatmul.f32.gmra.mxu0 %v2706
  %v3826 = vpop.f32.mrf.mxu0
  %v3827 = vadd.f32 %v3801, %v3826
  %3828 = vmatmul.f32.gmra.mxu0 %v2709
  %v3829 = vpop.f32.mrf.mxu0
  %v3830 = vadd.f32 %v3801, %v3829
  %3831 = vdwg.mxu0
  %3832 = vrot.lane.b32.xlu0 %v3777, 72
  %v3833 = vpop.permute.xlu0 %3832
  %3834 = vrot.lane.b32.xlu0 %v3778, 72
  %v3835 = vpop.permute.xlu0 %3834
  %3836 = vrot.lane.b32.xlu0 %v3779, 72
  %v3837 = vpop.permute.xlu0 %3836
  %3838 = vrot.lane.b32.xlu0 %v3780, 72
  %v3839 = vpop.permute.xlu0 %3838
  %3844 = vrot.lane.b32.xlu0 %v3783, 72
  %v3845 = vpop.permute.xlu0 %3844
  %3847 = vmatpush.msra.mxu0 0.0
  %3848 = vmatpush.msra.mxu0 0.0
  %3849 = vmatpush.msra.mxu0 0.0
  %3850 = vmatpush.msra.mxu0 0.0
  %3851 = vmatpush.msra.mxu0 0.0
  %3852 = vmatpush.msra.mxu0 0.0
  %3853 = vmatpush.msra.mxu0 0.0
  %3854 = vmatpush.msra.mxu0 0.0
  %3855 = vmatpush.msra.mxu0 0.0
  %3856 = vmatpush.msra.mxu0 0.0
  %3857 = vmatpush.msra.mxu0 0.0
  %3858 = vmatpush.msra.mxu0 0.0
  %3859 = vmatpush.msra.mxu0 %v3839
  %3860 = vmatpush.msra.mxu0 %v3837
  %3861 = vmatpush.msra.mxu0 %v3835
  %3862 = vmatpush.msra.mxu0 %v3833
  %3863 = vmatmul.f32.gmra.mxu0 %v2700
  %v3864 = vpop.f32.mrf.mxu0
  %v3865 = vadd.f32 %v3845, %v3864
  %3866 = vmatmul.f32.gmra.mxu0 %v2703
  %v3867 = vpop.f32.mrf.mxu0
  %v3868 = vadd.f32 %v3845, %v3867
  %3869 = vmatmul.f32.gmra.mxu0 %v2706
  %v3870 = vpop.f32.mrf.mxu0
  %v3871 = vadd.f32 %v3845, %v3870
  %3872 = vmatmul.f32.gmra.mxu0 %v2709
  %v3873 = vpop.f32.mrf.mxu0
  %v3874 = vadd.f32 %v3845, %v3873
  %3875 = vdwg.mxu0
  %3876 = vrot.lane.b32.xlu0 %v3777, 40
  %v3877 = vpop.permute.xlu0 %3876
  %3878 = vrot.lane.b32.xlu0 %v3778, 40
  %v3879 = vpop.permute.xlu0 %3878
  %3880 = vrot.lane.b32.xlu0 %v3779, 40
  %v3881 = vpop.permute.xlu0 %3880
  %3882 = vrot.lane.b32.xlu0 %v3780, 40
  %v3883 = vpop.permute.xlu0 %3882
  %3888 = vrot.lane.b32.xlu0 %v3783, 40
  %v3889 = vpop.permute.xlu0 %3888
  %3891 = vmatpush.msra.mxu0 0.0
  %3892 = vmatpush.msra.mxu0 0.0
  %3893 = vmatpush.msra.mxu0 0.0
  %3894 = vmatpush.msra.mxu0 0.0
  %3895 = vmatpush.msra.mxu0 0.0
  %3896 = vmatpush.msra.mxu0 0.0
  %3897 = vmatpush.msra.mxu0 0.0
  %3898 = vmatpush.msra.mxu0 0.0
  %3899 = vmatpush.msra.mxu0 0.0
  %3900 = vmatpush.msra.mxu0 0.0
  %3901 = vmatpush.msra.mxu0 0.0
  %3902 = vmatpush.msra.mxu0 0.0
  %3903 = vmatpush.msra.mxu0 %v3883
  %3904 = vmatpush.msra.mxu0 %v3881
  %3905 = vmatpush.msra.mxu0 %v3879
  %3906 = vmatpush.msra.mxu0 %v3877
  %3907 = vmatmul.f32.gmra.mxu0 %v2700
  %v3908 = vpop.f32.mrf.mxu0
  %v3909 = vadd.f32 %v3889, %v3908
  %3910 = vmatmul.f32.gmra.mxu0 %v2703
  %v3911 = vpop.f32.mrf.mxu0
  %v3912 = vadd.f32 %v3889, %v3911
  %3913 = vmatmul.f32.gmra.mxu0 %v2706
  %v3914 = vpop.f32.mrf.mxu0
  %v3915 = vadd.f32 %v3889, %v3914
  %3916 = vmatmul.f32.gmra.mxu0 %v2709
  %v3917 = vpop.f32.mrf.mxu0
  %v3918 = vadd.f32 %v3889, %v3917
  %3919 = vdwg.mxu0
  %v3920 = vmul.f32 %v3821, 0.35355338
  %v3921 = vmul.f32 %v3824, 0.35355338
  %v3922 = vmul.f32 %v3827, 0.35355338
  %v3923 = vmul.f32 %v3830, 0.35355338
  %v3925 = vsel %vm786, %v3920, 0
  %v3928 = vsel %vm786, %v3921, 0
  %v3931 = vsel %vm786, %v3865, 0
  %v3934 = vsel %vm786, %v3868, 0
  %3936 = vmatpush.xpose.msra.mxu0 0.0
  %3937 = vmatpush.xpose.msra.mxu0 0.0
  %3938 = vmatpush.xpose.msra.mxu0 0.0
  %3939 = vmatpush.xpose.msra.mxu0 0.0
  %3940 = vmatpush.xpose.msra.mxu0 0.0
  %3941 = vmatpush.xpose.msra.mxu0 0.0
  %3942 = vmatpush.xpose.msra.mxu0 0.0
  %3943 = vmatpush.xpose.msra.mxu0 0.0
  %3944 = vmatpush.xpose.msra.mxu0 0.0
  %3945 = vmatpush.xpose.msra.mxu0 0.0
  %3946 = vmatpush.xpose.msra.mxu0 0.0
  %3947 = vmatpush.xpose.msra.mxu0 0.0
  %3948 = vmatpush.xpose.msra.mxu0 0.0
  %3949 = vmatpush.xpose.msra.mxu0 0.0
  %3950 = vmatpush.xpose.msra.mxu0 %v3934
  %3951 = vmatpush.xpose.msra.mxu0 %v3931
  %3952 = vmatmul.f32.gmra.mxu0 %v3925
  %v3953 = vpop.f32.mrf.mxu0
  %v3954 = vadd.f32 0.0, %v3953
  %3955 = vmatmul.f32.gmra.mxu0 %v3928
  %v3956 = vpop.f32.mrf.mxu0
  %v3957 = vadd.f32 0.0, %v3956
  %3958 = vdwg.mxu0
  %v3960 = vsel %vm786, %v3922, 0
  %v3963 = vsel %vm786, %v3923, 0
  %v3966 = vsel %vm786, %v3871, 0
  %v3969 = vsel %vm786, %v3874, 0
  %3971 = vmatpush.xpose.msra.mxu0 0.0
  %3972 = vmatpush.xpose.msra.mxu0 0.0
  %3973 = vmatpush.xpose.msra.mxu0 0.0
  %3974 = vmatpush.xpose.msra.mxu0 0.0
  %3975 = vmatpush.xpose.msra.mxu0 0.0
  %3976 = vmatpush.xpose.msra.mxu0 0.0
  %3977 = vmatpush.xpose.msra.mxu0 0.0
  %3978 = vmatpush.xpose.msra.mxu0 0.0
  %3979 = vmatpush.xpose.msra.mxu0 0.0
  %3980 = vmatpush.xpose.msra.mxu0 0.0
  %3981 = vmatpush.xpose.msra.mxu0 0.0
  %3982 = vmatpush.xpose.msra.mxu0 0.0
  %3983 = vmatpush.xpose.msra.mxu0 0.0
  %3984 = vmatpush.xpose.msra.mxu0 0.0
  %3985 = vmatpush.xpose.msra.mxu0 %v3969
  %3986 = vmatpush.xpose.msra.mxu0 %v3966
  %3987 = vmatmul.f32.gmra.mxu0 %v3960
  %v3988 = vpop.f32.mrf.mxu0
  %v3989 = vadd.f32 0.0, %v3988
  %3990 = vmatmul.f32.gmra.mxu0 %v3963
  %v3991 = vpop.f32.mrf.mxu0
  %v3992 = vadd.f32 0.0, %v3991
  %3993 = vdwg.mxu0
  %v3994 = vsel %vm857, %v3954, -inf
  %3995 = vmax.xlane.f32.xlu0 %v3994
  %v3996 = vpop.xlane.xlu0 %3995
  %v3997 = vsel %vm857, %v3957, -inf
  %3998 = vmax.xlane.f32.xlu0 %v3997
  %v3999 = vpop.xlane.xlu0 %3998
  %v4000 = vsel %vm857, %v3989, -inf
  %4001 = vmax.xlane.f32.xlu0 %v4000
  %v4002 = vpop.xlane.xlu0 %4001
  %v4003 = vsel %vm857, %v3992, -inf
  %4004 = vmax.xlane.f32.xlu0 %v4003
  %v4005 = vpop.xlane.xlu0 %4004
  %v4006 = vsub.f32 %v3954, %v3996
  %v4007 = vsub.f32 %v3957, %v3999
  %v4008 = vsub.f32 %v3989, %v4002
  %v4009 = vsub.f32 %v3992, %v4005
  %v4010 = vmul.f32 %v4006, 1.442695
  %v4011 = vpow.pop %v4010
  %v4012 = vmul.f32 %v4007, 1.442695
  %v4013 = vpow.pop %v4012
  %v4014 = vmul.f32 %v4008, 1.442695
  %v4015 = vpow.pop %v4014
  %v4016 = vmul.f32 %v4009, 1.442695
  %v4017 = vpow.pop %v4016
  %v4018 = vsel %vm857, %v4011, 0.0
  %4019 = vadd.xlane.f32.xlu0 %v4018
  %v4020 = vpop.xlane.xlu0 %4019
  %v4021 = vsel %vm857, %v4013, 0.0
  %4022 = vadd.xlane.f32.xlu0 %v4021
  %v4023 = vpop.xlane.xlu0 %4022
  %v4024 = vsel %vm857, %v4015, 0.0
  %4025 = vadd.xlane.f32.xlu0 %v4024
  %v4026 = vpop.xlane.xlu0 %4025
  %v4027 = vsel %vm857, %v4017, 0.0
  %4028 = vadd.xlane.f32.xlu0 %v4027
  %v4029 = vpop.xlane.xlu0 %4028
  %v4030 = vrcp.pop %v4020
  %v4031 = vrcp.pop %v4023
  %v4032 = vrcp.pop %v4026
  %v4033 = vrcp.pop %v4029
  %v4034 = vmul.f32 %v4011, %v4030
  %v4035 = vmul.f32 %v4013, %v4031
  %v4036 = vmul.f32 %v4015, %v4032
  %v4037 = vmul.f32 %v4017, %v4033
  %v4039 = vsel %vm857, %v4034, 0
  %v4042 = vsel %vm857, %v4035, 0
  %4044 = vmatpush.msra.mxu0 0.0
  %4045 = vmatpush.msra.mxu0 0.0
  %4046 = vmatpush.msra.mxu0 0.0
  %4047 = vmatpush.msra.mxu0 0.0
  %4048 = vmatpush.msra.mxu0 0.0
  %4049 = vmatpush.msra.mxu0 0.0
  %4050 = vmatpush.msra.mxu0 0.0
  %4051 = vmatpush.msra.mxu0 0.0
  %4052 = vmatpush.msra.mxu0 0.0
  %4053 = vmatpush.msra.mxu0 0.0
  %4054 = vmatpush.msra.mxu0 0.0
  %4055 = vmatpush.msra.mxu0 0.0
  %4056 = vmatpush.msra.mxu0 0.0
  %4057 = vmatpush.msra.mxu0 0.0
  %4058 = vmatpush.msra.mxu0 %v3912
  %4059 = vmatpush.msra.mxu0 %v3909
  %4060 = vmatmul.f32.gmra.mxu0 %v4039
  %v4061 = vpop.f32.mrf.mxu0
  %v4062 = vadd.f32 0.0, %v4061
  %4063 = vmatmul.f32.gmra.mxu0 %v4042
  %v4064 = vpop.f32.mrf.mxu0
  %v4065 = vadd.f32 0.0, %v4064
  %4066 = vdwg.mxu0
  %v4068 = vsel %vm857, %v4036, 0
  %v4071 = vsel %vm857, %v4037, 0
  %4073 = vmatpush.msra.mxu0 0.0
  %4074 = vmatpush.msra.mxu0 0.0
  %4075 = vmatpush.msra.mxu0 0.0
  %4076 = vmatpush.msra.mxu0 0.0
  %4077 = vmatpush.msra.mxu0 0.0
  %4078 = vmatpush.msra.mxu0 0.0
  %4079 = vmatpush.msra.mxu0 0.0
  %4080 = vmatpush.msra.mxu0 0.0
  %4081 = vmatpush.msra.mxu0 0.0
  %4082 = vmatpush.msra.mxu0 0.0
  %4083 = vmatpush.msra.mxu0 0.0
  %4084 = vmatpush.msra.mxu0 0.0
  %4085 = vmatpush.msra.mxu0 0.0
  %4086 = vmatpush.msra.mxu0 0.0
  %4087 = vmatpush.msra.mxu0 %v3918
  %4088 = vmatpush.msra.mxu0 %v3915
  %4089 = vmatmul.f32.gmra.mxu0 %v4068
  %v4090 = vpop.f32.mrf.mxu0
  %v4091 = vadd.f32 0.0, %v4090
  %4092 = vmatmul.f32.gmra.mxu0 %v4071
  %v4093 = vpop.f32.mrf.mxu0
  %v4094 = vadd.f32 0.0, %v4093
  %4095 = vdwg.mxu0
  %v4096 = vld [vmem:[%s3008 + $0x18] sm:$0xff]
  %v4098 = vsel %vm786, %v4062, 0
  %v4101 = vsel %vm786, %v4065, 0
  %v4104 = vsel %vm786, %v4091, 0
  %v4107 = vsel %vm786, %v4094, 0
  %4109 = vmatpush.msra.mxu0 0.0
  %4110 = vmatpush.msra.mxu0 0.0
  %4111 = vmatpush.msra.mxu0 0.0
  %4112 = vmatpush.msra.mxu0 0.0
  %4113 = vmatpush.msra.mxu0 0.0
  %4114 = vmatpush.msra.mxu0 0.0
  %4115 = vmatpush.msra.mxu0 0.0
  %4116 = vmatpush.msra.mxu0 0.0
  %4117 = vmatpush.msra.mxu0 0.0
  %4118 = vmatpush.msra.mxu0 0.0
  %4119 = vmatpush.msra.mxu0 0.0
  %4120 = vmatpush.msra.mxu0 0.0
  %4121 = vmatpush.msra.mxu0 0.0
  %4122 = vmatpush.msra.mxu0 0.0
  %4123 = vmatpush.msra.mxu0 0.0
  %4124 = vmatpush.msra.mxu0 %v4096
  %4125 = vmatmul.f32.gmra.mxu0 %v4098
  %v4126 = vpop.f32.mrf.mxu0
  %v4127 = vadd.f32 0.0, %v4126
  %4128 = vmatmul.f32.gmra.mxu0 %v4101
  %v4129 = vpop.f32.mrf.mxu0
  %v4130 = vadd.f32 0.0, %v4129
  %4131 = vmatmul.f32.gmra.mxu0 %v4104
  %v4132 = vpop.f32.mrf.mxu0
  %v4133 = vadd.f32 0.0, %v4132
  %4134 = vmatmul.f32.gmra.mxu0 %v4107
  %v4135 = vpop.f32.mrf.mxu0
  %v4136 = vadd.f32 0.0, %v4135
  %4137 = vdwg.mxu0
  %v4138 = vadd.f32 %v3773, %v4127
  %v4139 = vadd.f32 %v3774, %v4130
  %v4140 = vadd.f32 %v3775, %v4133
  %v4141 = vadd.f32 %v3776, %v4136
  %s4142 = scalar_lea.vmem %s14, 1
  %v4143 = vld [vmem:[%s4142] sm:$0x1]
  %v4145 = vperm.slane %v4143, 0
  %v4147 = vadd.f32 %v4138, %v4145
  %v4148 = vadd.f32 %v4139, %v4145
  %v4149 = vadd.f32 %v4140, %v4145
  %v4150 = vadd.f32 %v4141, %v4145
  %v4151 = vmul.f32 %v2467, %v4147
  %v4152 = vmul.f32 %v2467, %v4148
  %v4153 = vmul.f32 %v2468, %v4149
  %v4154 = vmul.f32 %v2468, %v4150
  %v4155 = vadd.f32 %v2345, %v4151
  %v4156 = vadd.f32 %v2346, %v4152
  %v4157 = vadd.f32 %v2347, %v4153
  %v4158 = vadd.f32 %v2348, %v4154
  %v4159 = vsel %vm249, %v4155, 0.0
  %4160 = vadd.xlane.f32.xlu0 %v4159
  %v4161 = vpop.xlane.xlu0 %4160
  %v4162 = vsel %vm249, %v4156, 0.0
  %4163 = vadd.xlane.f32.xlu0 %v4162
  %v4164 = vpop.xlane.xlu0 %4163
  %v4165 = vsel %vm249, %v4157, 0.0
  %4166 = vadd.xlane.f32.xlu0 %v4165
  %v4167 = vpop.xlane.xlu0 %4166
  %v4168 = vsel %vm249, %v4158, 0.0
  %4169 = vadd.xlane.f32.xlu0 %v4168
  %v4170 = vpop.xlane.xlu0 %4169
  %v4171 = vmul.f32 %v4161, %v554
  %v4172 = vmul.f32 %v4164, %v554
  %v4173 = vmul.f32 %v4167, %v554
  %v4174 = vmul.f32 %v4170, %v554
  %v4175 = vsub.f32 %v4155, %v4171
  %v4176 = vsub.f32 %v4156, %v4172
  %v4177 = vsub.f32 %v4157, %v4173
  %v4178 = vsub.f32 %v4158, %v4174
  %v4179 = vmul.f32 %v4175, %v4175
  %v4180 = vmul.f32 %v4176, %v4176
  %v4181 = vmul.f32 %v4177, %v4177
  %v4182 = vmul.f32 %v4178, %v4178
  %v4183 = vsel %vm249, %v4179, 0.0
  %4184 = vadd.xlane.f32.xlu0 %v4183
  %v4185 = vpop.xlane.xlu0 %4184
  %v4186 = vsel %vm249, %v4180, 0.0
  %4187 = vadd.xlane.f32.xlu0 %v4186
  %v4188 = vpop.xlane.xlu0 %4187
  %v4189 = vsel %vm249, %v4181, 0.0
  %4190 = vadd.xlane.f32.xlu0 %v4189
  %v4191 = vpop.xlane.xlu0 %4190
  %v4192 = vsel %vm249, %v4182, 0.0
  %4193 = vadd.xlane.f32.xlu0 %v4192
  %v4194 = vpop.xlane.xlu0 %4193
  %v4195 = vmul.f32 %v4185, %v554
  %v4196 = vmul.f32 %v4188, %v554
  %v4197 = vmul.f32 %v4191, %v554
  %v4198 = vmul.f32 %v4194, %v554
  %v4199 = vadd.f32 %v4195, 1e-06
  %v4200 = vadd.f32 %v4196, 1e-06
  %v4201 = vadd.f32 %v4197, 1e-06
  %v4202 = vadd.f32 %v4198, 1e-06
  %v4203 = vrsqrt.pop %v4199
  %v4204 = vmul.f32 %v4203, %v4199
  %v4205 = vmul.f32 %v4204, %v4203
  %v4206 = vmul.f32 0.5, %v4205
  %v4207 = vsub.f32 1.5, %v4206
  %v4208 = vmul.f32 %v4203, %v4207
  %vm4209 = vweird.f32 %v4199
  %vm4210 = vweird.f32 %v4203
  %vm4211 = vmor %vm4209, %vm4210
  %v4212 = vsel %vm4211, %v4203, %v4208
  %v4213 = vrsqrt.pop %v4200
  %v4214 = vmul.f32 %v4213, %v4200
  %v4215 = vmul.f32 %v4214, %v4213
  %v4216 = vmul.f32 0.5, %v4215
  %v4217 = vsub.f32 1.5, %v4216
  %v4218 = vmul.f32 %v4213, %v4217
  %vm4219 = vweird.f32 %v4200
  %vm4220 = vweird.f32 %v4213
  %vm4221 = vmor %vm4219, %vm4220
  %v4222 = vsel %vm4221, %v4213, %v4218
  %v4223 = vrsqrt.pop %v4201
  %v4224 = vmul.f32 %v4223, %v4201
  %v4225 = vmul.f32 %v4224, %v4223
  %v4226 = vmul.f32 0.5, %v4225
  %v4227 = vsub.f32 1.5, %v4226
  %v4228 = vmul.f32 %v4223, %v4227
  %vm4229 = vweird.f32 %v4201
  %vm4230 = vweird.f32 %v4223
  %vm4231 = vmor %vm4229, %vm4230
  %v4232 = vsel %vm4231, %v4223, %v4228
  %v4233 = vrsqrt.pop %v4202
  %v4234 = vmul.f32 %v4233, %v4202
  %v4235 = vmul.f32 %v4234, %v4233
  %v4236 = vmul.f32 0.5, %v4235
  %v4237 = vsub.f32 1.5, %v4236
  %v4238 = vmul.f32 %v4233, %v4237
  %vm4239 = vweird.f32 %v4202
  %vm4240 = vweird.f32 %v4233
  %vm4241 = vmor %vm4239, %vm4240
  %v4242 = vsel %vm4241, %v4233, %v4238
  %v4243 = vmul.f32 %v4175, %v4212
  %v4244 = vmul.f32 %v4176, %v4222
  %v4245 = vmul.f32 %v4177, %v4232
  %v4246 = vmul.f32 %v4178, %v4242
  %v4247 = vadd.f32 %v2542, 1.0
  %v4248 = vadd.f32 %v2543, 1.0
  %v4249 = vmul.f32 %v4243, %v4247
  %v4250 = vmul.f32 %v4244, %v4247
  %v4251 = vmul.f32 %v4245, %v4248
  %v4252 = vmul.f32 %v4246, %v4248
  %v4253 = vadd.f32 %v4249, %v2508
  %v4254 = vadd.f32 %v4250, %v2508
  %v4255 = vadd.f32 %v4251, %v2509
  %v4256 = vadd.f32 %v4252, %v2509
  %s4257 = scalar_lea.vmem %s15, 32
  %v4258 = vld [vmem:[%s4257] sm:$0xff]
  %v4259 = vld [vmem:[%s4257 + $0x8] sm:$0xff]
  %v4260 = vld [vmem:[%s4257 + $0x10] sm:$0xff]
  %v4261 = vld [vmem:[%s4257 + $0x18] sm:$0xff]
  %s4262 = scalar_lea.vmem %s16, 1
  %v4263 = vld [vmem:[%s4262] sm:$0x1]
  %v4265 = vperm.slane %v4263, 0
  %v4268 = vsel %vm249, %v4253, 0
  %v4271 = vsel %vm249, %v4254, 0
  %v4274 = vsel %vm249, %v4255, 0
  %v4277 = vsel %vm249, %v4256, 0
  %4279 = vmatpush.msra.mxu0 0.0
  %4280 = vmatpush.msra.mxu0 0.0
  %4281 = vmatpush.msra.mxu0 0.0
  %4282 = vmatpush.msra.mxu0 0.0
  %4283 = vmatpush.msra.mxu0 0.0
  %4284 = vmatpush.msra.mxu0 0.0
  %4285 = vmatpush.msra.mxu0 0.0
  %4286 = vmatpush.msra.mxu0 0.0
  %4287 = vmatpush.msra.mxu0 0.0
  %4288 = vmatpush.msra.mxu0 0.0
  %4289 = vmatpush.msra.mxu0 0.0
  %4290 = vmatpush.msra.mxu0 0.0
  %4291 = vmatpush.msra.mxu0 %v4261
  %4292 = vmatpush.msra.mxu0 %v4260
  %4293 = vmatpush.msra.mxu0 %v4259
  %4294 = vmatpush.msra.mxu0 %v4258
  %4295 = vmatmul.f32.gmra.mxu0 %v4268
  %v4296 = vpop.f32.mrf.mxu0
  %v4297 = vadd.f32 %v4265, %v4296
  %4298 = vmatmul.f32.gmra.mxu0 %v4271
  %v4299 = vpop.f32.mrf.mxu0
  %v4300 = vadd.f32 %v4265, %v4299
  %4301 = vmatmul.f32.gmra.mxu0 %v4274
  %v4302 = vpop.f32.mrf.mxu0
  %v4303 = vadd.f32 %v4265, %v4302
  %4304 = vmatmul.f32.gmra.mxu0 %v4277
  %v4305 = vpop.f32.mrf.mxu0
  %v4306 = vadd.f32 %v4265, %v4305
  %4307 = vdwg.mxu0
  %v4308 = vmul.f32 %v4297, %v4297
  %v4309 = vmul.f32 %v4300, %v4300
  %v4310 = vmul.f32 %v4303, %v4303
  %v4311 = vmul.f32 %v4306, %v4306
  %v4312 = vmul.f32 %v4297, %v4308
  %v4313 = vmul.f32 %v4300, %v4309
  %v4314 = vmul.f32 %v4303, %v4310
  %v4315 = vmul.f32 %v4306, %v4311
  %v4316 = vmul.f32 %v4312, 0.044715
  %v4317 = vmul.f32 %v4313, 0.044715
  %v4318 = vmul.f32 %v4314, 0.044715
  %v4319 = vmul.f32 %v4315, 0.044715
  %v4320 = vadd.f32 %v4297, %v4316
  %v4321 = vadd.f32 %v4300, %v4317
  %v4322 = vadd.f32 %v4303, %v4318
  %v4323 = vadd.f32 %v4306, %v4319
  %v4324 = vmul.f32 %v4320, 0.7978846
  %v4325 = vmul.f32 %v4321, 0.7978846
  %v4326 = vmul.f32 %v4322, 0.7978846
  %v4327 = vmul.f32 %v4323, 0.7978846
  %v4328 = vtanh.pop %v4324
  %v4329 = vtanh.pop %v4325
  %v4330 = vtanh.pop %v4326
  %v4331 = vtanh.pop %v4327
  %v4332 = vadd.f32 %v4328, 1.0
  %v4333 = vadd.f32 %v4329, 1.0
  %v4334 = vadd.f32 %v4330, 1.0
  %v4335 = vadd.f32 %v4331, 1.0
  %v4336 = vmul.f32 %v4332, 0.5
  %v4337 = vmul.f32 %v4333, 0.5
  %v4338 = vmul.f32 %v4334, 0.5
  %v4339 = vmul.f32 %v4335, 0.5
  %v4340 = vmul.f32 %v4297, %v4336
  %v4341 = vmul.f32 %v4300, %v4337
  %v4342 = vmul.f32 %v4303, %v4338
  %v4343 = vmul.f32 %v4306, %v4339
  %s4344 = scalar_lea.vmem %s17, 128
  %v4345 = vld [vmem:[%s4344] sm:$0xff]
  %v4346 = vld [vmem:[%s4344 + $0x8] sm:$0xff]
  %v4347 = vld [vmem:[%s4344 + $0x10] sm:$0xff]
  %v4348 = vld [vmem:[%s4344 + $0x18] sm:$0xff]
  %v4349 = vld [vmem:[%s4344 + $0x20] sm:$0xff]
  %v4350 = vld [vmem:[%s4344 + $0x28] sm:$0xff]
  %v4351 = vld [vmem:[%s4344 + $0x30] sm:$0xff]
  %v4352 = vld [vmem:[%s4344 + $0x38] sm:$0xff]
  %v4353 = vld [vmem:[%s4344 + $0x40] sm:$0xff]
  %v4354 = vld [vmem:[%s4344 + $0x48] sm:$0xff]
  %v4355 = vld [vmem:[%s4344 + $0x50] sm:$0xff]
  %v4356 = vld [vmem:[%s4344 + $0x58] sm:$0xff]
  %v4357 = vld [vmem:[%s4344 + $0x60] sm:$0xff]
  %v4358 = vld [vmem:[%s4344 + $0x68] sm:$0xff]
  %v4359 = vld [vmem:[%s4344 + $0x70] sm:$0xff]
  %v4360 = vld [vmem:[%s4344 + $0x78] sm:$0xff]
  %s4361 = scalar_lea.vmem %s18, 1
  %v4362 = vld [vmem:[%s4361] sm:$0x1]
  %v4364 = vperm.slane %v4362, 0
  %4366 = vmatpush.msra.mxu0 %v4360
  %4367 = vmatpush.msra.mxu0 %v4359
  %4368 = vmatpush.msra.mxu0 %v4358
  %4369 = vmatpush.msra.mxu0 %v4357
  %4370 = vmatpush.msra.mxu0 %v4356
  %4371 = vmatpush.msra.mxu0 %v4355
  %4372 = vmatpush.msra.mxu0 %v4354
  %4373 = vmatpush.msra.mxu0 %v4353
  %4374 = vmatpush.msra.mxu0 %v4352
  %4375 = vmatpush.msra.mxu0 %v4351
  %4376 = vmatpush.msra.mxu0 %v4350
  %4377 = vmatpush.msra.mxu0 %v4349
  %4378 = vmatpush.msra.mxu0 %v4348
  %4379 = vmatpush.msra.mxu0 %v4347
  %4380 = vmatpush.msra.mxu0 %v4346
  %4381 = vmatpush.msra.mxu0 %v4345
  %4382 = vmatmul.f32.gmra.mxu0 %v4340
  %v4383 = vpop.f32.mrf.mxu0
  %v4384 = vadd.f32 %v4364, %v4383
  %4385 = vmatmul.f32.gmra.mxu0 %v4341
  %v4386 = vpop.f32.mrf.mxu0
  %v4387 = vadd.f32 %v4364, %v4386
  %4388 = vmatmul.f32.gmra.mxu0 %v4342
  %v4389 = vpop.f32.mrf.mxu0
  %v4390 = vadd.f32 %v4364, %v4389
  %4391 = vmatmul.f32.gmra.mxu0 %v4343
  %v4392 = vpop.f32.mrf.mxu0
  %v4393 = vadd.f32 %v4364, %v4392
  %4394 = vdwg.mxu0
  %v4395 = vmul.f32 %v2587, %v4384
  %v4396 = vmul.f32 %v2587, %v4387
  %v4397 = vmul.f32 %v2588, %v4390
  %v4398 = vmul.f32 %v2588, %v4393
  %v4399 = vadd.f32 %v4155, %v4395
  %v4400 = vadd.f32 %v4156, %v4396
  %v4401 = vadd.f32 %v4157, %v4397
  %v4402 = vadd.f32 %v4158, %v4398
  %v4403 = vld [vmem:[%s19] sm:$0xff]
  %v4404 = vld [vmem:[%s19 + $0x8] sm:$0xff]
  %v4405 = vld [vmem:[%s19 + $0x10] sm:$0xff]
  %v4406 = vld [vmem:[%s19 + $0x18] sm:$0xff]
  %v4407 = vld [vmem:[%s20] sm:$0x1]
  %v4409 = vperm.slane %v4407, 0
  %4411 = vmatpush.msra.mxu0 0.0
  %4412 = vmatpush.msra.mxu0 0.0
  %4413 = vmatpush.msra.mxu0 0.0
  %4414 = vmatpush.msra.mxu0 0.0
  %4415 = vmatpush.msra.mxu0 0.0
  %4416 = vmatpush.msra.mxu0 0.0
  %4417 = vmatpush.msra.mxu0 0.0
  %4418 = vmatpush.msra.mxu0 0.0
  %4419 = vmatpush.msra.mxu0 0.0
  %4420 = vmatpush.msra.mxu0 0.0
  %4421 = vmatpush.msra.mxu0 0.0
  %4422 = vmatpush.msra.mxu0 0.0
  %4423 = vmatpush.msra.mxu0 %v4406
  %4424 = vmatpush.msra.mxu0 %v4405
  %4425 = vmatpush.msra.mxu0 %v4404
  %4426 = vmatpush.msra.mxu0 %v4403
  %4427 = vmatmul.f32.gmra.mxu0 %v302
  %v4428 = vpop.f32.mrf.mxu0
  %v4429 = vadd.f32 %v4409, %v4428
  %4430 = vdwg.mxu0
  %v4432 = vrot.slane %v4429, 1
  %v4433 = vperm.slane %v4429, 0
  %v4434 = vperm.slane %v4432, 0
  %4441 = vrot.lane.b32.xlu0 %v4403, 96
  %v4442 = vpop.permute.xlu0 %4441
  %4443 = vrot.lane.b32.xlu0 %v4404, 96
  %v4444 = vpop.permute.xlu0 %4443
  %4445 = vrot.lane.b32.xlu0 %v4405, 96
  %v4446 = vpop.permute.xlu0 %4445
  %4447 = vrot.lane.b32.xlu0 %v4406, 96
  %v4448 = vpop.permute.xlu0 %4447
  %4453 = vrot.lane.b32.xlu0 %v4409, 96
  %v4454 = vpop.permute.xlu0 %4453
  %4456 = vmatpush.msra.mxu0 0.0
  %4457 = vmatpush.msra.mxu0 0.0
  %4458 = vmatpush.msra.mxu0 0.0
  %4459 = vmatpush.msra.mxu0 0.0
  %4460 = vmatpush.msra.mxu0 0.0
  %4461 = vmatpush.msra.mxu0 0.0
  %4462 = vmatpush.msra.mxu0 0.0
  %4463 = vmatpush.msra.mxu0 0.0
  %4464 = vmatpush.msra.mxu0 0.0
  %4465 = vmatpush.msra.mxu0 0.0
  %4466 = vmatpush.msra.mxu0 0.0
  %4467 = vmatpush.msra.mxu0 0.0
  %4468 = vmatpush.msra.mxu0 %v4448
  %4469 = vmatpush.msra.mxu0 %v4446
  %4470 = vmatpush.msra.mxu0 %v4444
  %4471 = vmatpush.msra.mxu0 %v4442
  %4472 = vmatmul.f32.gmra.mxu0 %v302
  %v4473 = vpop.f32.mrf.mxu0
  %v4474 = vadd.f32 %v4454, %v4473
  %4475 = vdwg.mxu0
  %v4477 = vrot.slane %v4474, 1
  %v4478 = vperm.slane %v4474, 0
  %v4479 = vperm.slane %v4477, 0
  %v4482 = vsel %vm249, %v4399, 0.0
  %4483 = vadd.xlane.f32.xlu0 %v4482
  %v4484 = vpop.xlane.xlu0 %4483
  %v4485 = vsel %vm249, %v4400, 0.0
  %4486 = vadd.xlane.f32.xlu0 %v4485
  %v4487 = vpop.xlane.xlu0 %4486
  %v4488 = vsel %vm249, %v4401, 0.0
  %4489 = vadd.xlane.f32.xlu0 %v4488
  %v4490 = vpop.xlane.xlu0 %4489
  %v4491 = vsel %vm249, %v4402, 0.0
  %4492 = vadd.xlane.f32.xlu0 %v4491
  %v4493 = vpop.xlane.xlu0 %4492
  %v4494 = vmul.f32 %v4484, %v554
  %v4495 = vmul.f32 %v4487, %v554
  %v4496 = vmul.f32 %v4490, %v554
  %v4497 = vmul.f32 %v4493, %v554
  %v4498 = vsub.f32 %v4399, %v4494
  %v4499 = vsub.f32 %v4400, %v4495
  %v4500 = vsub.f32 %v4401, %v4496
  %v4501 = vsub.f32 %v4402, %v4497
  %v4502 = vmul.f32 %v4498, %v4498
  %v4503 = vmul.f32 %v4499, %v4499
  %v4504 = vmul.f32 %v4500, %v4500
  %v4505 = vmul.f32 %v4501, %v4501
  %v4506 = vsel %vm249, %v4502, 0.0
  %4507 = vadd.xlane.f32.xlu0 %v4506
  %v4508 = vpop.xlane.xlu0 %4507
  %v4509 = vsel %vm249, %v4503, 0.0
  %4510 = vadd.xlane.f32.xlu0 %v4509
  %v4511 = vpop.xlane.xlu0 %4510
  %v4512 = vsel %vm249, %v4504, 0.0
  %4513 = vadd.xlane.f32.xlu0 %v4512
  %v4514 = vpop.xlane.xlu0 %4513
  %v4515 = vsel %vm249, %v4505, 0.0
  %4516 = vadd.xlane.f32.xlu0 %v4515
  %v4517 = vpop.xlane.xlu0 %4516
  %v4518 = vmul.f32 %v4508, %v554
  %v4519 = vmul.f32 %v4511, %v554
  %v4520 = vmul.f32 %v4514, %v554
  %v4521 = vmul.f32 %v4517, %v554
  %v4522 = vadd.f32 %v4518, 1e-06
  %v4523 = vadd.f32 %v4519, 1e-06
  %v4524 = vadd.f32 %v4520, 1e-06
  %v4525 = vadd.f32 %v4521, 1e-06
  %v4526 = vrsqrt.pop %v4522
  %v4527 = vmul.f32 %v4526, %v4522
  %v4528 = vmul.f32 %v4527, %v4526
  %v4529 = vmul.f32 0.5, %v4528
  %v4530 = vsub.f32 1.5, %v4529
  %v4531 = vmul.f32 %v4526, %v4530
  %vm4532 = vweird.f32 %v4522
  %vm4533 = vweird.f32 %v4526
  %vm4534 = vmor %vm4532, %vm4533
  %v4535 = vsel %vm4534, %v4526, %v4531
  %v4536 = vrsqrt.pop %v4523
  %v4537 = vmul.f32 %v4536, %v4523
  %v4538 = vmul.f32 %v4537, %v4536
  %v4539 = vmul.f32 0.5, %v4538
  %v4540 = vsub.f32 1.5, %v4539
  %v4541 = vmul.f32 %v4536, %v4540
  %vm4542 = vweird.f32 %v4523
  %vm4543 = vweird.f32 %v4536
  %vm4544 = vmor %vm4542, %vm4543
  %v4545 = vsel %vm4544, %v4536, %v4541
  %v4546 = vrsqrt.pop %v4524
  %v4547 = vmul.f32 %v4546, %v4524
  %v4548 = vmul.f32 %v4547, %v4546
  %v4549 = vmul.f32 0.5, %v4548
  %v4550 = vsub.f32 1.5, %v4549
  %v4551 = vmul.f32 %v4546, %v4550
  %vm4552 = vweird.f32 %v4524
  %vm4553 = vweird.f32 %v4546
  %vm4554 = vmor %vm4552, %vm4553
  %v4555 = vsel %vm4554, %v4546, %v4551
  %v4556 = vrsqrt.pop %v4525
  %v4557 = vmul.f32 %v4556, %v4525
  %v4558 = vmul.f32 %v4557, %v4556
  %v4559 = vmul.f32 0.5, %v4558
  %v4560 = vsub.f32 1.5, %v4559
  %v4561 = vmul.f32 %v4556, %v4560
  %vm4562 = vweird.f32 %v4525
  %vm4563 = vweird.f32 %v4556
  %vm4564 = vmor %vm4562, %vm4563
  %v4565 = vsel %vm4564, %v4556, %v4561
  %v4566 = vmul.f32 %v4498, %v4535
  %v4567 = vmul.f32 %v4499, %v4545
  %v4568 = vmul.f32 %v4500, %v4555
  %v4569 = vmul.f32 %v4501, %v4565
  %v4570 = vadd.f32 %v4478, 1.0
  %v4571 = vadd.f32 %v4479, 1.0
  %v4572 = vmul.f32 %v4566, %v4570
  %v4573 = vmul.f32 %v4567, %v4570
  %v4574 = vmul.f32 %v4568, %v4571
  %v4575 = vmul.f32 %v4569, %v4571
  %v4576 = vadd.f32 %v4572, %v4433
  %v4577 = vadd.f32 %v4573, %v4433
  %v4578 = vadd.f32 %v4574, %v4434
  %v4579 = vadd.f32 %v4575, %v4434
  %v4580 = vld [vmem:[%s21] sm:$0xff]
  %v4581 = vld [vmem:[%s21 + $0x8] sm:$0xff]
  %v4582 = vld [vmem:[%s21 + $0x10] sm:$0xff]
  %v4583 = vld [vmem:[%s21 + $0x18] sm:$0xff]
  %v4584 = vld [vmem:[%s22] sm:$0x1]
  %v4586 = vperm.slane %v4584, 0
  %v4589 = vsel %vm249, %v4576, 0
  %v4592 = vsel %vm249, %v4577, 0
  %v4595 = vsel %vm249, %v4578, 0
  %v4598 = vsel %vm249, %v4579, 0
  %4600 = vmatpush.msra.mxu0 0.0
  %4601 = vmatpush.msra.mxu0 0.0
  %4602 = vmatpush.msra.mxu0 0.0
  %4603 = vmatpush.msra.mxu0 0.0
  %4604 = vmatpush.msra.mxu0 0.0
  %4605 = vmatpush.msra.mxu0 0.0
  %4606 = vmatpush.msra.mxu0 0.0
  %4607 = vmatpush.msra.mxu0 0.0
  %4608 = vmatpush.msra.mxu0 0.0
  %4609 = vmatpush.msra.mxu0 0.0
  %4610 = vmatpush.msra.mxu0 0.0
  %4611 = vmatpush.msra.mxu0 0.0
  %4612 = vmatpush.msra.mxu0 %v4583
  %4613 = vmatpush.msra.mxu0 %v4582
  %4614 = vmatpush.msra.mxu0 %v4581
  %4615 = vmatpush.msra.mxu0 %v4580
  %4616 = vmatmul.f32.gmra.mxu0 %v4589
  %v4617 = vpop.f32.mrf.mxu0
  %v4618 = vadd.f32 %v4586, %v4617
  %4619 = vmatmul.f32.gmra.mxu0 %v4592
  %v4620 = vpop.f32.mrf.mxu0
  %v4621 = vadd.f32 %v4586, %v4620
  %4622 = vmatmul.f32.gmra.mxu0 %v4595
  %v4623 = vpop.f32.mrf.mxu0
  %v4624 = vadd.f32 %v4586, %v4623
  %4625 = vmatmul.f32.gmra.mxu0 %v4598
  %v4626 = vpop.f32.mrf.mxu0
  %v4627 = vadd.f32 %v4586, %v4626
  %4628 = vdwg.mxu0
  %4629 = vst.msk [vmem:[%s23] sm:$0xff] %vm92, %v4618
  %4630 = vst.msk [vmem:[%s23 + $0x8] sm:$0xff] %vm92, %v4621
  %4631 = vst.msk [vmem:[%s23 + $0x10] sm:$0xff] %vm92, %v4624
  %4632 = vst.msk [vmem:[%s23 + $0x18] sm:$0xff] %vm92, %v4627
  // Predicated region
  $region94: #{forward.1} parent=0 // pred_check
    _
  $region95: #{forward.1} parent=0 // pred_check_branch
    %4634 = sbr.rel (0) target = $region97
  $region96: #{forward.1} parent=0 // pred_region
    _
  $region97: #{forward.1} parent=0 // pred_fallthru
    _
  // Predicated region
  $region98: #{forward.1} parent=0 // pred_check
    _
  $region99: #{forward.1} parent=0 // pred_check_branch
    %4636 = sbr.rel (0) target = $region101
  $region100: #{forward.1} parent=0 // pred_region
    _
  $region101: #{forward.1} parent=0 // pred_fallthru
    _

</llo_original>
